<compile_context>
chip_gen: v7x
topology: tpu7x:2x2x1
jax: 0.10.0
libtpu: 0.0.40
codegen_flags: <defaults>
</compile_context>

<pallas_src>
import jax
import jax.numpy as jnp
from jax import lax
from jax.experimental import pallas as pl
from jax.experimental.pallas import tpu as pltpu

# -----------------------------------------------------------------------------
# Hyper-parameters.  The PyTorch module hard-codes nn.Linear(100, input_size)
# applied to out[:, -1] of a bidirectional GRU (feature dim 2*hidden_size), so
# the forward pass only type-checks when 2 * hidden_size == 100.
# -----------------------------------------------------------------------------
INPUT_SIZE = 16
OUTPUT_SIZE = 4
HIDDEN_SIZE = 50          # 2 * 50 == 100, matches the hard-coded Linear(100, I)
BATCH = 2
SEQ_LEN = 8
BN_EPS = 1e-5


def e2e_kernel(x_ref,      # (T*B, I)   time-major flattened input
               wi_ref,     # (6, I, H)  per-gate input weights [rf, zf, nf, rb, zb, nb]
               wh_ref,     # (3, H, H)  per-gate forward hidden weights [r, z, n]
               bias_ref,   # (8, H)     [r_f, z_f, in_f, hn_f, r_b, z_b, in_b, hn_b]
               fcw_ref,    # (2, H, I)  fc weight split into forward/backward halves
               nnw_ref,    # (I, O)     final Linear weight (transposed)
               tail_ref,   # (4, I)     [fc_b, bn_gamma, bn_beta, nn_b (padded to I)]
               out_ref):   # (B, O)
    TB, _ = x_ref.shape
    H = wh_ref.shape[1]
    B, O = out_ref.shape
    T = TB // B

    x = x_ref[...]
    bias = bias_ref[...]

    # ---- hoisted input-side projections for the forward direction -----------
    # One (T*B, I) x (I, H) matmul per gate, off the serial recurrence chain.
    # r/z biases already include the hidden bias (folded in the wrapper).
    gi_r = jnp.dot(x, wi_ref[0], preferred_element_type=jnp.float32) + bias[0:1]
    gi_z = jnp.dot(x, wi_ref[1], preferred_element_type=jnp.float32) + bias[1:2]
    gi_n = jnp.dot(x, wi_ref[2], preferred_element_type=jnp.float32) + bias[2:3]
    b_hn = bias[3:4]                                       # hidden bias of n gate

    w_hr = wh_ref[0]
    w_hz = wh_ref[1]
    w_hn = wh_ref[2]

    # ---- forward-direction GRU recurrence, statically unrolled (T = 8) ------
    h = jnp.zeros((B, H), jnp.float32)
    for t in range(T):
        lo = t * B                                          # static offsets
        gh_r = jnp.dot(h, w_hr, preferred_element_type=jnp.float32)
        gh_z = jnp.dot(h, w_hz, preferred_element_type=jnp.float32)
        gh_n = jnp.dot(h, w_hn, preferred_element_type=jnp.float32)
        r = jax.nn.sigmoid(gi_r[lo:lo + B] + gh_r)
        z = jax.nn.sigmoid(gi_z[lo:lo + B] + gh_z)
        n = jnp.tanh(gi_n[lo:lo + B] + r * (gh_n + b_hn))
        h = (1.0 - z) * n + z * h

    # ---- backward direction at the last position -----------------------------
    # The reverse pass starts at t = T-1 from a zero hidden state, so its output
    # there is one GRU step on x[T-1]; with h0 == 0 the hidden matmuls vanish
    # and only the hidden biases survive.
    x_last = x[(T - 1) * B:, :]                             # (B, I)
    gi_rb = jnp.dot(x_last, wi_ref[3], preferred_element_type=jnp.float32) + bias[4:5]
    gi_zb = jnp.dot(x_last, wi_ref[4], preferred_element_type=jnp.float32) + bias[5:6]
    gi_nb = jnp.dot(x_last, wi_ref[5], preferred_element_type=jnp.float32) + bias[6:7]
    r_b = jax.nn.sigmoid(gi_rb)
    z_b = jax.nn.sigmoid(gi_zb)
    n_b = jnp.tanh(gi_nb + r_b * bias[7:8])
    h_bwd = (1.0 - z_b) * n_b                               # + z_b * 0

    # ---- fc = Linear(2H -> I): concat expressed as two split matmuls ---------
    tail = tail_ref[...]
    y = (jnp.dot(h, fcw_ref[0], preferred_element_type=jnp.float32)
         + jnp.dot(h_bwd, fcw_ref[1], preferred_element_type=jnp.float32)
         + tail[0:1])                                       # (B, I)

    # ---- BatchNorm1d in training mode (batch statistics, biased variance) ----
    mean = jnp.mean(y, axis=0, keepdims=True)
    cent = y - mean
    var = jnp.mean(cent * cent, axis=0, keepdims=True)
    y = cent * lax.rsqrt(var + BN_EPS) * tail[1:2] + tail[2:3]

    # ---- ReLU + final Linear(I -> O) ------------------------------------------
    y = jnp.maximum(y, 0.0)
    out_ref[...] = (jnp.dot(y, nnw_ref[...], preferred_element_type=jnp.float32)
                    + tail[3:4, 0:O])


def e2e_forward(x, params):
    """x: (B, T, INPUT_SIZE) float32, batch_first like the PyTorch module."""
    B, T, I = x.shape
    H = HIDDEN_SIZE
    O = params['nn_w'].shape[0]

    # time-major flatten: row index = t * B + b
    x_flat = jnp.transpose(x, (1, 0, 2)).reshape(T * B, I).astype(jnp.float32)

    def per_gate_t(w):                      # (3H, D) -> (3, D, H), transposed per gate
        return jnp.stack([w[0:H].T, w[H:2 * H].T, w[2 * H:3 * H].T], axis=0)

    w_i = jnp.concatenate([per_gate_t(params['w_ih_f']),
                           per_gate_t(params['w_ih_b'])], axis=0)   # (6, I, H)
    w_h = per_gate_t(params['w_hh_f'])                              # (3, H, H)
    # NOTE: w_hh_b is intentionally never passed (h0 == 0 makes it a no-op).

    def gates(b):
        return b[0:H], b[H:2 * H], b[2 * H:3 * H]

    bif_r, bif_z, bif_n = gates(params['b_ih_f'])
    bhf_r, bhf_z, bhf_n = gates(params['b_hh_f'])
    bib_r, bib_z, bib_n = gates(params['b_ih_b'])
    bhb_r, bhb_z, bhb_n = gates(params['b_hh_b'])
    bias = jnp.stack([bif_r + bhf_r, bif_z + bhf_z, bif_n, bhf_n,
                      bib_r + bhb_r, bib_z + bhb_z, bib_n, bhb_n], axis=0)  # (8, H)

    fcw = jnp.stack([params['fc_w'][:, 0:H].T,
                     params['fc_w'][:, H:2 * H].T], axis=0)          # (2, H, I)

    nn_b_pad = jnp.zeros((I,), jnp.float32).at[0:O].set(params['nn_b'])
    tail = jnp.stack([params['fc_b'], params['bn_gamma'],
                      params['bn_beta'], nn_b_pad], axis=0)           # (4, I)

    nnw = params['nn_w'].T                                            # (I, O)

    args = [x_flat, w_i, w_h, bias, fcw, nnw, tail]
    vmem = pl.BlockSpec(memory_space=pltpu.MemorySpace.VMEM)
    return pl.pallas_call(
        e2e_kernel,
        out_shape=jax.ShapeDtypeStruct((B, O), jnp.float32),
        in_specs=[vmem] * len(args),
        out_specs=vmem,
    )(*args)


# -----------------------------------------------------------------------------
# Deterministic parameter construction (mirrors the shapes in __init__).
# -----------------------------------------------------------------------------
def init_params(key):
    ks = jax.random.split(key, 10)

    def uniform(k, shape, bound):
        return jax.random.uniform(k, shape, jnp.float32, -bound, bound)

    s = 1.0 / float(HIDDEN_SIZE) ** 0.5            # torch RNN default init range
    kaiming_fc = (6.0 / (2 * HIDDEN_SIZE)) ** 0.5  # kaiming_uniform_, fan_in=100
    kaiming_nn = (6.0 / INPUT_SIZE) ** 0.5         # kaiming_uniform_, fan_in=I
    return {
        # forward-direction GRU (gate order r, z, n)
        'w_ih_f': uniform(ks[0], (3 * HIDDEN_SIZE, INPUT_SIZE), s),
        'w_hh_f': uniform(ks[1], (3 * HIDDEN_SIZE, HIDDEN_SIZE), s),
        'b_ih_f': uniform(ks[2], (3 * HIDDEN_SIZE,), s),
        'b_hh_f': uniform(ks[3], (3 * HIDDEN_SIZE,), s),
        # backward-direction GRU
        'w_ih_b': uniform(ks[4], (3 * HIDDEN_SIZE, INPUT_SIZE), s),
        'w_hh_b': uniform(ks[5], (3 * HIDDEN_SIZE, HIDDEN_SIZE), s),
        'b_ih_b': uniform(ks[6], (3 * HIDDEN_SIZE,), s),
        'b_hh_b': uniform(ks[7], (3 * HIDDEN_SIZE,), s),
        # fc = Linear(100, input_size): kaiming_uniform weight, zero bias
        'fc_w': uniform(ks[8], (INPUT_SIZE, 2 * HIDDEN_SIZE), kaiming_fc),
        'fc_b': jnp.zeros((INPUT_SIZE,), jnp.float32),
        # BatchNorm1d(input_size): weight = 1, bias = 0
        'bn_gamma': jnp.ones((INPUT_SIZE,), jnp.float32),
        'bn_beta': jnp.zeros((INPUT_SIZE,), jnp.float32),
        # nn = Linear(input_size, output_size): kaiming_uniform weight, zero bias
        'nn_w': uniform(ks[9], (OUTPUT_SIZE, INPUT_SIZE), kaiming_nn),
        'nn_b': jnp.zeros((OUTPUT_SIZE,), jnp.float32),
    }


# -----------------------------------------------------------------------------
# Pure-JAX reference for a sanity check.
# -----------------------------------------------------------------------------
def reference_forward(x, params):
    B, T, _ = x.shape
    H = HIDDEN_SIZE

    def gru_step(x_t, h, w_ih, w_hh, b_ih, b_hh):
        gi = x_t @ w_ih.T + b_ih
        gh = h @ w_hh.T + b_hh
        i_r, i_z, i_n = jnp.split(gi, 3, axis=-1)
        h_r, h_z, h_n = jnp.split(gh, 3, axis=-1)
        r = jax.nn.sigmoid(i_r + h_r)
        z = jax.nn.sigmoid(i_z + h_z)
        n = jnp.tanh(i_n + r * h_n)
        return (1.0 - z) * n + z * h

    h = jnp.zeros((B, H), jnp.float32)
    for t in range(T):
        h = gru_step(x[:, t], h, params['w_ih_f'], params['w_hh_f'],
                     params['b_ih_f'], params['b_hh_f'])
    h_b = gru_step(x[:, T - 1], jnp.zeros((B, H), jnp.float32),
                   params['w_ih_b'], params['w_hh_b'],
                   params['b_ih_b'], params['b_hh_b'])
    out_last = jnp.concatenate([h, h_b], axis=-1)                 # (B, 2H)

    y = out_last @ params['fc_w'].T + params['fc_b']
    mean = jnp.mean(y, axis=0, keepdims=True)
    var = jnp.mean((y - mean) ** 2, axis=0, keepdims=True)
    y = (y - mean) / jnp.sqrt(var + BN_EPS) * params['bn_gamma'] + params['bn_beta']
    y = jnp.maximum(y, 0.0)
    return y @ params['nn_w'].T + params['nn_b']


if __name__ == "__main__":
    key = jax.random.PRNGKey(0)
    pkey, xkey = jax.random.split(key)
    params = init_params(pkey)
    x = jax.random.normal(xkey, (BATCH, SEQ_LEN, INPUT_SIZE), jnp.float32)

    out = e2e_forward(x, params)
    out = jax.block_until_ready(out)

    ref = reference_forward(x, params)
    assert out.shape == (BATCH, OUTPUT_SIZE), out.shape
    assert bool(jnp.allclose(out, ref, rtol=1e-2, atol=1e-2)), (
        "kernel/reference mismatch:\n%r\n%r" % (out, ref))

    print("KERNEL_OK")
</pallas_src>

<mosaic_0001>
module attributes {stable_mosaic.version = 11 : i64} {
  func.func @e2e_kernel(%arg0: memref<16x16xf32, #tpu.memory_space<vmem>>, %arg1: memref<6x16x50xf32, #tpu.memory_space<vmem>>, %arg2: memref<3x50x50xf32, #tpu.memory_space<vmem>>, %arg3: memref<8x50xf32, #tpu.memory_space<vmem>>, %arg4: memref<2x50x16xf32, #tpu.memory_space<vmem>>, %arg5: memref<16x4xf32, #tpu.memory_space<vmem>>, %arg6: memref<4x16xf32, #tpu.memory_space<vmem>>, %arg7: memref<2x4xf32, #tpu.memory_space<vmem>>) attributes {dimension_semantics = [], scalar_prefetch = 0 : i64, scratch_operands = 0 : i64, tpu.core_type = #tpu.core_type<tc>} {
    %c0 = arith.constant 0 : index
    %c0_0 = arith.constant 0 : index
    %0 = vector.load %arg0[%c0, %c0_0] : memref<16x16xf32, #tpu.memory_space<vmem>>, vector<16x16xf32>
    %c0_1 = arith.constant 0 : index
    %c0_2 = arith.constant 0 : index
    %1 = vector.load %arg3[%c0_1, %c0_2] : memref<8x50xf32, #tpu.memory_space<vmem>>, vector<8x50xf32>
    %c0_3 = arith.constant 0 : index
    %c0_4 = arith.constant 0 : index
    %c0_5 = arith.constant 0 : index
    %2 = vector.load %arg1[%c0_3, %c0_4, %c0_5] : memref<6x16x50xf32, #tpu.memory_space<vmem>>, vector<1x16x50xf32>
    %3 = vector.shape_cast %2 : vector<1x16x50xf32> to vector<16x50xf32>
    %cst = arith.constant dense<0.000000e+00> : vector<16x50xf32>
    %4 = tpu.matmul %0, %3, %cst {dimension_numbers = #tpu.dot_dimension_numbers<[1], [0], [0], [1], [0, 0, 1, 1], [], []>} : vector<16x16xf32>, vector<16x50xf32>, vector<16x50xf32> -> vector<16x50xf32>
    %5 = vector.extract_strided_slice %1 {offsets = [0, 0], sizes = [1, 50], strides = [1, 1]} : vector<8x50xf32> to vector<1x50xf32>
    %6 = vector.broadcast %5 : vector<1x50xf32> to vector<16x50xf32>
    %7 = arith.addf %4, %6 : vector<16x50xf32>
    %c1 = arith.constant 1 : index
    %c0_6 = arith.constant 0 : index
    %c0_7 = arith.constant 0 : index
    %8 = vector.load %arg1[%c1, %c0_6, %c0_7] : memref<6x16x50xf32, #tpu.memory_space<vmem>>, vector<1x16x50xf32>
    %9 = vector.shape_cast %8 : vector<1x16x50xf32> to vector<16x50xf32>
    %cst_8 = arith.constant dense<0.000000e+00> : vector<16x50xf32>
    %10 = tpu.matmul %0, %9, %cst_8 {dimension_numbers = #tpu.dot_dimension_numbers<[1], [0], [0], [1], [0, 0, 1, 1], [], []>} : vector<16x16xf32>, vector<16x50xf32>, vector<16x50xf32> -> vector<16x50xf32>
    %11 = vector.extract_strided_slice %1 {offsets = [1, 0], sizes = [1, 50], strides = [1, 1]} : vector<8x50xf32> to vector<1x50xf32>
    %12 = vector.broadcast %11 : vector<1x50xf32> to vector<16x50xf32>
    %13 = arith.addf %10, %12 : vector<16x50xf32>
    %c2 = arith.constant 2 : index
    %c0_9 = arith.constant 0 : index
    %c0_10 = arith.constant 0 : index
    %14 = vector.load %arg1[%c2, %c0_9, %c0_10] : memref<6x16x50xf32, #tpu.memory_space<vmem>>, vector<1x16x50xf32>
    %15 = vector.shape_cast %14 : vector<1x16x50xf32> to vector<16x50xf32>
    %cst_11 = arith.constant dense<0.000000e+00> : vector<16x50xf32>
    %16 = tpu.matmul %0, %15, %cst_11 {dimension_numbers = #tpu.dot_dimension_numbers<[1], [0], [0], [1], [0, 0, 1, 1], [], []>} : vector<16x16xf32>, vector<16x50xf32>, vector<16x50xf32> -> vector<16x50xf32>
    %17 = vector.extract_strided_slice %1 {offsets = [2, 0], sizes = [1, 50], strides = [1, 1]} : vector<8x50xf32> to vector<1x50xf32>
    %18 = vector.broadcast %17 : vector<1x50xf32> to vector<16x50xf32>
    %19 = arith.addf %16, %18 : vector<16x50xf32>
    %20 = vector.extract_strided_slice %1 {offsets = [3, 0], sizes = [1, 50], strides = [1, 1]} : vector<8x50xf32> to vector<1x50xf32>
    %c0_12 = arith.constant 0 : index
    %c0_13 = arith.constant 0 : index
    %c0_14 = arith.constant 0 : index
    %21 = vector.load %arg2[%c0_12, %c0_13, %c0_14] : memref<3x50x50xf32, #tpu.memory_space<vmem>>, vector<1x50x50xf32>
    %22 = vector.shape_cast %21 : vector<1x50x50xf32> to vector<50x50xf32>
    %c1_15 = arith.constant 1 : index
    %c0_16 = arith.constant 0 : index
    %c0_17 = arith.constant 0 : index
    %23 = vector.load %arg2[%c1_15, %c0_16, %c0_17] : memref<3x50x50xf32, #tpu.memory_space<vmem>>, vector<1x50x50xf32>
    %24 = vector.shape_cast %23 : vector<1x50x50xf32> to vector<50x50xf32>
    %c2_18 = arith.constant 2 : index
    %c0_19 = arith.constant 0 : index
    %c0_20 = arith.constant 0 : index
    %25 = vector.load %arg2[%c2_18, %c0_19, %c0_20] : memref<3x50x50xf32, #tpu.memory_space<vmem>>, vector<1x50x50xf32>
    %26 = vector.shape_cast %25 : vector<1x50x50xf32> to vector<50x50xf32>
    %cst_21 = arith.constant 0.000000e+00 : f32
    %27 = vector.broadcast %cst_21 : f32 to vector<2x50xf32>
    %cst_22 = arith.constant dense<0.000000e+00> : vector<2x50xf32>
    %28 = tpu.matmul %27, %22, %cst_22 {dimension_numbers = #tpu.dot_dimension_numbers<[1], [0], [0], [1], [0, 0, 1, 1], [], []>} : vector<2x50xf32>, vector<50x50xf32>, vector<2x50xf32> -> vector<2x50xf32>
    %cst_23 = arith.constant dense<0.000000e+00> : vector<2x50xf32>
    %29 = tpu.matmul %27, %24, %cst_23 {dimension_numbers = #tpu.dot_dimension_numbers<[1], [0], [0], [1], [0, 0, 1, 1], [], []>} : vector<2x50xf32>, vector<50x50xf32>, vector<2x50xf32> -> vector<2x50xf32>
    %cst_24 = arith.constant dense<0.000000e+00> : vector<2x50xf32>
    %30 = tpu.matmul %27, %26, %cst_24 {dimension_numbers = #tpu.dot_dimension_numbers<[1], [0], [0], [1], [0, 0, 1, 1], [], []>} : vector<2x50xf32>, vector<50x50xf32>, vector<2x50xf32> -> vector<2x50xf32>
    %31 = vector.extract_strided_slice %7 {offsets = [0, 0], sizes = [2, 50], strides = [1, 1]} : vector<16x50xf32> to vector<2x50xf32>
    %32 = arith.addf %31, %28 : vector<2x50xf32>
    %33 = arith.negf %32 : vector<2x50xf32>
    %34 = math.exp %33 : vector<2x50xf32>
    %cst_25 = arith.constant 1.000000e+00 : f32
    %35 = vector.broadcast %cst_25 : f32 to vector<2x50xf32>
    %36 = arith.addf %35, %34 : vector<2x50xf32>
    %37 = arith.divf %35, %36 : vector<2x50xf32>
    %38 = vector.extract_strided_slice %13 {offsets = [0, 0], sizes = [2, 50], strides = [1, 1]} : vector<16x50xf32> to vector<2x50xf32>
    %39 = arith.addf %38, %29 : vector<2x50xf32>
    %40 = arith.negf %39 : vector<2x50xf32>
    %41 = math.exp %40 : vector<2x50xf32>
    %cst_26 = arith.constant 1.000000e+00 : f32
    %42 = vector.broadcast %cst_26 : f32 to vector<2x50xf32>
    %43 = arith.addf %42, %41 : vector<2x50xf32>
    %44 = arith.divf %42, %43 : vector<2x50xf32>
    %45 = vector.extract_strided_slice %19 {offsets = [0, 0], sizes = [2, 50], strides = [1, 1]} : vector<16x50xf32> to vector<2x50xf32>
    %46 = vector.broadcast %20 : vector<1x50xf32> to vector<2x50xf32>
    %47 = arith.addf %30, %46 : vector<2x50xf32>
    %48 = arith.mulf %37, %47 : vector<2x50xf32>
    %49 = arith.addf %45, %48 : vector<2x50xf32>
    %50 = math.tanh %49 : vector<2x50xf32>
    %cst_27 = arith.constant 1.000000e+00 : f32
    %51 = vector.broadcast %cst_27 : f32 to vector<2x50xf32>
    %52 = arith.subf %51, %44 : vector<2x50xf32>
    %53 = arith.mulf %52, %50 : vector<2x50xf32>
    %54 = arith.mulf %44, %27 : vector<2x50xf32>
    %55 = arith.addf %53, %54 : vector<2x50xf32>
    %cst_28 = arith.constant dense<0.000000e+00> : vector<2x50xf32>
    %56 = tpu.matmul %55, %22, %cst_28 {dimension_numbers = #tpu.dot_dimension_numbers<[1], [0], [0], [1], [0, 0, 1, 1], [], []>} : vector<2x50xf32>, vector<50x50xf32>, vector<2x50xf32> -> vector<2x50xf32>
    %cst_29 = arith.constant dense<0.000000e+00> : vector<2x50xf32>
    %57 = tpu.matmul %55, %24, %cst_29 {dimension_numbers = #tpu.dot_dimension_numbers<[1], [0], [0], [1], [0, 0, 1, 1], [], []>} : vector<2x50xf32>, vector<50x50xf32>, vector<2x50xf32> -> vector<2x50xf32>
    %cst_30 = arith.constant dense<0.000000e+00> : vector<2x50xf32>
    %58 = tpu.matmul %55, %26, %cst_30 {dimension_numbers = #tpu.dot_dimension_numbers<[1], [0], [0], [1], [0, 0, 1, 1], [], []>} : vector<2x50xf32>, vector<50x50xf32>, vector<2x50xf32> -> vector<2x50xf32>
    %59 = vector.extract_strided_slice %7 {offsets = [2, 0], sizes = [2, 50], strides = [1, 1]} : vector<16x50xf32> to vector<2x50xf32>
    %60 = arith.addf %59, %56 : vector<2x50xf32>
    %61 = arith.negf %60 : vector<2x50xf32>
    %62 = math.exp %61 : vector<2x50xf32>
    %cst_31 = arith.constant 1.000000e+00 : f32
    %63 = vector.broadcast %cst_31 : f32 to vector<2x50xf32>
    %64 = arith.addf %63, %62 : vector<2x50xf32>
    %65 = arith.divf %63, %64 : vector<2x50xf32>
    %66 = vector.extract_strided_slice %13 {offsets = [2, 0], sizes = [2, 50], strides = [1, 1]} : vector<16x50xf32> to vector<2x50xf32>
    %67 = arith.addf %66, %57 : vector<2x50xf32>
    %68 = arith.negf %67 : vector<2x50xf32>
    %69 = math.exp %68 : vector<2x50xf32>
    %cst_32 = arith.constant 1.000000e+00 : f32
    %70 = vector.broadcast %cst_32 : f32 to vector<2x50xf32>
    %71 = arith.addf %70, %69 : vector<2x50xf32>
    %72 = arith.divf %70, %71 : vector<2x50xf32>
    %73 = vector.extract_strided_slice %19 {offsets = [2, 0], sizes = [2, 50], strides = [1, 1]} : vector<16x50xf32> to vector<2x50xf32>
    %74 = vector.broadcast %20 : vector<1x50xf32> to vector<2x50xf32>
    %75 = arith.addf %58, %74 : vector<2x50xf32>
    %76 = arith.mulf %65, %75 : vector<2x50xf32>
    %77 = arith.addf %73, %76 : vector<2x50xf32>
    %78 = math.tanh %77 : vector<2x50xf32>
    %cst_33 = arith.constant 1.000000e+00 : f32
    %79 = vector.broadcast %cst_33 : f32 to vector<2x50xf32>
    %80 = arith.subf %79, %72 : vector<2x50xf32>
    %81 = arith.mulf %80, %78 : vector<2x50xf32>
    %82 = arith.mulf %72, %55 : vector<2x50xf32>
    %83 = arith.addf %81, %82 : vector<2x50xf32>
    %cst_34 = arith.constant dense<0.000000e+00> : vector<2x50xf32>
    %84 = tpu.matmul %83, %22, %cst_34 {dimension_numbers = #tpu.dot_dimension_numbers<[1], [0], [0], [1], [0, 0, 1, 1], [], []>} : vector<2x50xf32>, vector<50x50xf32>, vector<2x50xf32> -> vector<2x50xf32>
    %cst_35 = arith.constant dense<0.000000e+00> : vector<2x50xf32>
    %85 = tpu.matmul %83, %24, %cst_35 {dimension_numbers = #tpu.dot_dimension_numbers<[1], [0], [0], [1], [0, 0, 1, 1], [], []>} : vector<2x50xf32>, vector<50x50xf32>, vector<2x50xf32> -> vector<2x50xf32>
    %cst_36 = arith.constant dense<0.000000e+00> : vector<2x50xf32>
    %86 = tpu.matmul %83, %26, %cst_36 {dimension_numbers = #tpu.dot_dimension_numbers<[1], [0], [0], [1], [0, 0, 1, 1], [], []>} : vector<2x50xf32>, vector<50x50xf32>, vector<2x50xf32> -> vector<2x50xf32>
    %87 = vector.extract_strided_slice %7 {offsets = [4, 0], sizes = [2, 50], strides = [1, 1]} : vector<16x50xf32> to vector<2x50xf32>
    %88 = arith.addf %87, %84 : vector<2x50xf32>
    %89 = arith.negf %88 : vector<2x50xf32>
    %90 = math.exp %89 : vector<2x50xf32>
    %cst_37 = arith.constant 1.000000e+00 : f32
    %91 = vector.broadcast %cst_37 : f32 to vector<2x50xf32>
    %92 = arith.addf %91, %90 : vector<2x50xf32>
    %93 = arith.divf %91, %92 : vector<2x50xf32>
    %94 = vector.extract_strided_slice %13 {offsets = [4, 0], sizes = [2, 50], strides = [1, 1]} : vector<16x50xf32> to vector<2x50xf32>
    %95 = arith.addf %94, %85 : vector<2x50xf32>
    %96 = arith.negf %95 : vector<2x50xf32>
    %97 = math.exp %96 : vector<2x50xf32>
    %cst_38 = arith.constant 1.000000e+00 : f32
    %98 = vector.broadcast %cst_38 : f32 to vector<2x50xf32>
    %99 = arith.addf %98, %97 : vector<2x50xf32>
    %100 = arith.divf %98, %99 : vector<2x50xf32>
    %101 = vector.extract_strided_slice %19 {offsets = [4, 0], sizes = [2, 50], strides = [1, 1]} : vector<16x50xf32> to vector<2x50xf32>
    %102 = vector.broadcast %20 : vector<1x50xf32> to vector<2x50xf32>
    %103 = arith.addf %86, %102 : vector<2x50xf32>
    %104 = arith.mulf %93, %103 : vector<2x50xf32>
    %105 = arith.addf %101, %104 : vector<2x50xf32>
    %106 = math.tanh %105 : vector<2x50xf32>
    %cst_39 = arith.constant 1.000000e+00 : f32
    %107 = vector.broadcast %cst_39 : f32 to vector<2x50xf32>
    %108 = arith.subf %107, %100 : vector<2x50xf32>
    %109 = arith.mulf %108, %106 : vector<2x50xf32>
    %110 = arith.mulf %100, %83 : vector<2x50xf32>
    %111 = arith.addf %109, %110 : vector<2x50xf32>
    %cst_40 = arith.constant dense<0.000000e+00> : vector<2x50xf32>
    %112 = tpu.matmul %111, %22, %cst_40 {dimension_numbers = #tpu.dot_dimension_numbers<[1], [0], [0], [1], [0, 0, 1, 1], [], []>} : vector<2x50xf32>, vector<50x50xf32>, vector<2x50xf32> -> vector<2x50xf32>
    %cst_41 = arith.constant dense<0.000000e+00> : vector<2x50xf32>
    %113 = tpu.matmul %111, %24, %cst_41 {dimension_numbers = #tpu.dot_dimension_numbers<[1], [0], [0], [1], [0, 0, 1, 1], [], []>} : vector<2x50xf32>, vector<50x50xf32>, vector<2x50xf32> -> vector<2x50xf32>
    %cst_42 = arith.constant dense<0.000000e+00> : vector<2x50xf32>
    %114 = tpu.matmul %111, %26, %cst_42 {dimension_numbers = #tpu.dot_dimension_numbers<[1], [0], [0], [1], [0, 0, 1, 1], [], []>} : vector<2x50xf32>, vector<50x50xf32>, vector<2x50xf32> -> vector<2x50xf32>
    %115 = vector.extract_strided_slice %7 {offsets = [6, 0], sizes = [2, 50], strides = [1, 1]} : vector<16x50xf32> to vector<2x50xf32>
    %116 = arith.addf %115, %112 : vector<2x50xf32>
    %117 = arith.negf %116 : vector<2x50xf32>
    %118 = math.exp %117 : vector<2x50xf32>
    %cst_43 = arith.constant 1.000000e+00 : f32
    %119 = vector.broadcast %cst_43 : f32 to vector<2x50xf32>
    %120 = arith.addf %119, %118 : vector<2x50xf32>
    %121 = arith.divf %119, %120 : vector<2x50xf32>
    %122 = vector.extract_strided_slice %13 {offsets = [6, 0], sizes = [2, 50], strides = [1, 1]} : vector<16x50xf32> to vector<2x50xf32>
    %123 = arith.addf %122, %113 : vector<2x50xf32>
    %124 = arith.negf %123 : vector<2x50xf32>
    %125 = math.exp %124 : vector<2x50xf32>
    %cst_44 = arith.constant 1.000000e+00 : f32
    %126 = vector.broadcast %cst_44 : f32 to vector<2x50xf32>
    %127 = arith.addf %126, %125 : vector<2x50xf32>
    %128 = arith.divf %126, %127 : vector<2x50xf32>
    %129 = vector.extract_strided_slice %19 {offsets = [6, 0], sizes = [2, 50], strides = [1, 1]} : vector<16x50xf32> to vector<2x50xf32>
    %130 = vector.broadcast %20 : vector<1x50xf32> to vector<2x50xf32>
    %131 = arith.addf %114, %130 : vector<2x50xf32>
    %132 = arith.mulf %121, %131 : vector<2x50xf32>
    %133 = arith.addf %129, %132 : vector<2x50xf32>
    %134 = math.tanh %133 : vector<2x50xf32>
    %cst_45 = arith.constant 1.000000e+00 : f32
    %135 = vector.broadcast %cst_45 : f32 to vector<2x50xf32>
    %136 = arith.subf %135, %128 : vector<2x50xf32>
    %137 = arith.mulf %136, %134 : vector<2x50xf32>
    %138 = arith.mulf %128, %111 : vector<2x50xf32>
    %139 = arith.addf %137, %138 : vector<2x50xf32>
    %cst_46 = arith.constant dense<0.000000e+00> : vector<2x50xf32>
    %140 = tpu.matmul %139, %22, %cst_46 {dimension_numbers = #tpu.dot_dimension_numbers<[1], [0], [0], [1], [0, 0, 1, 1], [], []>} : vector<2x50xf32>, vector<50x50xf32>, vector<2x50xf32> -> vector<2x50xf32>
    %cst_47 = arith.constant dense<0.000000e+00> : vector<2x50xf32>
    %141 = tpu.matmul %139, %24, %cst_47 {dimension_numbers = #tpu.dot_dimension_numbers<[1], [0], [0], [1], [0, 0, 1, 1], [], []>} : vector<2x50xf32>, vector<50x50xf32>, vector<2x50xf32> -> vector<2x50xf32>
    %cst_48 = arith.constant dense<0.000000e+00> : vector<2x50xf32>
    %142 = tpu.matmul %139, %26, %cst_48 {dimension_numbers = #tpu.dot_dimension_numbers<[1], [0], [0], [1], [0, 0, 1, 1], [], []>} : vector<2x50xf32>, vector<50x50xf32>, vector<2x50xf32> -> vector<2x50xf32>
    %143 = vector.extract_strided_slice %7 {offsets = [8, 0], sizes = [2, 50], strides = [1, 1]} : vector<16x50xf32> to vector<2x50xf32>
    %144 = arith.addf %143, %140 : vector<2x50xf32>
    %145 = arith.negf %144 : vector<2x50xf32>
    %146 = math.exp %145 : vector<2x50xf32>
    %cst_49 = arith.constant 1.000000e+00 : f32
    %147 = vector.broadcast %cst_49 : f32 to vector<2x50xf32>
    %148 = arith.addf %147, %146 : vector<2x50xf32>
    %149 = arith.divf %147, %148 : vector<2x50xf32>
    %150 = vector.extract_strided_slice %13 {offsets = [8, 0], sizes = [2, 50], strides = [1, 1]} : vector<16x50xf32> to vector<2x50xf32>
    %151 = arith.addf %150, %141 : vector<2x50xf32>
    %152 = arith.negf %151 : vector<2x50xf32>
    %153 = math.exp %152 : vector<2x50xf32>
    %cst_50 = arith.constant 1.000000e+00 : f32
    %154 = vector.broadcast %cst_50 : f32 to vector<2x50xf32>
    %155 = arith.addf %154, %153 : vector<2x50xf32>
    %156 = arith.divf %154, %155 : vector<2x50xf32>
    %157 = vector.extract_strided_slice %19 {offsets = [8, 0], sizes = [2, 50], strides = [1, 1]} : vector<16x50xf32> to vector<2x50xf32>
    %158 = vector.broadcast %20 : vector<1x50xf32> to vector<2x50xf32>
    %159 = arith.addf %142, %158 : vector<2x50xf32>
    %160 = arith.mulf %149, %159 : vector<2x50xf32>
    %161 = arith.addf %157, %160 : vector<2x50xf32>
    %162 = math.tanh %161 : vector<2x50xf32>
    %cst_51 = arith.constant 1.000000e+00 : f32
    %163 = vector.broadcast %cst_51 : f32 to vector<2x50xf32>
    %164 = arith.subf %163, %156 : vector<2x50xf32>
    %165 = arith.mulf %164, %162 : vector<2x50xf32>
    %166 = arith.mulf %156, %139 : vector<2x50xf32>
    %167 = arith.addf %165, %166 : vector<2x50xf32>
    %cst_52 = arith.constant dense<0.000000e+00> : vector<2x50xf32>
    %168 = tpu.matmul %167, %22, %cst_52 {dimension_numbers = #tpu.dot_dimension_numbers<[1], [0], [0], [1], [0, 0, 1, 1], [], []>} : vector<2x50xf32>, vector<50x50xf32>, vector<2x50xf32> -> vector<2x50xf32>
    %cst_53 = arith.constant dense<0.000000e+00> : vector<2x50xf32>
    %169 = tpu.matmul %167, %24, %cst_53 {dimension_numbers = #tpu.dot_dimension_numbers<[1], [0], [0], [1], [0, 0, 1, 1], [], []>} : vector<2x50xf32>, vector<50x50xf32>, vector<2x50xf32> -> vector<2x50xf32>
    %cst_54 = arith.constant dense<0.000000e+00> : vector<2x50xf32>
    %170 = tpu.matmul %167, %26, %cst_54 {dimension_numbers = #tpu.dot_dimension_numbers<[1], [0], [0], [1], [0, 0, 1, 1], [], []>} : vector<2x50xf32>, vector<50x50xf32>, vector<2x50xf32> -> vector<2x50xf32>
    %171 = vector.extract_strided_slice %7 {offsets = [10, 0], sizes = [2, 50], strides = [1, 1]} : vector<16x50xf32> to vector<2x50xf32>
    %172 = arith.addf %171, %168 : vector<2x50xf32>
    %173 = arith.negf %172 : vector<2x50xf32>
    %174 = math.exp %173 : vector<2x50xf32>
    %cst_55 = arith.constant 1.000000e+00 : f32
    %175 = vector.broadcast %cst_55 : f32 to vector<2x50xf32>
    %176 = arith.addf %175, %174 : vector<2x50xf32>
    %177 = arith.divf %175, %176 : vector<2x50xf32>
    %178 = vector.extract_strided_slice %13 {offsets = [10, 0], sizes = [2, 50], strides = [1, 1]} : vector<16x50xf32> to vector<2x50xf32>
    %179 = arith.addf %178, %169 : vector<2x50xf32>
    %180 = arith.negf %179 : vector<2x50xf32>
    %181 = math.exp %180 : vector<2x50xf32>
    %cst_56 = arith.constant 1.000000e+00 : f32
    %182 = vector.broadcast %cst_56 : f32 to vector<2x50xf32>
    %183 = arith.addf %182, %181 : vector<2x50xf32>
    %184 = arith.divf %182, %183 : vector<2x50xf32>
    %185 = vector.extract_strided_slice %19 {offsets = [10, 0], sizes = [2, 50], strides = [1, 1]} : vector<16x50xf32> to vector<2x50xf32>
    %186 = vector.broadcast %20 : vector<1x50xf32> to vector<2x50xf32>
    %187 = arith.addf %170, %186 : vector<2x50xf32>
    %188 = arith.mulf %177, %187 : vector<2x50xf32>
    %189 = arith.addf %185, %188 : vector<2x50xf32>
    %190 = math.tanh %189 : vector<2x50xf32>
    %cst_57 = arith.constant 1.000000e+00 : f32
    %191 = vector.broadcast %cst_57 : f32 to vector<2x50xf32>
    %192 = arith.subf %191, %184 : vector<2x50xf32>
    %193 = arith.mulf %192, %190 : vector<2x50xf32>
    %194 = arith.mulf %184, %167 : vector<2x50xf32>
    %195 = arith.addf %193, %194 : vector<2x50xf32>
    %cst_58 = arith.constant dense<0.000000e+00> : vector<2x50xf32>
    %196 = tpu.matmul %195, %22, %cst_58 {dimension_numbers = #tpu.dot_dimension_numbers<[1], [0], [0], [1], [0, 0, 1, 1], [], []>} : vector<2x50xf32>, vector<50x50xf32>, vector<2x50xf32> -> vector<2x50xf32>
    %cst_59 = arith.constant dense<0.000000e+00> : vector<2x50xf32>
    %197 = tpu.matmul %195, %24, %cst_59 {dimension_numbers = #tpu.dot_dimension_numbers<[1], [0], [0], [1], [0, 0, 1, 1], [], []>} : vector<2x50xf32>, vector<50x50xf32>, vector<2x50xf32> -> vector<2x50xf32>
    %cst_60 = arith.constant dense<0.000000e+00> : vector<2x50xf32>
    %198 = tpu.matmul %195, %26, %cst_60 {dimension_numbers = #tpu.dot_dimension_numbers<[1], [0], [0], [1], [0, 0, 1, 1], [], []>} : vector<2x50xf32>, vector<50x50xf32>, vector<2x50xf32> -> vector<2x50xf32>
    %199 = vector.extract_strided_slice %7 {offsets = [12, 0], sizes = [2, 50], strides = [1, 1]} : vector<16x50xf32> to vector<2x50xf32>
    %200 = arith.addf %199, %196 : vector<2x50xf32>
    %201 = arith.negf %200 : vector<2x50xf32>
    %202 = math.exp %201 : vector<2x50xf32>
    %cst_61 = arith.constant 1.000000e+00 : f32
    %203 = vector.broadcast %cst_61 : f32 to vector<2x50xf32>
    %204 = arith.addf %203, %202 : vector<2x50xf32>
    %205 = arith.divf %203, %204 : vector<2x50xf32>
    %206 = vector.extract_strided_slice %13 {offsets = [12, 0], sizes = [2, 50], strides = [1, 1]} : vector<16x50xf32> to vector<2x50xf32>
    %207 = arith.addf %206, %197 : vector<2x50xf32>
    %208 = arith.negf %207 : vector<2x50xf32>
    %209 = math.exp %208 : vector<2x50xf32>
    %cst_62 = arith.constant 1.000000e+00 : f32
    %210 = vector.broadcast %cst_62 : f32 to vector<2x50xf32>
    %211 = arith.addf %210, %209 : vector<2x50xf32>
    %212 = arith.divf %210, %211 : vector<2x50xf32>
    %213 = vector.extract_strided_slice %19 {offsets = [12, 0], sizes = [2, 50], strides = [1, 1]} : vector<16x50xf32> to vector<2x50xf32>
    %214 = vector.broadcast %20 : vector<1x50xf32> to vector<2x50xf32>
    %215 = arith.addf %198, %214 : vector<2x50xf32>
    %216 = arith.mulf %205, %215 : vector<2x50xf32>
    %217 = arith.addf %213, %216 : vector<2x50xf32>
    %218 = math.tanh %217 : vector<2x50xf32>
    %cst_63 = arith.constant 1.000000e+00 : f32
    %219 = vector.broadcast %cst_63 : f32 to vector<2x50xf32>
    %220 = arith.subf %219, %212 : vector<2x50xf32>
    %221 = arith.mulf %220, %218 : vector<2x50xf32>
    %222 = arith.mulf %212, %195 : vector<2x50xf32>
    %223 = arith.addf %221, %222 : vector<2x50xf32>
    %cst_64 = arith.constant dense<0.000000e+00> : vector<2x50xf32>
    %224 = tpu.matmul %223, %22, %cst_64 {dimension_numbers = #tpu.dot_dimension_numbers<[1], [0], [0], [1], [0, 0, 1, 1], [], []>} : vector<2x50xf32>, vector<50x50xf32>, vector<2x50xf32> -> vector<2x50xf32>
    %cst_65 = arith.constant dense<0.000000e+00> : vector<2x50xf32>
    %225 = tpu.matmul %223, %24, %cst_65 {dimension_numbers = #tpu.dot_dimension_numbers<[1], [0], [0], [1], [0, 0, 1, 1], [], []>} : vector<2x50xf32>, vector<50x50xf32>, vector<2x50xf32> -> vector<2x50xf32>
    %cst_66 = arith.constant dense<0.000000e+00> : vector<2x50xf32>
    %226 = tpu.matmul %223, %26, %cst_66 {dimension_numbers = #tpu.dot_dimension_numbers<[1], [0], [0], [1], [0, 0, 1, 1], [], []>} : vector<2x50xf32>, vector<50x50xf32>, vector<2x50xf32> -> vector<2x50xf32>
    %227 = vector.extract_strided_slice %7 {offsets = [14, 0], sizes = [2, 50], strides = [1, 1]} : vector<16x50xf32> to vector<2x50xf32>
    %228 = arith.addf %227, %224 : vector<2x50xf32>
    %229 = arith.negf %228 : vector<2x50xf32>
    %230 = math.exp %229 : vector<2x50xf32>
    %cst_67 = arith.constant 1.000000e+00 : f32
    %231 = vector.broadcast %cst_67 : f32 to vector<2x50xf32>
    %232 = arith.addf %231, %230 : vector<2x50xf32>
    %233 = arith.divf %231, %232 : vector<2x50xf32>
    %234 = vector.extract_strided_slice %13 {offsets = [14, 0], sizes = [2, 50], strides = [1, 1]} : vector<16x50xf32> to vector<2x50xf32>
    %235 = arith.addf %234, %225 : vector<2x50xf32>
    %236 = arith.negf %235 : vector<2x50xf32>
    %237 = math.exp %236 : vector<2x50xf32>
    %cst_68 = arith.constant 1.000000e+00 : f32
    %238 = vector.broadcast %cst_68 : f32 to vector<2x50xf32>
    %239 = arith.addf %238, %237 : vector<2x50xf32>
    %240 = arith.divf %238, %239 : vector<2x50xf32>
    %241 = vector.extract_strided_slice %19 {offsets = [14, 0], sizes = [2, 50], strides = [1, 1]} : vector<16x50xf32> to vector<2x50xf32>
    %242 = vector.broadcast %20 : vector<1x50xf32> to vector<2x50xf32>
    %243 = arith.addf %226, %242 : vector<2x50xf32>
    %244 = arith.mulf %233, %243 : vector<2x50xf32>
    %245 = arith.addf %241, %244 : vector<2x50xf32>
    %246 = math.tanh %245 : vector<2x50xf32>
    %cst_69 = arith.constant 1.000000e+00 : f32
    %247 = vector.broadcast %cst_69 : f32 to vector<2x50xf32>
    %248 = arith.subf %247, %240 : vector<2x50xf32>
    %249 = arith.mulf %248, %246 : vector<2x50xf32>
    %250 = arith.mulf %240, %223 : vector<2x50xf32>
    %251 = arith.addf %249, %250 : vector<2x50xf32>
    %252 = vector.extract_strided_slice %0 {offsets = [14, 0], sizes = [2, 16], strides = [1, 1]} : vector<16x16xf32> to vector<2x16xf32>
    %c3 = arith.constant 3 : index
    %c0_70 = arith.constant 0 : index
    %c0_71 = arith.constant 0 : index
    %253 = vector.load %arg1[%c3, %c0_70, %c0_71] : memref<6x16x50xf32, #tpu.memory_space<vmem>>, vector<1x16x50xf32>
    %254 = vector.shape_cast %253 : vector<1x16x50xf32> to vector<16x50xf32>
    %cst_72 = arith.constant dense<0.000000e+00> : vector<2x50xf32>
    %255 = tpu.matmul %252, %254, %cst_72 {dimension_numbers = #tpu.dot_dimension_numbers<[1], [0], [0], [1], [0, 0, 1, 1], [], []>} : vector<2x16xf32>, vector<16x50xf32>, vector<2x50xf32> -> vector<2x50xf32>
    %256 = vector.extract_strided_slice %1 {offsets = [4, 0], sizes = [1, 50], strides = [1, 1]} : vector<8x50xf32> to vector<1x50xf32>
    %257 = vector.broadcast %256 : vector<1x50xf32> to vector<2x50xf32>
    %258 = arith.addf %255, %257 : vector<2x50xf32>
    %c4 = arith.constant 4 : index
    %c0_73 = arith.constant 0 : index
    %c0_74 = arith.constant 0 : index
    %259 = vector.load %arg1[%c4, %c0_73, %c0_74] : memref<6x16x50xf32, #tpu.memory_space<vmem>>, vector<1x16x50xf32>
    %260 = vector.shape_cast %259 : vector<1x16x50xf32> to vector<16x50xf32>
    %cst_75 = arith.constant dense<0.000000e+00> : vector<2x50xf32>
    %261 = tpu.matmul %252, %260, %cst_75 {dimension_numbers = #tpu.dot_dimension_numbers<[1], [0], [0], [1], [0, 0, 1, 1], [], []>} : vector<2x16xf32>, vector<16x50xf32>, vector<2x50xf32> -> vector<2x50xf32>
    %262 = vector.extract_strided_slice %1 {offsets = [5, 0], sizes = [1, 50], strides = [1, 1]} : vector<8x50xf32> to vector<1x50xf32>
    %263 = vector.broadcast %262 : vector<1x50xf32> to vector<2x50xf32>
    %264 = arith.addf %261, %263 : vector<2x50xf32>
    %c5 = arith.constant 5 : index
    %c0_76 = arith.constant 0 : index
    %c0_77 = arith.constant 0 : index
    %265 = vector.load %arg1[%c5, %c0_76, %c0_77] : memref<6x16x50xf32, #tpu.memory_space<vmem>>, vector<1x16x50xf32>
    %266 = vector.shape_cast %265 : vector<1x16x50xf32> to vector<16x50xf32>
    %cst_78 = arith.constant dense<0.000000e+00> : vector<2x50xf32>
    %267 = tpu.matmul %252, %266, %cst_78 {dimension_numbers = #tpu.dot_dimension_numbers<[1], [0], [0], [1], [0, 0, 1, 1], [], []>} : vector<2x16xf32>, vector<16x50xf32>, vector<2x50xf32> -> vector<2x50xf32>
    %268 = vector.extract_strided_slice %1 {offsets = [6, 0], sizes = [1, 50], strides = [1, 1]} : vector<8x50xf32> to vector<1x50xf32>
    %269 = vector.broadcast %268 : vector<1x50xf32> to vector<2x50xf32>
    %270 = arith.addf %267, %269 : vector<2x50xf32>
    %271 = arith.negf %258 : vector<2x50xf32>
    %272 = math.exp %271 : vector<2x50xf32>
    %cst_79 = arith.constant 1.000000e+00 : f32
    %273 = vector.broadcast %cst_79 : f32 to vector<2x50xf32>
    %274 = arith.addf %273, %272 : vector<2x50xf32>
    %275 = arith.divf %273, %274 : vector<2x50xf32>
    %276 = arith.negf %264 : vector<2x50xf32>
    %277 = math.exp %276 : vector<2x50xf32>
    %cst_80 = arith.constant 1.000000e+00 : f32
    %278 = vector.broadcast %cst_80 : f32 to vector<2x50xf32>
    %279 = arith.addf %278, %277 : vector<2x50xf32>
    %280 = arith.divf %278, %279 : vector<2x50xf32>
    %281 = vector.extract_strided_slice %1 {offsets = [7, 0], sizes = [1, 50], strides = [1, 1]} : vector<8x50xf32> to vector<1x50xf32>
    %282 = vector.broadcast %281 : vector<1x50xf32> to vector<2x50xf32>
    %283 = arith.mulf %275, %282 : vector<2x50xf32>
    %284 = arith.addf %270, %283 : vector<2x50xf32>
    %285 = math.tanh %284 : vector<2x50xf32>
    %cst_81 = arith.constant 1.000000e+00 : f32
    %286 = vector.broadcast %cst_81 : f32 to vector<2x50xf32>
    %287 = arith.subf %286, %280 : vector<2x50xf32>
    %288 = arith.mulf %287, %285 : vector<2x50xf32>
    %c0_82 = arith.constant 0 : index
    %c0_83 = arith.constant 0 : index
    %289 = vector.load %arg6[%c0_82, %c0_83] : memref<4x16xf32, #tpu.memory_space<vmem>>, vector<4x16xf32>
    %c0_84 = arith.constant 0 : index
    %c0_85 = arith.constant 0 : index
    %c0_86 = arith.constant 0 : index
    %290 = vector.load %arg4[%c0_84, %c0_85, %c0_86] : memref<2x50x16xf32, #tpu.memory_space<vmem>>, vector<1x50x16xf32>
    %291 = vector.shape_cast %290 : vector<1x50x16xf32> to vector<50x16xf32>
    %cst_87 = arith.constant dense<0.000000e+00> : vector<2x16xf32>
    %292 = tpu.matmul %251, %291, %cst_87 {dimension_numbers = #tpu.dot_dimension_numbers<[1], [0], [0], [1], [0, 0, 1, 1], [], []>} : vector<2x50xf32>, vector<50x16xf32>, vector<2x16xf32> -> vector<2x16xf32>
    %c1_88 = arith.constant 1 : index
    %c0_89 = arith.constant 0 : index
    %c0_90 = arith.constant 0 : index
    %293 = vector.load %arg4[%c1_88, %c0_89, %c0_90] : memref<2x50x16xf32, #tpu.memory_space<vmem>>, vector<1x50x16xf32>
    %294 = vector.shape_cast %293 : vector<1x50x16xf32> to vector<50x16xf32>
    %cst_91 = arith.constant dense<0.000000e+00> : vector<2x16xf32>
    %295 = tpu.matmul %288, %294, %cst_91 {dimension_numbers = #tpu.dot_dimension_numbers<[1], [0], [0], [1], [0, 0, 1, 1], [], []>} : vector<2x50xf32>, vector<50x16xf32>, vector<2x16xf32> -> vector<2x16xf32>
    %296 = arith.addf %292, %295 : vector<2x16xf32>
    %297 = vector.extract_strided_slice %289 {offsets = [0, 0], sizes = [1, 16], strides = [1, 1]} : vector<4x16xf32> to vector<1x16xf32>
    %298 = vector.broadcast %297 : vector<1x16xf32> to vector<2x16xf32>
    %299 = arith.addf %296, %298 : vector<2x16xf32>
    %cst_92 = arith.constant dense<0.000000e+00> : vector<16xf32>
    %300 = vector.multi_reduction <add>, %299, %cst_92 [0] : vector<2x16xf32> to vector<16xf32>
    %301 = vector.shape_cast %300 : vector<16xf32> to vector<1x16xf32>
    %cst_93 = arith.constant 2.000000e+00 : f32
    %302 = vector.broadcast %cst_93 : f32 to vector<1x16xf32>
    %303 = arith.divf %301, %302 : vector<1x16xf32>
    %304 = vector.broadcast %303 : vector<1x16xf32> to vector<2x16xf32>
    %305 = arith.subf %299, %304 : vector<2x16xf32>
    %306 = arith.mulf %305, %305 : vector<2x16xf32>
    %cst_94 = arith.constant dense<0.000000e+00> : vector<16xf32>
    %307 = vector.multi_reduction <add>, %306, %cst_94 [0] : vector<2x16xf32> to vector<16xf32>
    %308 = vector.shape_cast %307 : vector<16xf32> to vector<1x16xf32>
    %cst_95 = arith.constant 2.000000e+00 : f32
    %309 = vector.broadcast %cst_95 : f32 to vector<1x16xf32>
    %310 = arith.divf %308, %309 : vector<1x16xf32>
    %cst_96 = arith.constant 9.99999974E-6 : f32
    %311 = vector.broadcast %cst_96 : f32 to vector<1x16xf32>
    %312 = arith.addf %310, %311 : vector<1x16xf32>
    %313 = math.rsqrt %312 : vector<1x16xf32>
    %314 = vector.broadcast %313 : vector<1x16xf32> to vector<2x16xf32>
    %315 = arith.mulf %305, %314 : vector<2x16xf32>
    %316 = vector.extract_strided_slice %289 {offsets = [1, 0], sizes = [1, 16], strides = [1, 1]} : vector<4x16xf32> to vector<1x16xf32>
    %317 = vector.broadcast %316 : vector<1x16xf32> to vector<2x16xf32>
    %318 = arith.mulf %315, %317 : vector<2x16xf32>
    %319 = vector.extract_strided_slice %289 {offsets = [2, 0], sizes = [1, 16], strides = [1, 1]} : vector<4x16xf32> to vector<1x16xf32>
    %320 = vector.broadcast %319 : vector<1x16xf32> to vector<2x16xf32>
    %321 = arith.addf %318, %320 : vector<2x16xf32>
    %cst_97 = arith.constant 0.000000e+00 : f32
    %322 = vector.broadcast %cst_97 : f32 to vector<2x16xf32>
    %323 = arith.maximumf %321, %322 : vector<2x16xf32>
    %c0_98 = arith.constant 0 : index
    %c0_99 = arith.constant 0 : index
    %324 = vector.load %arg5[%c0_98, %c0_99] : memref<16x4xf32, #tpu.memory_space<vmem>>, vector<16x4xf32>
    %cst_100 = arith.constant dense<0.000000e+00> : vector<2x4xf32>
    %325 = tpu.matmul %323, %324, %cst_100 {dimension_numbers = #tpu.dot_dimension_numbers<[1], [0], [0], [1], [0, 0, 1, 1], [], []>} : vector<2x16xf32>, vector<16x4xf32>, vector<2x4xf32> -> vector<2x4xf32>
    %326 = vector.extract_strided_slice %289 {offsets = [3, 0], sizes = [1, 4], strides = [1, 1]} : vector<4x16xf32> to vector<1x4xf32>
    %327 = vector.broadcast %326 : vector<1x4xf32> to vector<2x4xf32>
    %328 = arith.addf %325, %327 : vector<2x4xf32>
    %c0_101 = arith.constant 0 : index
    %c0_102 = arith.constant 0 : index
    %329 = vector.load %arg7[%c0_101, %c0_102] : memref<2x4xf32, #tpu.memory_space<vmem>>, vector<2x4xf32>
    tpu.vector_store %arg7[%c0_101, %c0_102], %328 {strides = array<i32>} : memref<2x4xf32, #tpu.memory_space<vmem>>, vector<2x4xf32>,
    return
  }
}

</mosaic_0001>

<llo_original>
// kernel: tpu_custom_call.1
$region0: #{tpu_custom_call.1}
  #allocation0 [shape = 'u32[]', space=smem, size = 0x4, offset = 0x4, fixed_abs, tag = 'smem constant byte address 0x4 - core index']
  #allocation1 [shape = 'u32[144,128]{1,0:T(1,128)}', space=vmem, size = 0x12000, scoped, tag = 'internal scratch']
  %s0 = inlined_call_operand.hbm [shape: f32[16,16], index: 0, kind: input, shape index: {}]
  %s1 = inlined_call_operand.hbm [shape: f32[6,16,50], index: 1, kind: input, shape index: {}]
  %s2 = inlined_call_operand.vmem [shape: f32[3,50,50], index: 2, kind: input, shape index: {}]
  %s3 = inlined_call_operand.hbm [shape: f32[8,50], index: 3, kind: input, shape index: {}]
  %s4 = inlined_call_operand.vmem [shape: f32[2,50,16], index: 4, kind: input, shape index: {}]
  %s5 = inlined_call_operand.vmem [shape: f32[16,4], index: 5, kind: input, shape index: {}]
  %s6 = inlined_call_operand.vmem [shape: f32[4,16], index: 6, kind: input, shape index: {}]
  %s7 = inlined_call_operand.hbm [shape: f32[2,4], index: 7, kind: output, shape index: {}]
  %s8 = sld [smem:[#allocation0]]
  $region50: #{tpu_custom_call.1} parent=0
    _
  %s10 = ssub.s32 1, %s8
  %s11 = scalar_select 0, %s10, %s8
  $region1: #{tpu_custom_call.1} parent=0
    #allocation2 [shape = 'u8[8192]{0}', space=vmem, size = 0x2000, scoped, tag = 'input window, operand 0, single buffered']
    #allocation3 [shape = 's32[1]{0}', space=sflag, size = 0x4, scoped, tag = 'scoped memory for tpu_custom_call.1']
    #allocation4 [shape = 's32[1]{0}', space=sflag, size = 0x4, scoped, tag = 'scoped memory for tpu_custom_call.1']
    #allocation5 [shape = 'u8[49152]{0}', space=vmem, size = 0xc000, scoped, tag = 'input window, operand 1, single buffered']
    #allocation6 [shape = 's32[1]{0}', space=sflag, size = 0x4, scoped, tag = 'scoped memory for tpu_custom_call.1']
    #allocation7 [shape = 'u8[4096]{0}', space=vmem, size = 0x1000, scoped, tag = 'input window, operand 3, single buffered']
    #allocation8 [shape = 'u8[1024]{0}', space=vmem, size = 0x400, scoped, tag = 'output window, operand 0, single buffered']
    %12 = vsyncpa [#allocation3], 0
    %13 = vsyncpa [#allocation6], 0
    %14 = vsyncpa [#allocation4], 0
    // Predicated region
    $region2: #{tpu_custom_call.1} parent=1 // pred_check
      _
    $region3: #{tpu_custom_call.1} parent=1 // pred_check_branch
      %16 = sbr.rel (0) target = $region5
    $region4: #{tpu_custom_call.1} parent=1 // pred_region
      %s18 = ssub.s32 256, 256
      %19 = vsyncadd [#allocation3], %s18
      %s20 = sshll.u32 [#allocation2], 4
      %s21 = int_to_ptr.vmem [resolvable:$true] %s20
      %26 = dma.hbm_to_vmem [thread:$0]  %s0, 256, %s21, [#allocation3], 128, 128, 8
    $region5: #{tpu_custom_call.1} parent=1 // pred_fallthru
      _
    // Predicated region
    $region6: #{tpu_custom_call.1} parent=1 // pred_check
      _
    $region7: #{tpu_custom_call.1} parent=1 // pred_check_branch
      %28 = sbr.rel (0) target = $region9
    $region8: #{tpu_custom_call.1} parent=1 // pred_region
      %s30 = ssub.s32 1536, 1536
      %31 = vsyncadd [#allocation6], %s30
      %s32 = sshll.u32 [#allocation5], 4
      %s33 = int_to_ptr.vmem [resolvable:$true] %s32
      %38 = dma.hbm_to_vmem [thread:$0]  %s1, 1536, %s33, [#allocation6], 128, 128, 8
    $region9: #{tpu_custom_call.1} parent=1 // pred_fallthru
      _
    // Predicated region
    $region10: #{tpu_custom_call.1} parent=1 // pred_check
      _
    $region11: #{tpu_custom_call.1} parent=1 // pred_check_branch
      %40 = sbr.rel (0) target = $region13
    $region12: #{tpu_custom_call.1} parent=1 // pred_region
      _
    $region13: #{tpu_custom_call.1} parent=1 // pred_fallthru
      _
    // Predicated region
    $region14: #{tpu_custom_call.1} parent=1 // pred_check
      _
    $region15: #{tpu_custom_call.1} parent=1 // pred_check_branch
      %42 = sbr.rel (0) target = $region17
    $region16: #{tpu_custom_call.1} parent=1 // pred_region
      %s44 = ssub.s32 128, 128
      %45 = vsyncadd [#allocation6], %s44
      %s47 = sshll.u32 [#allocation7], 4
      %s48 = int_to_ptr.vmem [resolvable:$true] %s47
      %50 = dma.hbm_to_vmem [thread:$0]  %s3, 128, %s48, [#allocation6]
    $region17: #{tpu_custom_call.1} parent=1 // pred_fallthru
      _
    // Predicated region
    $region18: #{tpu_custom_call.1} parent=1 // pred_check
      _
    $region19: #{tpu_custom_call.1} parent=1 // pred_check_branch
      %52 = sbr.rel (0) target = $region21
    $region20: #{tpu_custom_call.1} parent=1 // pred_region
      _
    $region21: #{tpu_custom_call.1} parent=1 // pred_fallthru
      _
    // Predicated region
    $region22: #{tpu_custom_call.1} parent=1 // pred_check
      _
    $region23: #{tpu_custom_call.1} parent=1 // pred_check_branch
      %54 = sbr.rel (0) target = $region25
    $region24: #{tpu_custom_call.1} parent=1 // pred_region
      _
    $region25: #{tpu_custom_call.1} parent=1 // pred_fallthru
      _
    // Predicated region
    $region26: #{tpu_custom_call.1} parent=1 // pred_check
      _
    $region27: #{tpu_custom_call.1} parent=1 // pred_check_branch
      %56 = sbr.rel (0) target = $region29
    $region28: #{tpu_custom_call.1} parent=1 // pred_region
      _
    $region29: #{tpu_custom_call.1} parent=1 // pred_fallthru
      _
    // Predicated region
    $region30: #{tpu_custom_call.1} parent=1 // pred_check
      _
    $region31: #{tpu_custom_call.1} parent=1 // pred_check_branch
      %58 = sbr.rel (0) target = $region33
    $region32: #{tpu_custom_call.1} parent=1 // pred_region
      %59 = dma.done [#allocation3], 256
    $region33: #{tpu_custom_call.1} parent=1 // pred_fallthru
      _
    // Predicated region
    $region34: #{tpu_custom_call.1} parent=1 // pred_check
      _
    $region35: #{tpu_custom_call.1} parent=1 // pred_check_branch
      %61 = sbr.rel (0) target = $region37
    $region36: #{tpu_custom_call.1} parent=1 // pred_region
      %62 = dma.done [#allocation6], 1536
    $region37: #{tpu_custom_call.1} parent=1 // pred_fallthru
      _
    // Predicated region
    $region38: #{tpu_custom_call.1} parent=1 // pred_check
      _
    $region39: #{tpu_custom_call.1} parent=1 // pred_check_branch
      %64 = sbr.rel (0) target = $region41
    $region40: #{tpu_custom_call.1} parent=1 // pred_region
      %65 = dma.done [#allocation6], 128
    $region41: #{tpu_custom_call.1} parent=1 // pred_fallthru
      _
    %v66 = vld [vmem:[#allocation2] sm:$0xff]
    %v67 = vld [vmem:[#allocation2 + $0x8] sm:$0xff]
    %v68 = vld [vmem:[#allocation7] sm:$0xff]
    %v69 = vld [vmem:[#allocation5] sm:$0xff]
    %v70 = vld [vmem:[#allocation5 + $0x8] sm:$0xff]
    %v71 = vlaneseq
    %v72 = vshrl.u32 %v71, 7
    %v73 = vsub.s32 0, %v72
    %v74 = vrot.slane %v68, %v73
    %vm75 = vcmask 130048
    %v77 = vsel %vm75, %v66, 0
    %v80 = vsel %vm75, %v67, 0
    %82 = vmatprep.subr.mxu0 0.0
    %83 = vmatpush1.msra.mxu0 %v69
    %84 = vmatprep.subr.mxu0 0.0
    %85 = vmatpush1.msra.mxu0 %v70
    %86 = vmatprep.subr.mxu0 0.0
    %87 = vmatpush1.msra.mxu0 0.0
    %88 = vmatprep.subr.mxu0 0.0
    %89 = vmatpush1.msra.mxu0 0.0
    %90 = vmatprep.subr.mxu0 0.0
    %91 = vmatpush1.msra.mxu0 0.0
    %92 = vmatprep.subr.mxu0 0.0
    %93 = vmatpush1.msra.mxu0 0.0
    %94 = vmatprep.subr.mxu0 0.0
    %95 = vmatpush1.msra.mxu0 0.0
    %96 = vmatprep.subr.mxu0 0.0
    %97 = vmatpush1.msra.mxu0 0.0
    %98 = vmatprep.subr.mxu0 0.0
    %99 = vmatpush1.msra.mxu0 0.0
    %100 = vmatprep.subr.mxu0 0.0
    %101 = vmatpush1.msra.mxu0 0.0
    %102 = vmatprep.subr.mxu0 0.0
    %103 = vmatpush1.msra.mxu0 0.0
    %104 = vmatprep.subr.mxu0 0.0
    %105 = vmatpush1.msra.mxu0 0.0
    %106 = vmatprep.subr.mxu0 0.0
    %107 = vmatpush1.msra.mxu0 0.0
    %108 = vmatprep.subr.mxu0 0.0
    %109 = vmatpush1.msra.mxu0 0.0
    %110 = vmatprep.subr.mxu0 0.0
    %111 = vmatpush1.msra.mxu0 0.0
    %112 = vmatprep.subr.mxu0 0.0
    %113 = vmatpush1.msra.mxu0 0.0
    %114 = vmatprep.subr.mxu0 0.0
    %115 = vmatpush1.msra.mxu0 0.0
    %116 = vmatprep.subr.mxu0 0.0
    %117 = vmatpush1.msra.mxu0 0.0
    %118 = vmatprep.subr.mxu0 0.0
    %119 = vmatpush1.msra.mxu0 0.0
    %120 = vmatprep.subr.mxu0 0.0
    %121 = vmatpush1.msra.mxu0 0.0
    %122 = vmatprep.subr.mxu0 0.0
    %123 = vmatpush1.msra.mxu0 0.0
    %124 = vmatprep.subr.mxu0 0.0
    %125 = vmatpush1.msra.mxu0 0.0
    %126 = vmatprep.subr.mxu0 0.0
    %127 = vmatpush1.msra.mxu0 0.0
    %128 = vmatprep.subr.mxu0 0.0
    %129 = vmatpush1.msra.mxu0 0.0
    %130 = vmatprep.subr.mxu0 0.0
    %131 = vmatpush1.msra.mxu0 0.0
    %132 = vmatprep.subr.mxu0 0.0
    %133 = vmatpush1.msra.mxu0 0.0
    %134 = vmatprep.subr.mxu0 0.0
    %135 = vmatpush1.msra.mxu0 0.0
    %136 = vmatprep.subr.mxu0 0.0
    %137 = vmatpush1.msra.mxu0 0.0
    %138 = vmatprep.subr.mxu0 0.0
    %139 = vmatpush1.msra.mxu0 0.0
    %140 = vmatprep.subr.mxu0 0.0
    %141 = vmatpush1.msra.mxu0 0.0
    %142 = vmatprep.subr.mxu0 0.0
    %143 = vmatpush1.msra.mxu0 0.0
    %144 = vmatprep.subr.mxu0 0.0
    %145 = vmatpush1.msra.mxu0 0.0
    %146 = vmatprep.mubr.f32.mxu0 0.0
    %147 = vmatmul.mubr.f32.gmra.mrb[0].mxu0 %v77
    %v148 = vpop.f32.mrb[0].mxu0
    %v149 = vadd.f32 %v74, %v148
    %v150 = vpop.f32.mrb[0].mxu0
    %151 = vmatprep.mubr.f32.mxu0 0.0
    %152 = vmatmul.mubr.f32.gmra.mrb[0].mxu0 %v80
    %v153 = vpop.f32.mrb[0].mxu0
    %v154 = vadd.f32 %v74, %v153
    %v155 = vpop.f32.mrb[0].mxu0
    %156 = vdwg.mxu0
    %s157 = scalar_lea.vmem [#allocation5], 16
    %v158 = vld [vmem:[%s157] sm:$0xff]
    %v159 = vld [vmem:[%s157 + $0x8] sm:$0xff]
    %v160 = vlaneseq
    %v161 = vshrl.u32 %v160, 7
    %v162 = vsub.s32 1, %v161
    %v163 = vrot.slane %v68, %v162
    %164 = vmatprep.subr.mxu0 0.0
    %165 = vmatpush1.msra.mxu0 %v158
    %166 = vmatprep.subr.mxu0 0.0
    %167 = vmatpush1.msra.mxu0 %v159
    %168 = vmatprep.subr.mxu0 0.0
    %169 = vmatpush1.msra.mxu0 0.0
    %170 = vmatprep.subr.mxu0 0.0
    %171 = vmatpush1.msra.mxu0 0.0
    %172 = vmatprep.subr.mxu0 0.0
    %173 = vmatpush1.msra.mxu0 0.0
    %174 = vmatprep.subr.mxu0 0.0
    %175 = vmatpush1.msra.mxu0 0.0
    %176 = vmatprep.subr.mxu0 0.0
    %177 = vmatpush1.msra.mxu0 0.0
    %178 = vmatprep.subr.mxu0 0.0
    %179 = vmatpush1.msra.mxu0 0.0
    %180 = vmatprep.subr.mxu0 0.0
    %181 = vmatpush1.msra.mxu0 0.0
    %182 = vmatprep.subr.mxu0 0.0
    %183 = vmatpush1.msra.mxu0 0.0
    %184 = vmatprep.subr.mxu0 0.0
    %185 = vmatpush1.msra.mxu0 0.0
    %186 = vmatprep.subr.mxu0 0.0
    %187 = vmatpush1.msra.mxu0 0.0
    %188 = vmatprep.subr.mxu0 0.0
    %189 = vmatpush1.msra.mxu0 0.0
    %190 = vmatprep.subr.mxu0 0.0
    %191 = vmatpush1.msra.mxu0 0.0
    %192 = vmatprep.subr.mxu0 0.0
    %193 = vmatpush1.msra.mxu0 0.0
    %194 = vmatprep.subr.mxu0 0.0
    %195 = vmatpush1.msra.mxu0 0.0
    %196 = vmatprep.subr.mxu0 0.0
    %197 = vmatpush1.msra.mxu0 0.0
    %198 = vmatprep.subr.mxu0 0.0
    %199 = vmatpush1.msra.mxu0 0.0
    %200 = vmatprep.subr.mxu0 0.0
    %201 = vmatpush1.msra.mxu0 0.0
    %202 = vmatprep.subr.mxu0 0.0
    %203 = vmatpush1.msra.mxu0 0.0
    %204 = vmatprep.subr.mxu0 0.0
    %205 = vmatpush1.msra.mxu0 0.0
    %206 = vmatprep.subr.mxu0 0.0
    %207 = vmatpush1.msra.mxu0 0.0
    %208 = vmatprep.subr.mxu0 0.0
    %209 = vmatpush1.msra.mxu0 0.0
    %210 = vmatprep.subr.mxu0 0.0
    %211 = vmatpush1.msra.mxu0 0.0
    %212 = vmatprep.subr.mxu0 0.0
    %213 = vmatpush1.msra.mxu0 0.0
    %214 = vmatprep.subr.mxu0 0.0
    %215 = vmatpush1.msra.mxu0 0.0
    %216 = vmatprep.subr.mxu0 0.0
    %217 = vmatpush1.msra.mxu0 0.0
    %218 = vmatprep.subr.mxu0 0.0
    %219 = vmatpush1.msra.mxu0 0.0
    %220 = vmatprep.subr.mxu0 0.0
    %221 = vmatpush1.msra.mxu0 0.0
    %222 = vmatprep.subr.mxu0 0.0
    %223 = vmatpush1.msra.mxu0 0.0
    %224 = vmatprep.subr.mxu0 0.0
    %225 = vmatpush1.msra.mxu0 0.0
    %226 = vmatprep.subr.mxu0 0.0
    %227 = vmatpush1.msra.mxu0 0.0
    %228 = vmatprep.mubr.f32.mxu0 0.0
    %229 = vmatmul.mubr.f32.gmra.mrb[0].mxu0 %v77
    %v230 = vpop.f32.mrb[0].mxu0
    %v231 = vadd.f32 %v163, %v230
    %v232 = vpop.f32.mrb[0].mxu0
    %233 = vmatprep.mubr.f32.mxu0 0.0
    %234 = vmatmul.mubr.f32.gmra.mrb[0].mxu0 %v80
    %v235 = vpop.f32.mrb[0].mxu0
    %v236 = vadd.f32 %v163, %v235
    %v237 = vpop.f32.mrb[0].mxu0
    %238 = vdwg.mxu0
    %s239 = scalar_lea.vmem [#allocation5], 32
    %v240 = vld [vmem:[%s239] sm:$0xff]
    %v241 = vld [vmem:[%s239 + $0x8] sm:$0xff]
    %v242 = vlaneseq
    %v243 = vshrl.u32 %v242, 7
    %v244 = vsub.s32 2, %v243
    %v245 = vrot.slane %v68, %v244
    %246 = vmatprep.subr.mxu0 0.0
    %247 = vmatpush1.msra.mxu0 %v240
    %248 = vmatprep.subr.mxu0 0.0
    %249 = vmatpush1.msra.mxu0 %v241
    %250 = vmatprep.subr.mxu0 0.0
    %251 = vmatpush1.msra.mxu0 0.0
    %252 = vmatprep.subr.mxu0 0.0
    %253 = vmatpush1.msra.mxu0 0.0
    %254 = vmatprep.subr.mxu0 0.0
    %255 = vmatpush1.msra.mxu0 0.0
    %256 = vmatprep.subr.mxu0 0.0
    %257 = vmatpush1.msra.mxu0 0.0
    %258 = vmatprep.subr.mxu0 0.0
    %259 = vmatpush1.msra.mxu0 0.0
    %260 = vmatprep.subr.mxu0 0.0
    %261 = vmatpush1.msra.mxu0 0.0
    %262 = vmatprep.subr.mxu0 0.0
    %263 = vmatpush1.msra.mxu0 0.0
    %264 = vmatprep.subr.mxu0 0.0
    %265 = vmatpush1.msra.mxu0 0.0
    %266 = vmatprep.subr.mxu0 0.0
    %267 = vmatpush1.msra.mxu0 0.0
    %268 = vmatprep.subr.mxu0 0.0
    %269 = vmatpush1.msra.mxu0 0.0
    %270 = vmatprep.subr.mxu0 0.0
    %271 = vmatpush1.msra.mxu0 0.0
    %272 = vmatprep.subr.mxu0 0.0
    %273 = vmatpush1.msra.mxu0 0.0
    %274 = vmatprep.subr.mxu0 0.0
    %275 = vmatpush1.msra.mxu0 0.0
    %276 = vmatprep.subr.mxu0 0.0
    %277 = vmatpush1.msra.mxu0 0.0
    %278 = vmatprep.subr.mxu0 0.0
    %279 = vmatpush1.msra.mxu0 0.0
    %280 = vmatprep.subr.mxu0 0.0
    %281 = vmatpush1.msra.mxu0 0.0
    %282 = vmatprep.subr.mxu0 0.0
    %283 = vmatpush1.msra.mxu0 0.0
    %284 = vmatprep.subr.mxu0 0.0
    %285 = vmatpush1.msra.mxu0 0.0
    %286 = vmatprep.subr.mxu0 0.0
    %287 = vmatpush1.msra.mxu0 0.0
    %288 = vmatprep.subr.mxu0 0.0
    %289 = vmatpush1.msra.mxu0 0.0
    %290 = vmatprep.subr.mxu0 0.0
    %291 = vmatpush1.msra.mxu0 0.0
    %292 = vmatprep.subr.mxu0 0.0
    %293 = vmatpush1.msra.mxu0 0.0
    %294 = vmatprep.subr.mxu0 0.0
    %295 = vmatpush1.msra.mxu0 0.0
    %296 = vmatprep.subr.mxu0 0.0
    %297 = vmatpush1.msra.mxu0 0.0
    %298 = vmatprep.subr.mxu0 0.0
    %299 = vmatpush1.msra.mxu0 0.0
    %300 = vmatprep.subr.mxu0 0.0
    %301 = vmatpush1.msra.mxu0 0.0
    %302 = vmatprep.subr.mxu0 0.0
    %303 = vmatpush1.msra.mxu0 0.0
    %304 = vmatprep.subr.mxu0 0.0
    %305 = vmatpush1.msra.mxu0 0.0
    %306 = vmatprep.subr.mxu0 0.0
    %307 = vmatpush1.msra.mxu0 0.0
    %308 = vmatprep.subr.mxu0 0.0
    %309 = vmatpush1.msra.mxu0 0.0
    %310 = vmatprep.mubr.f32.mxu0 0.0
    %311 = vmatmul.mubr.f32.gmra.mrb[0].mxu0 %v77
    %v312 = vpop.f32.mrb[0].mxu0
    %v313 = vadd.f32 %v245, %v312
    %v314 = vpop.f32.mrb[0].mxu0
    %315 = vmatprep.mubr.f32.mxu0 0.0
    %316 = vmatmul.mubr.f32.gmra.mrb[0].mxu0 %v80
    %v317 = vpop.f32.mrb[0].mxu0
    %v318 = vadd.f32 %v245, %v317
    %v319 = vpop.f32.mrb[0].mxu0
    %320 = vdwg.mxu0
    %v321 = vld [vmem:[%s2] sm:$0xff]
    %v322 = vld [vmem:[%s2 + $0x8] sm:$0xff]
    %v323 = vld [vmem:[%s2 + $0x10] sm:$0xff]
    %v324 = vld [vmem:[%s2 + $0x18] sm:$0xff]
    %v325 = vld [vmem:[%s2 + $0x20] sm:$0xff]
    %v326 = vld [vmem:[%s2 + $0x28] sm:$0xff]
    %v327 = vld [vmem:[%s2 + $0x30] sm:$0x3]
    %s328 = scalar_lea.vmem %s2, 56
    %v329 = vld [vmem:[%s328] sm:$0xff]
    %v330 = vld [vmem:[%s328 + $0x8] sm:$0xff]
    %v331 = vld [vmem:[%s328 + $0x10] sm:$0xff]
    %v332 = vld [vmem:[%s328 + $0x18] sm:$0xff]
    %v333 = vld [vmem:[%s328 + $0x20] sm:$0xff]
    %v334 = vld [vmem:[%s328 + $0x28] sm:$0xff]
    %v335 = vld [vmem:[%s328 + $0x30] sm:$0x3]
    %s336 = scalar_lea.vmem %s2, 112
    %v337 = vld [vmem:[%s336] sm:$0xff]
    %v338 = vld [vmem:[%s336 + $0x8] sm:$0xff]
    %v339 = vld [vmem:[%s336 + $0x10] sm:$0xff]
    %v340 = vld [vmem:[%s336 + $0x18] sm:$0xff]
    %v341 = vld [vmem:[%s336 + $0x20] sm:$0xff]
    %v342 = vld [vmem:[%s336 + $0x28] sm:$0xff]
    %v343 = vld [vmem:[%s336 + $0x30] sm:$0x3]
    %vm344 = vcmask 408576
    %v346 = vsel %vm344, 0.0, 0
    %vm348 = vcmask 1041408
    %v350 = vsel %vm348, %v327, 0
    %352 = vmatprep.subr.mxu0 0.0
    %353 = vmatpush1.msra.mxu0 %v321
    %354 = vmatprep.subr.mxu0 0.0
    %355 = vmatpush1.msra.mxu0 %v322
    %356 = vmatprep.subr.mxu0 0.0
    %357 = vmatpush1.msra.mxu0 %v323
    %358 = vmatprep.subr.mxu0 0.0
    %359 = vmatpush1.msra.mxu0 %v324
    %360 = vmatprep.subr.mxu0 0.0
    %361 = vmatpush1.msra.mxu0 %v325
    %362 = vmatprep.subr.mxu0 0.0
    %363 = vmatpush1.msra.mxu0 %v326
    %364 = vmatprep.subr.mxu0 0.0
    %365 = vmatpush1.msra.mxu0 %v350
    %366 = vmatprep.subr.mxu0 0.0
    %367 = vmatpush1.msra.mxu0 0.0
    %368 = vmatprep.subr.mxu0 0.0
    %369 = vmatpush1.msra.mxu0 0.0
    %370 = vmatprep.subr.mxu0 0.0
    %371 = vmatpush1.msra.mxu0 0.0
    %372 = vmatprep.subr.mxu0 0.0
    %373 = vmatpush1.msra.mxu0 0.0
    %374 = vmatprep.subr.mxu0 0.0
    %375 = vmatpush1.msra.mxu0 0.0
    %376 = vmatprep.subr.mxu0 0.0
    %377 = vmatpush1.msra.mxu0 0.0
    %378 = vmatprep.subr.mxu0 0.0
    %379 = vmatpush1.msra.mxu0 0.0
    %380 = vmatprep.subr.mxu0 0.0
    %381 = vmatpush1.msra.mxu0 0.0
    %382 = vmatprep.subr.mxu0 0.0
    %383 = vmatpush1.msra.mxu0 0.0
    %384 = vmatprep.subr.mxu0 0.0
    %385 = vmatpush1.msra.mxu0 0.0
    %386 = vmatprep.subr.mxu0 0.0
    %387 = vmatpush1.msra.mxu0 0.0
    %388 = vmatprep.subr.mxu0 0.0
    %389 = vmatpush1.msra.mxu0 0.0
    %390 = vmatprep.subr.mxu0 0.0
    %391 = vmatpush1.msra.mxu0 0.0
    %392 = vmatprep.subr.mxu0 0.0
    %393 = vmatpush1.msra.mxu0 0.0
    %394 = vmatprep.subr.mxu0 0.0
    %395 = vmatpush1.msra.mxu0 0.0
    %396 = vmatprep.subr.mxu0 0.0
    %397 = vmatpush1.msra.mxu0 0.0
    %398 = vmatprep.subr.mxu0 0.0
    %399 = vmatpush1.msra.mxu0 0.0
    %400 = vmatprep.subr.mxu0 0.0
    %401 = vmatpush1.msra.mxu0 0.0
    %402 = vmatprep.subr.mxu0 0.0
    %403 = vmatpush1.msra.mxu0 0.0
    %404 = vmatprep.subr.mxu0 0.0
    %405 = vmatpush1.msra.mxu0 0.0
    %406 = vmatprep.subr.mxu0 0.0
    %407 = vmatpush1.msra.mxu0 0.0
    %408 = vmatprep.subr.mxu0 0.0
    %409 = vmatpush1.msra.mxu0 0.0
    %410 = vmatprep.subr.mxu0 0.0
    %411 = vmatpush1.msra.mxu0 0.0
    %412 = vmatprep.subr.mxu0 0.0
    %413 = vmatpush1.msra.mxu0 0.0
    %414 = vmatprep.subr.mxu0 0.0
    %415 = vmatpush1.msra.mxu0 0.0
    %416 = vmatprep.mubr.f32.mxu0 0.0
    %417 = vmatmul.mubr.f32.gmra.mrb[0].mxu0 %v346
    %v418 = vpop.f32.mrb[0].mxu0
    %v419 = vadd.f32 0.0, %v418
    %v420 = vpop.f32.mrb[0].mxu0
    %421 = vdwg.mxu0
    %v423 = vsel %vm348, %v335, 0
    %425 = vmatprep.subr.mxu0 0.0
    %426 = vmatpush1.msra.mxu0 %v329
    %427 = vmatprep.subr.mxu0 0.0
    %428 = vmatpush1.msra.mxu0 %v330
    %429 = vmatprep.subr.mxu0 0.0
    %430 = vmatpush1.msra.mxu0 %v331
    %431 = vmatprep.subr.mxu0 0.0
    %432 = vmatpush1.msra.mxu0 %v332
    %433 = vmatprep.subr.mxu0 0.0
    %434 = vmatpush1.msra.mxu0 %v333
    %435 = vmatprep.subr.mxu0 0.0
    %436 = vmatpush1.msra.mxu0 %v334
    %437 = vmatprep.subr.mxu0 0.0
    %438 = vmatpush1.msra.mxu0 %v423
    %439 = vmatprep.subr.mxu0 0.0
    %440 = vmatpush1.msra.mxu0 0.0
    %441 = vmatprep.subr.mxu0 0.0
    %442 = vmatpush1.msra.mxu0 0.0
    %443 = vmatprep.subr.mxu0 0.0
    %444 = vmatpush1.msra.mxu0 0.0
    %445 = vmatprep.subr.mxu0 0.0
    %446 = vmatpush1.msra.mxu0 0.0
    %447 = vmatprep.subr.mxu0 0.0
    %448 = vmatpush1.msra.mxu0 0.0
    %449 = vmatprep.subr.mxu0 0.0
    %450 = vmatpush1.msra.mxu0 0.0
    %451 = vmatprep.subr.mxu0 0.0
    %452 = vmatpush1.msra.mxu0 0.0
    %453 = vmatprep.subr.mxu0 0.0
    %454 = vmatpush1.msra.mxu0 0.0
    %455 = vmatprep.subr.mxu0 0.0
    %456 = vmatpush1.msra.mxu0 0.0
    %457 = vmatprep.subr.mxu0 0.0
    %458 = vmatpush1.msra.mxu0 0.0
    %459 = vmatprep.subr.mxu0 0.0
    %460 = vmatpush1.msra.mxu0 0.0
    %461 = vmatprep.subr.mxu0 0.0
    %462 = vmatpush1.msra.mxu0 0.0
    %463 = vmatprep.subr.mxu0 0.0
    %464 = vmatpush1.msra.mxu0 0.0
    %465 = vmatprep.subr.mxu0 0.0
    %466 = vmatpush1.msra.mxu0 0.0
    %467 = vmatprep.subr.mxu0 0.0
    %468 = vmatpush1.msra.mxu0 0.0
    %469 = vmatprep.subr.mxu0 0.0
    %470 = vmatpush1.msra.mxu0 0.0
    %471 = vmatprep.subr.mxu0 0.0
    %472 = vmatpush1.msra.mxu0 0.0
    %473 = vmatprep.subr.mxu0 0.0
    %474 = vmatpush1.msra.mxu0 0.0
    %475 = vmatprep.subr.mxu0 0.0
    %476 = vmatpush1.msra.mxu0 0.0
    %477 = vmatprep.subr.mxu0 0.0
    %478 = vmatpush1.msra.mxu0 0.0
    %479 = vmatprep.subr.mxu0 0.0
    %480 = vmatpush1.msra.mxu0 0.0
    %481 = vmatprep.subr.mxu0 0.0
    %482 = vmatpush1.msra.mxu0 0.0
    %483 = vmatprep.subr.mxu0 0.0
    %484 = vmatpush1.msra.mxu0 0.0
    %485 = vmatprep.subr.mxu0 0.0
    %486 = vmatpush1.msra.mxu0 0.0
    %487 = vmatprep.subr.mxu0 0.0
    %488 = vmatpush1.msra.mxu0 0.0
    %489 = vmatprep.mubr.f32.mxu0 0.0
    %490 = vmatmul.mubr.f32.gmra.mrb[0].mxu0 %v346
    %v491 = vpop.f32.mrb[0].mxu0
    %v492 = vadd.f32 0.0, %v491
    %v493 = vpop.f32.mrb[0].mxu0
    %494 = vdwg.mxu0
    %v495 = vadd.f32 %v149, %v419
    %v496 = vxor.u32 %v495, 2147483648
    %v497 = vmul.f32 %v496, 1.442695
    %v498 = vpow.pop %v497
    %v499 = vadd.f32 %v498, 1.0
    %v500 = vrcp.pop %v499
    %v501 = vmul.f32 1.0, %v500
    %v502 = vadd.f32 %v231, %v492
    %v503 = vxor.u32 %v502, 2147483648
    %v504 = vmul.f32 %v503, 1.442695
    %v505 = vpow.pop %v504
    %v506 = vadd.f32 %v505, 1.0
    %v507 = vrcp.pop %v506
    %v508 = vmul.f32 1.0, %v507
    %v509 = vlaneseq
    %v510 = vshrl.u32 %v509, 7
    %v511 = vsub.s32 3, %v510
    %v512 = vrot.slane %v68, %v511
    %v514 = vsel %vm348, %v343, 0
    %516 = vmatprep.subr.mxu0 0.0
    %517 = vmatpush1.msra.mxu0 %v337
    %518 = vmatprep.subr.mxu0 0.0
    %519 = vmatpush1.msra.mxu0 %v338
    %520 = vmatprep.subr.mxu0 0.0
    %521 = vmatpush1.msra.mxu0 %v339
    %522 = vmatprep.subr.mxu0 0.0
    %523 = vmatpush1.msra.mxu0 %v340
    %524 = vmatprep.subr.mxu0 0.0
    %525 = vmatpush1.msra.mxu0 %v341
    %526 = vmatprep.subr.mxu0 0.0
    %527 = vmatpush1.msra.mxu0 %v342
    %528 = vmatprep.subr.mxu0 0.0
    %529 = vmatpush1.msra.mxu0 %v514
    %530 = vmatprep.subr.mxu0 0.0
    %531 = vmatpush1.msra.mxu0 0.0
    %532 = vmatprep.subr.mxu0 0.0
    %533 = vmatpush1.msra.mxu0 0.0
    %534 = vmatprep.subr.mxu0 0.0
    %535 = vmatpush1.msra.mxu0 0.0
    %536 = vmatprep.subr.mxu0 0.0
    %537 = vmatpush1.msra.mxu0 0.0
    %538 = vmatprep.subr.mxu0 0.0
    %539 = vmatpush1.msra.mxu0 0.0
    %540 = vmatprep.subr.mxu0 0.0
    %541 = vmatpush1.msra.mxu0 0.0
    %542 = vmatprep.subr.mxu0 0.0
    %543 = vmatpush1.msra.mxu0 0.0
    %544 = vmatprep.subr.mxu0 0.0
    %545 = vmatpush1.msra.mxu0 0.0
    %546 = vmatprep.subr.mxu0 0.0
    %547 = vmatpush1.msra.mxu0 0.0
    %548 = vmatprep.subr.mxu0 0.0
    %549 = vmatpush1.msra.mxu0 0.0
    %550 = vmatprep.subr.mxu0 0.0
    %551 = vmatpush1.msra.mxu0 0.0
    %552 = vmatprep.subr.mxu0 0.0
    %553 = vmatpush1.msra.mxu0 0.0
    %554 = vmatprep.subr.mxu0 0.0
    %555 = vmatpush1.msra.mxu0 0.0
    %556 = vmatprep.subr.mxu0 0.0
    %557 = vmatpush1.msra.mxu0 0.0
    %558 = vmatprep.subr.mxu0 0.0
    %559 = vmatpush1.msra.mxu0 0.0
    %560 = vmatprep.subr.mxu0 0.0
    %561 = vmatpush1.msra.mxu0 0.0
    %562 = vmatprep.subr.mxu0 0.0
    %563 = vmatpush1.msra.mxu0 0.0
    %564 = vmatprep.subr.mxu0 0.0
    %565 = vmatpush1.msra.mxu0 0.0
    %566 = vmatprep.subr.mxu0 0.0
    %567 = vmatpush1.msra.mxu0 0.0
    %568 = vmatprep.subr.mxu0 0.0
    %569 = vmatpush1.msra.mxu0 0.0
    %570 = vmatprep.subr.mxu0 0.0
    %571 = vmatpush1.msra.mxu0 0.0
    %572 = vmatprep.subr.mxu0 0.0
    %573 = vmatpush1.msra.mxu0 0.0
    %574 = vmatprep.subr.mxu0 0.0
    %575 = vmatpush1.msra.mxu0 0.0
    %576 = vmatprep.subr.mxu0 0.0
    %577 = vmatpush1.msra.mxu0 0.0
    %578 = vmatprep.subr.mxu0 0.0
    %579 = vmatpush1.msra.mxu0 0.0
    %580 = vmatprep.mubr.f32.mxu0 0.0
    %581 = vmatmul.mubr.f32.gmra.mrb[0].mxu0 %v346
    %v582 = vpop.f32.mrb[0].mxu0
    %v583 = vadd.f32 %v512, %v582
    %v584 = vpop.f32.mrb[0].mxu0
    %585 = vdwg.mxu0
    %v586 = vmul.f32 %v501, %v583
    %v587 = vadd.f32 %v313, %v586
    %v588 = vtanh.pop %v587
    %v589 = vsub.f32 1.0, %v508
    %v590 = vmul.f32 %v589, %v588
    %v591 = vmul.f32 %v508, 0.0
    %v592 = vadd.f32 %v590, %v591
    %v594 = vsel %vm344, %v592, 0
    %596 = vmatprep.subr.mxu0 0.0
    %597 = vmatpush1.msra.mxu0 %v321
    %598 = vmatprep.subr.mxu0 0.0
    %599 = vmatpush1.msra.mxu0 %v322
    %600 = vmatprep.subr.mxu0 0.0
    %601 = vmatpush1.msra.mxu0 %v323
    %602 = vmatprep.subr.mxu0 0.0
    %603 = vmatpush1.msra.mxu0 %v324
    %604 = vmatprep.subr.mxu0 0.0
    %605 = vmatpush1.msra.mxu0 %v325
    %606 = vmatprep.subr.mxu0 0.0
    %607 = vmatpush1.msra.mxu0 %v326
    %608 = vmatprep.subr.mxu0 0.0
    %609 = vmatpush1.msra.mxu0 %v350
    %610 = vmatprep.subr.mxu0 0.0
    %611 = vmatpush1.msra.mxu0 0.0
    %612 = vmatprep.subr.mxu0 0.0
    %613 = vmatpush1.msra.mxu0 0.0
    %614 = vmatprep.subr.mxu0 0.0
    %615 = vmatpush1.msra.mxu0 0.0
    %616 = vmatprep.subr.mxu0 0.0
    %617 = vmatpush1.msra.mxu0 0.0
    %618 = vmatprep.subr.mxu0 0.0
    %619 = vmatpush1.msra.mxu0 0.0
    %620 = vmatprep.subr.mxu0 0.0
    %621 = vmatpush1.msra.mxu0 0.0
    %622 = vmatprep.subr.mxu0 0.0
    %623 = vmatpush1.msra.mxu0 0.0
    %624 = vmatprep.subr.mxu0 0.0
    %625 = vmatpush1.msra.mxu0 0.0
    %626 = vmatprep.subr.mxu0 0.0
    %627 = vmatpush1.msra.mxu0 0.0
    %628 = vmatprep.subr.mxu0 0.0
    %629 = vmatpush1.msra.mxu0 0.0
    %630 = vmatprep.subr.mxu0 0.0
    %631 = vmatpush1.msra.mxu0 0.0
    %632 = vmatprep.subr.mxu0 0.0
    %633 = vmatpush1.msra.mxu0 0.0
    %634 = vmatprep.subr.mxu0 0.0
    %635 = vmatpush1.msra.mxu0 0.0
    %636 = vmatprep.subr.mxu0 0.0
    %637 = vmatpush1.msra.mxu0 0.0
    %638 = vmatprep.subr.mxu0 0.0
    %639 = vmatpush1.msra.mxu0 0.0
    %640 = vmatprep.subr.mxu0 0.0
    %641 = vmatpush1.msra.mxu0 0.0
    %642 = vmatprep.subr.mxu0 0.0
    %643 = vmatpush1.msra.mxu0 0.0
    %644 = vmatprep.subr.mxu0 0.0
    %645 = vmatpush1.msra.mxu0 0.0
    %646 = vmatprep.subr.mxu0 0.0
    %647 = vmatpush1.msra.mxu0 0.0
    %648 = vmatprep.subr.mxu0 0.0
    %649 = vmatpush1.msra.mxu0 0.0
    %650 = vmatprep.subr.mxu0 0.0
    %651 = vmatpush1.msra.mxu0 0.0
    %652 = vmatprep.subr.mxu0 0.0
    %653 = vmatpush1.msra.mxu0 0.0
    %654 = vmatprep.subr.mxu0 0.0
    %655 = vmatpush1.msra.mxu0 0.0
    %656 = vmatprep.subr.mxu0 0.0
    %657 = vmatpush1.msra.mxu0 0.0
    %658 = vmatprep.subr.mxu0 0.0
    %659 = vmatpush1.msra.mxu0 0.0
    %660 = vmatprep.mubr.f32.mxu0 0.0
    %661 = vmatmul.mubr.f32.gmra.mrb[0].mxu0 %v594
    %v662 = vpop.f32.mrb[0].mxu0
    %v663 = vadd.f32 0.0, %v662
    %v664 = vpop.f32.mrb[0].mxu0
    %665 = vdwg.mxu0
    %666 = vmatprep.subr.mxu0 0.0
    %667 = vmatpush1.msra.mxu0 %v329
    %668 = vmatprep.subr.mxu0 0.0
    %669 = vmatpush1.msra.mxu0 %v330
    %670 = vmatprep.subr.mxu0 0.0
    %671 = vmatpush1.msra.mxu0 %v331
    %672 = vmatprep.subr.mxu0 0.0
    %673 = vmatpush1.msra.mxu0 %v332
    %674 = vmatprep.subr.mxu0 0.0
    %675 = vmatpush1.msra.mxu0 %v333
    %676 = vmatprep.subr.mxu0 0.0
    %677 = vmatpush1.msra.mxu0 %v334
    %678 = vmatprep.subr.mxu0 0.0
    %679 = vmatpush1.msra.mxu0 %v423
    %680 = vmatprep.subr.mxu0 0.0
    %681 = vmatpush1.msra.mxu0 0.0
    %682 = vmatprep.subr.mxu0 0.0
    %683 = vmatpush1.msra.mxu0 0.0
    %684 = vmatprep.subr.mxu0 0.0
    %685 = vmatpush1.msra.mxu0 0.0
    %686 = vmatprep.subr.mxu0 0.0
    %687 = vmatpush1.msra.mxu0 0.0
    %688 = vmatprep.subr.mxu0 0.0
    %689 = vmatpush1.msra.mxu0 0.0
    %690 = vmatprep.subr.mxu0 0.0
    %691 = vmatpush1.msra.mxu0 0.0
    %692 = vmatprep.subr.mxu0 0.0
    %693 = vmatpush1.msra.mxu0 0.0
    %694 = vmatprep.subr.mxu0 0.0
    %695 = vmatpush1.msra.mxu0 0.0
    %696 = vmatprep.subr.mxu0 0.0
    %697 = vmatpush1.msra.mxu0 0.0
    %698 = vmatprep.subr.mxu0 0.0
    %699 = vmatpush1.msra.mxu0 0.0
    %700 = vmatprep.subr.mxu0 0.0
    %701 = vmatpush1.msra.mxu0 0.0
    %702 = vmatprep.subr.mxu0 0.0
    %703 = vmatpush1.msra.mxu0 0.0
    %704 = vmatprep.subr.mxu0 0.0
    %705 = vmatpush1.msra.mxu0 0.0
    %706 = vmatprep.subr.mxu0 0.0
    %707 = vmatpush1.msra.mxu0 0.0
    %708 = vmatprep.subr.mxu0 0.0
    %709 = vmatpush1.msra.mxu0 0.0
    %710 = vmatprep.subr.mxu0 0.0
    %711 = vmatpush1.msra.mxu0 0.0
    %712 = vmatprep.subr.mxu0 0.0
    %713 = vmatpush1.msra.mxu0 0.0
    %714 = vmatprep.subr.mxu0 0.0
    %715 = vmatpush1.msra.mxu0 0.0
    %716 = vmatprep.subr.mxu0 0.0
    %717 = vmatpush1.msra.mxu0 0.0
    %718 = vmatprep.subr.mxu0 0.0
    %719 = vmatpush1.msra.mxu0 0.0
    %720 = vmatprep.subr.mxu0 0.0
    %721 = vmatpush1.msra.mxu0 0.0
    %722 = vmatprep.subr.mxu0 0.0
    %723 = vmatpush1.msra.mxu0 0.0
    %724 = vmatprep.subr.mxu0 0.0
    %725 = vmatpush1.msra.mxu0 0.0
    %726 = vmatprep.subr.mxu0 0.0
    %727 = vmatpush1.msra.mxu0 0.0
    %728 = vmatprep.subr.mxu0 0.0
    %729 = vmatpush1.msra.mxu0 0.0
    %730 = vmatprep.mubr.f32.mxu0 0.0
    %731 = vmatmul.mubr.f32.gmra.mrb[0].mxu0 %v594
    %v732 = vpop.f32.mrb[0].mxu0
    %v733 = vadd.f32 0.0, %v732
    %v734 = vpop.f32.mrb[0].mxu0
    %735 = vdwg.mxu0
    %v737 = vrot.slane %v663, 6
    %v739 = vadd.f32 %v149, %v737
    %v740 = vxor.u32 %v739, 2147483648
    %v741 = vmul.f32 %v740, 1.442695
    %v742 = vpow.pop %v741
    %v743 = vadd.f32 %v742, 1.0
    %v744 = vrcp.pop %v743
    %v745 = vmul.f32 1.0, %v744
    %v747 = vrot.slane %v733, 6
    %v749 = vadd.f32 %v231, %v747
    %v750 = vxor.u32 %v749, 2147483648
    %v751 = vmul.f32 %v750, 1.442695
    %v752 = vpow.pop %v751
    %v753 = vadd.f32 %v752, 1.0
    %v754 = vrcp.pop %v753
    %v755 = vmul.f32 1.0, %v754
    %756 = vmatprep.subr.mxu0 0.0
    %757 = vmatpush1.msra.mxu0 %v337
    %758 = vmatprep.subr.mxu0 0.0
    %759 = vmatpush1.msra.mxu0 %v338
    %760 = vmatprep.subr.mxu0 0.0
    %761 = vmatpush1.msra.mxu0 %v339
    %762 = vmatprep.subr.mxu0 0.0
    %763 = vmatpush1.msra.mxu0 %v340
    %764 = vmatprep.subr.mxu0 0.0
    %765 = vmatpush1.msra.mxu0 %v341
    %766 = vmatprep.subr.mxu0 0.0
    %767 = vmatpush1.msra.mxu0 %v342
    %768 = vmatprep.subr.mxu0 0.0
    %769 = vmatpush1.msra.mxu0 %v514
    %770 = vmatprep.subr.mxu0 0.0
    %771 = vmatpush1.msra.mxu0 0.0
    %772 = vmatprep.subr.mxu0 0.0
    %773 = vmatpush1.msra.mxu0 0.0
    %774 = vmatprep.subr.mxu0 0.0
    %775 = vmatpush1.msra.mxu0 0.0
    %776 = vmatprep.subr.mxu0 0.0
    %777 = vmatpush1.msra.mxu0 0.0
    %778 = vmatprep.subr.mxu0 0.0
    %779 = vmatpush1.msra.mxu0 0.0
    %780 = vmatprep.subr.mxu0 0.0
    %781 = vmatpush1.msra.mxu0 0.0
    %782 = vmatprep.subr.mxu0 0.0
    %783 = vmatpush1.msra.mxu0 0.0
    %784 = vmatprep.subr.mxu0 0.0
    %785 = vmatpush1.msra.mxu0 0.0
    %786 = vmatprep.subr.mxu0 0.0
    %787 = vmatpush1.msra.mxu0 0.0
    %788 = vmatprep.subr.mxu0 0.0
    %789 = vmatpush1.msra.mxu0 0.0
    %790 = vmatprep.subr.mxu0 0.0
    %791 = vmatpush1.msra.mxu0 0.0
    %792 = vmatprep.subr.mxu0 0.0
    %793 = vmatpush1.msra.mxu0 0.0
    %794 = vmatprep.subr.mxu0 0.0
    %795 = vmatpush1.msra.mxu0 0.0
    %796 = vmatprep.subr.mxu0 0.0
    %797 = vmatpush1.msra.mxu0 0.0
    %798 = vmatprep.subr.mxu0 0.0
    %799 = vmatpush1.msra.mxu0 0.0
    %800 = vmatprep.subr.mxu0 0.0
    %801 = vmatpush1.msra.mxu0 0.0
    %802 = vmatprep.subr.mxu0 0.0
    %803 = vmatpush1.msra.mxu0 0.0
    %804 = vmatprep.subr.mxu0 0.0
    %805 = vmatpush1.msra.mxu0 0.0
    %806 = vmatprep.subr.mxu0 0.0
    %807 = vmatpush1.msra.mxu0 0.0
    %808 = vmatprep.subr.mxu0 0.0
    %809 = vmatpush1.msra.mxu0 0.0
    %810 = vmatprep.subr.mxu0 0.0
    %811 = vmatpush1.msra.mxu0 0.0
    %812 = vmatprep.subr.mxu0 0.0
    %813 = vmatpush1.msra.mxu0 0.0
    %814 = vmatprep.subr.mxu0 0.0
    %815 = vmatpush1.msra.mxu0 0.0
    %816 = vmatprep.subr.mxu0 0.0
    %817 = vmatpush1.msra.mxu0 0.0
    %818 = vmatprep.subr.mxu0 0.0
    %819 = vmatpush1.msra.mxu0 0.0
    %820 = vmatprep.mubr.f32.mxu0 0.0
    %821 = vmatmul.mubr.f32.gmra.mrb[0].mxu0 %v594
    %v822 = vpop.f32.mrb[0].mxu0
    %v823 = vadd.f32 %v512, %v822
    %v824 = vpop.f32.mrb[0].mxu0
    %825 = vdwg.mxu0
    %v827 = vrot.slane %v823, 6
    %v829 = vmul.f32 %v745, %v827
    %v830 = vadd.f32 %v313, %v829
    %v831 = vtanh.pop %v830
    %v832 = vsub.f32 1.0, %v755
    %v833 = vmul.f32 %v832, %v831
    %v834 = vrot.slane %v592, 6
    %v836 = vmul.f32 %v755, %v834
    %v837 = vadd.f32 %v833, %v836
    %v839 = vrot.slane %v837, 2
    %v840 = vsel %vm344, %v839, 0
    %842 = vmatprep.subr.mxu0 0.0
    %843 = vmatpush1.msra.mxu0 %v321
    %844 = vmatprep.subr.mxu0 0.0
    %845 = vmatpush1.msra.mxu0 %v322
    %846 = vmatprep.subr.mxu0 0.0
    %847 = vmatpush1.msra.mxu0 %v323
    %848 = vmatprep.subr.mxu0 0.0
    %849 = vmatpush1.msra.mxu0 %v324
    %850 = vmatprep.subr.mxu0 0.0
    %851 = vmatpush1.msra.mxu0 %v325
    %852 = vmatprep.subr.mxu0 0.0
    %853 = vmatpush1.msra.mxu0 %v326
    %854 = vmatprep.subr.mxu0 0.0
    %855 = vmatpush1.msra.mxu0 %v350
    %856 = vmatprep.subr.mxu0 0.0
    %857 = vmatpush1.msra.mxu0 0.0
    %858 = vmatprep.subr.mxu0 0.0
    %859 = vmatpush1.msra.mxu0 0.0
    %860 = vmatprep.subr.mxu0 0.0
    %861 = vmatpush1.msra.mxu0 0.0
    %862 = vmatprep.subr.mxu0 0.0
    %863 = vmatpush1.msra.mxu0 0.0
    %864 = vmatprep.subr.mxu0 0.0
    %865 = vmatpush1.msra.mxu0 0.0
    %866 = vmatprep.subr.mxu0 0.0
    %867 = vmatpush1.msra.mxu0 0.0
    %868 = vmatprep.subr.mxu0 0.0
    %869 = vmatpush1.msra.mxu0 0.0
    %870 = vmatprep.subr.mxu0 0.0
    %871 = vmatpush1.msra.mxu0 0.0
    %872 = vmatprep.subr.mxu0 0.0
    %873 = vmatpush1.msra.mxu0 0.0
    %874 = vmatprep.subr.mxu0 0.0
    %875 = vmatpush1.msra.mxu0 0.0
    %876 = vmatprep.subr.mxu0 0.0
    %877 = vmatpush1.msra.mxu0 0.0
    %878 = vmatprep.subr.mxu0 0.0
    %879 = vmatpush1.msra.mxu0 0.0
    %880 = vmatprep.subr.mxu0 0.0
    %881 = vmatpush1.msra.mxu0 0.0
    %882 = vmatprep.subr.mxu0 0.0
    %883 = vmatpush1.msra.mxu0 0.0
    %884 = vmatprep.subr.mxu0 0.0
    %885 = vmatpush1.msra.mxu0 0.0
    %886 = vmatprep.subr.mxu0 0.0
    %887 = vmatpush1.msra.mxu0 0.0
    %888 = vmatprep.subr.mxu0 0.0
    %889 = vmatpush1.msra.mxu0 0.0
    %890 = vmatprep.subr.mxu0 0.0
    %891 = vmatpush1.msra.mxu0 0.0
    %892 = vmatprep.subr.mxu0 0.0
    %893 = vmatpush1.msra.mxu0 0.0
    %894 = vmatprep.subr.mxu0 0.0
    %895 = vmatpush1.msra.mxu0 0.0
    %896 = vmatprep.subr.mxu0 0.0
    %897 = vmatpush1.msra.mxu0 0.0
    %898 = vmatprep.subr.mxu0 0.0
    %899 = vmatpush1.msra.mxu0 0.0
    %900 = vmatprep.subr.mxu0 0.0
    %901 = vmatpush1.msra.mxu0 0.0
    %902 = vmatprep.subr.mxu0 0.0
    %903 = vmatpush1.msra.mxu0 0.0
    %904 = vmatprep.subr.mxu0 0.0
    %905 = vmatpush1.msra.mxu0 0.0
    %906 = vmatprep.mubr.f32.mxu0 0.0
    %907 = vmatmul.mubr.f32.gmra.mrb[0].mxu0 %v840
    %v908 = vpop.f32.mrb[0].mxu0
    %v909 = vadd.f32 0.0, %v908
    %v910 = vpop.f32.mrb[0].mxu0
    %911 = vdwg.mxu0
    %912 = vmatprep.subr.mxu0 0.0
    %913 = vmatpush1.msra.mxu0 %v329
    %914 = vmatprep.subr.mxu0 0.0
    %915 = vmatpush1.msra.mxu0 %v330
    %916 = vmatprep.subr.mxu0 0.0
    %917 = vmatpush1.msra.mxu0 %v331
    %918 = vmatprep.subr.mxu0 0.0
    %919 = vmatpush1.msra.mxu0 %v332
    %920 = vmatprep.subr.mxu0 0.0
    %921 = vmatpush1.msra.mxu0 %v333
    %922 = vmatprep.subr.mxu0 0.0
    %923 = vmatpush1.msra.mxu0 %v334
    %924 = vmatprep.subr.mxu0 0.0
    %925 = vmatpush1.msra.mxu0 %v423
    %926 = vmatprep.subr.mxu0 0.0
    %927 = vmatpush1.msra.mxu0 0.0
    %928 = vmatprep.subr.mxu0 0.0
    %929 = vmatpush1.msra.mxu0 0.0
    %930 = vmatprep.subr.mxu0 0.0
    %931 = vmatpush1.msra.mxu0 0.0
    %932 = vmatprep.subr.mxu0 0.0
    %933 = vmatpush1.msra.mxu0 0.0
    %934 = vmatprep.subr.mxu0 0.0
    %935 = vmatpush1.msra.mxu0 0.0
    %936 = vmatprep.subr.mxu0 0.0
    %937 = vmatpush1.msra.mxu0 0.0
    %938 = vmatprep.subr.mxu0 0.0
    %939 = vmatpush1.msra.mxu0 0.0
    %940 = vmatprep.subr.mxu0 0.0
    %941 = vmatpush1.msra.mxu0 0.0
    %942 = vmatprep.subr.mxu0 0.0
    %943 = vmatpush1.msra.mxu0 0.0
    %944 = vmatprep.subr.mxu0 0.0
    %945 = vmatpush1.msra.mxu0 0.0
    %946 = vmatprep.subr.mxu0 0.0
    %947 = vmatpush1.msra.mxu0 0.0
    %948 = vmatprep.subr.mxu0 0.0
    %949 = vmatpush1.msra.mxu0 0.0
    %950 = vmatprep.subr.mxu0 0.0
    %951 = vmatpush1.msra.mxu0 0.0
    %952 = vmatprep.subr.mxu0 0.0
    %953 = vmatpush1.msra.mxu0 0.0
    %954 = vmatprep.subr.mxu0 0.0
    %955 = vmatpush1.msra.mxu0 0.0
    %956 = vmatprep.subr.mxu0 0.0
    %957 = vmatpush1.msra.mxu0 0.0
    %958 = vmatprep.subr.mxu0 0.0
    %959 = vmatpush1.msra.mxu0 0.0
    %960 = vmatprep.subr.mxu0 0.0
    %961 = vmatpush1.msra.mxu0 0.0
    %962 = vmatprep.subr.mxu0 0.0
    %963 = vmatpush1.msra.mxu0 0.0
    %964 = vmatprep.subr.mxu0 0.0
    %965 = vmatpush1.msra.mxu0 0.0
    %966 = vmatprep.subr.mxu0 0.0
    %967 = vmatpush1.msra.mxu0 0.0
    %968 = vmatprep.subr.mxu0 0.0
    %969 = vmatpush1.msra.mxu0 0.0
    %970 = vmatprep.subr.mxu0 0.0
    %971 = vmatpush1.msra.mxu0 0.0
    %972 = vmatprep.subr.mxu0 0.0
    %973 = vmatpush1.msra.mxu0 0.0
    %974 = vmatprep.subr.mxu0 0.0
    %975 = vmatpush1.msra.mxu0 0.0
    %976 = vmatprep.mubr.f32.mxu0 0.0
    %977 = vmatmul.mubr.f32.gmra.mrb[0].mxu0 %v840
    %v978 = vpop.f32.mrb[0].mxu0
    %v979 = vadd.f32 0.0, %v978
    %v980 = vpop.f32.mrb[0].mxu0
    %981 = vdwg.mxu0
    %v983 = vrot.slane %v909, 4
    %v985 = vadd.f32 %v149, %v983
    %v986 = vxor.u32 %v985, 2147483648
    %v987 = vmul.f32 %v986, 1.442695
    %v988 = vpow.pop %v987
    %v989 = vadd.f32 %v988, 1.0
    %v990 = vrcp.pop %v989
    %v991 = vmul.f32 1.0, %v990
    %v993 = vrot.slane %v979, 4
    %v995 = vadd.f32 %v231, %v993
    %v996 = vxor.u32 %v995, 2147483648
    %v997 = vmul.f32 %v996, 1.442695
    %v998 = vpow.pop %v997
    %v999 = vadd.f32 %v998, 1.0
    %v1000 = vrcp.pop %v999
    %v1001 = vmul.f32 1.0, %v1000
    %1002 = vmatprep.subr.mxu0 0.0
    %1003 = vmatpush1.msra.mxu0 %v337
    %1004 = vmatprep.subr.mxu0 0.0
    %1005 = vmatpush1.msra.mxu0 %v338
    %1006 = vmatprep.subr.mxu0 0.0
    %1007 = vmatpush1.msra.mxu0 %v339
    %1008 = vmatprep.subr.mxu0 0.0
    %1009 = vmatpush1.msra.mxu0 %v340
    %1010 = vmatprep.subr.mxu0 0.0
    %1011 = vmatpush1.msra.mxu0 %v341
    %1012 = vmatprep.subr.mxu0 0.0
    %1013 = vmatpush1.msra.mxu0 %v342
    %1014 = vmatprep.subr.mxu0 0.0
    %1015 = vmatpush1.msra.mxu0 %v514
    %1016 = vmatprep.subr.mxu0 0.0
    %1017 = vmatpush1.msra.mxu0 0.0
    %1018 = vmatprep.subr.mxu0 0.0
    %1019 = vmatpush1.msra.mxu0 0.0
    %1020 = vmatprep.subr.mxu0 0.0
    %1021 = vmatpush1.msra.mxu0 0.0
    %1022 = vmatprep.subr.mxu0 0.0
    %1023 = vmatpush1.msra.mxu0 0.0
    %1024 = vmatprep.subr.mxu0 0.0
    %1025 = vmatpush1.msra.mxu0 0.0
    %1026 = vmatprep.subr.mxu0 0.0
    %1027 = vmatpush1.msra.mxu0 0.0
    %1028 = vmatprep.subr.mxu0 0.0
    %1029 = vmatpush1.msra.mxu0 0.0
    %1030 = vmatprep.subr.mxu0 0.0
    %1031 = vmatpush1.msra.mxu0 0.0
    %1032 = vmatprep.subr.mxu0 0.0
    %1033 = vmatpush1.msra.mxu0 0.0
    %1034 = vmatprep.subr.mxu0 0.0
    %1035 = vmatpush1.msra.mxu0 0.0
    %1036 = vmatprep.subr.mxu0 0.0
    %1037 = vmatpush1.msra.mxu0 0.0
    %1038 = vmatprep.subr.mxu0 0.0
    %1039 = vmatpush1.msra.mxu0 0.0
    %1040 = vmatprep.subr.mxu0 0.0
    %1041 = vmatpush1.msra.mxu0 0.0
    %1042 = vmatprep.subr.mxu0 0.0
    %1043 = vmatpush1.msra.mxu0 0.0
    %1044 = vmatprep.subr.mxu0 0.0
    %1045 = vmatpush1.msra.mxu0 0.0
    %1046 = vmatprep.subr.mxu0 0.0
    %1047 = vmatpush1.msra.mxu0 0.0
    %1048 = vmatprep.subr.mxu0 0.0
    %1049 = vmatpush1.msra.mxu0 0.0
    %1050 = vmatprep.subr.mxu0 0.0
    %1051 = vmatpush1.msra.mxu0 0.0
    %1052 = vmatprep.subr.mxu0 0.0
    %1053 = vmatpush1.msra.mxu0 0.0
    %1054 = vmatprep.subr.mxu0 0.0
    %1055 = vmatpush1.msra.mxu0 0.0
    %1056 = vmatprep.subr.mxu0 0.0
    %1057 = vmatpush1.msra.mxu0 0.0
    %1058 = vmatprep.subr.mxu0 0.0
    %1059 = vmatpush1.msra.mxu0 0.0
    %1060 = vmatprep.subr.mxu0 0.0
    %1061 = vmatpush1.msra.mxu0 0.0
    %1062 = vmatprep.subr.mxu0 0.0
    %1063 = vmatpush1.msra.mxu0 0.0
    %1064 = vmatprep.subr.mxu0 0.0
    %1065 = vmatpush1.msra.mxu0 0.0
    %1066 = vmatprep.mubr.f32.mxu0 0.0
    %1067 = vmatmul.mubr.f32.gmra.mrb[0].mxu0 %v840
    %v1068 = vpop.f32.mrb[0].mxu0
    %v1069 = vadd.f32 %v512, %v1068
    %v1070 = vpop.f32.mrb[0].mxu0
    %1071 = vdwg.mxu0
    %v1073 = vrot.slane %v1069, 4
    %v1075 = vmul.f32 %v991, %v1073
    %v1076 = vadd.f32 %v313, %v1075
    %v1077 = vtanh.pop %v1076
    %v1078 = vsub.f32 1.0, %v1001
    %v1079 = vmul.f32 %v1078, %v1077
    %v1080 = vrot.slane %v837, 6
    %v1082 = vmul.f32 %v1001, %v1080
    %v1083 = vadd.f32 %v1079, %v1082
    %v1085 = vrot.slane %v1083, 4
    %v1086 = vsel %vm344, %v1085, 0
    %1088 = vmatprep.subr.mxu0 0.0
    %1089 = vmatpush1.msra.mxu0 %v321
    %1090 = vmatprep.subr.mxu0 0.0
    %1091 = vmatpush1.msra.mxu0 %v322
    %1092 = vmatprep.subr.mxu0 0.0
    %1093 = vmatpush1.msra.mxu0 %v323
    %1094 = vmatprep.subr.mxu0 0.0
    %1095 = vmatpush1.msra.mxu0 %v324
    %1096 = vmatprep.subr.mxu0 0.0
    %1097 = vmatpush1.msra.mxu0 %v325
    %1098 = vmatprep.subr.mxu0 0.0
    %1099 = vmatpush1.msra.mxu0 %v326
    %1100 = vmatprep.subr.mxu0 0.0
    %1101 = vmatpush1.msra.mxu0 %v350
    %1102 = vmatprep.subr.mxu0 0.0
    %1103 = vmatpush1.msra.mxu0 0.0
    %1104 = vmatprep.subr.mxu0 0.0
    %1105 = vmatpush1.msra.mxu0 0.0
    %1106 = vmatprep.subr.mxu0 0.0
    %1107 = vmatpush1.msra.mxu0 0.0
    %1108 = vmatprep.subr.mxu0 0.0
    %1109 = vmatpush1.msra.mxu0 0.0
    %1110 = vmatprep.subr.mxu0 0.0
    %1111 = vmatpush1.msra.mxu0 0.0
    %1112 = vmatprep.subr.mxu0 0.0
    %1113 = vmatpush1.msra.mxu0 0.0
    %1114 = vmatprep.subr.mxu0 0.0
    %1115 = vmatpush1.msra.mxu0 0.0
    %1116 = vmatprep.subr.mxu0 0.0
    %1117 = vmatpush1.msra.mxu0 0.0
    %1118 = vmatprep.subr.mxu0 0.0
    %1119 = vmatpush1.msra.mxu0 0.0
    %1120 = vmatprep.subr.mxu0 0.0
    %1121 = vmatpush1.msra.mxu0 0.0
    %1122 = vmatprep.subr.mxu0 0.0
    %1123 = vmatpush1.msra.mxu0 0.0
    %1124 = vmatprep.subr.mxu0 0.0
    %1125 = vmatpush1.msra.mxu0 0.0
    %1126 = vmatprep.subr.mxu0 0.0
    %1127 = vmatpush1.msra.mxu0 0.0
    %1128 = vmatprep.subr.mxu0 0.0
    %1129 = vmatpush1.msra.mxu0 0.0
    %1130 = vmatprep.subr.mxu0 0.0
    %1131 = vmatpush1.msra.mxu0 0.0
    %1132 = vmatprep.subr.mxu0 0.0
    %1133 = vmatpush1.msra.mxu0 0.0
    %1134 = vmatprep.subr.mxu0 0.0
    %1135 = vmatpush1.msra.mxu0 0.0
    %1136 = vmatprep.subr.mxu0 0.0
    %1137 = vmatpush1.msra.mxu0 0.0
    %1138 = vmatprep.subr.mxu0 0.0
    %1139 = vmatpush1.msra.mxu0 0.0
    %1140 = vmatprep.subr.mxu0 0.0
    %1141 = vmatpush1.msra.mxu0 0.0
    %1142 = vmatprep.subr.mxu0 0.0
    %1143 = vmatpush1.msra.mxu0 0.0
    %1144 = vmatprep.subr.mxu0 0.0
    %1145 = vmatpush1.msra.mxu0 0.0
    %1146 = vmatprep.subr.mxu0 0.0
    %1147 = vmatpush1.msra.mxu0 0.0
    %1148 = vmatprep.subr.mxu0 0.0
    %1149 = vmatpush1.msra.mxu0 0.0
    %1150 = vmatprep.subr.mxu0 0.0
    %1151 = vmatpush1.msra.mxu0 0.0
    %1152 = vmatprep.mubr.f32.mxu0 0.0
    %1153 = vmatmul.mubr.f32.gmra.mrb[0].mxu0 %v1086
    %v1154 = vpop.f32.mrb[0].mxu0
    %v1155 = vadd.f32 0.0, %v1154
    %v1156 = vpop.f32.mrb[0].mxu0
    %1157 = vdwg.mxu0
    %1158 = vmatprep.subr.mxu0 0.0
    %1159 = vmatpush1.msra.mxu0 %v329
    %1160 = vmatprep.subr.mxu0 0.0
    %1161 = vmatpush1.msra.mxu0 %v330
    %1162 = vmatprep.subr.mxu0 0.0
    %1163 = vmatpush1.msra.mxu0 %v331
    %1164 = vmatprep.subr.mxu0 0.0
    %1165 = vmatpush1.msra.mxu0 %v332
    %1166 = vmatprep.subr.mxu0 0.0
    %1167 = vmatpush1.msra.mxu0 %v333
    %1168 = vmatprep.subr.mxu0 0.0
    %1169 = vmatpush1.msra.mxu0 %v334
    %1170 = vmatprep.subr.mxu0 0.0
    %1171 = vmatpush1.msra.mxu0 %v423
    %1172 = vmatprep.subr.mxu0 0.0
    %1173 = vmatpush1.msra.mxu0 0.0
    %1174 = vmatprep.subr.mxu0 0.0
    %1175 = vmatpush1.msra.mxu0 0.0
    %1176 = vmatprep.subr.mxu0 0.0
    %1177 = vmatpush1.msra.mxu0 0.0
    %1178 = vmatprep.subr.mxu0 0.0
    %1179 = vmatpush1.msra.mxu0 0.0
    %1180 = vmatprep.subr.mxu0 0.0
    %1181 = vmatpush1.msra.mxu0 0.0
    %1182 = vmatprep.subr.mxu0 0.0
    %1183 = vmatpush1.msra.mxu0 0.0
    %1184 = vmatprep.subr.mxu0 0.0
    %1185 = vmatpush1.msra.mxu0 0.0
    %1186 = vmatprep.subr.mxu0 0.0
    %1187 = vmatpush1.msra.mxu0 0.0
    %1188 = vmatprep.subr.mxu0 0.0
    %1189 = vmatpush1.msra.mxu0 0.0
    %1190 = vmatprep.subr.mxu0 0.0
    %1191 = vmatpush1.msra.mxu0 0.0
    %1192 = vmatprep.subr.mxu0 0.0
    %1193 = vmatpush1.msra.mxu0 0.0
    %1194 = vmatprep.subr.mxu0 0.0
    %1195 = vmatpush1.msra.mxu0 0.0
    %1196 = vmatprep.subr.mxu0 0.0
    %1197 = vmatpush1.msra.mxu0 0.0
    %1198 = vmatprep.subr.mxu0 0.0
    %1199 = vmatpush1.msra.mxu0 0.0
    %1200 = vmatprep.subr.mxu0 0.0
    %1201 = vmatpush1.msra.mxu0 0.0
    %1202 = vmatprep.subr.mxu0 0.0
    %1203 = vmatpush1.msra.mxu0 0.0
    %1204 = vmatprep.subr.mxu0 0.0
    %1205 = vmatpush1.msra.mxu0 0.0
    %1206 = vmatprep.subr.mxu0 0.0
    %1207 = vmatpush1.msra.mxu0 0.0
    %1208 = vmatprep.subr.mxu0 0.0
    %1209 = vmatpush1.msra.mxu0 0.0
    %1210 = vmatprep.subr.mxu0 0.0
    %1211 = vmatpush1.msra.mxu0 0.0
    %1212 = vmatprep.subr.mxu0 0.0
    %1213 = vmatpush1.msra.mxu0 0.0
    %1214 = vmatprep.subr.mxu0 0.0
    %1215 = vmatpush1.msra.mxu0 0.0
    %1216 = vmatprep.subr.mxu0 0.0
    %1217 = vmatpush1.msra.mxu0 0.0
    %1218 = vmatprep.subr.mxu0 0.0
    %1219 = vmatpush1.msra.mxu0 0.0
    %1220 = vmatprep.subr.mxu0 0.0
    %1221 = vmatpush1.msra.mxu0 0.0
    %1222 = vmatprep.mubr.f32.mxu0 0.0
    %1223 = vmatmul.mubr.f32.gmra.mrb[0].mxu0 %v1086
    %v1224 = vpop.f32.mrb[0].mxu0
    %v1225 = vadd.f32 0.0, %v1224
    %v1226 = vpop.f32.mrb[0].mxu0
    %1227 = vdwg.mxu0
    %v1229 = vrot.slane %v1155, 2
    %v1231 = vadd.f32 %v149, %v1229
    %v1232 = vxor.u32 %v1231, 2147483648
    %v1233 = vmul.f32 %v1232, 1.442695
    %v1234 = vpow.pop %v1233
    %v1235 = vadd.f32 %v1234, 1.0
    %v1236 = vrcp.pop %v1235
    %v1237 = vmul.f32 1.0, %v1236
    %v1239 = vrot.slane %v1225, 2
    %v1241 = vadd.f32 %v231, %v1239
    %v1242 = vxor.u32 %v1241, 2147483648
    %v1243 = vmul.f32 %v1242, 1.442695
    %v1244 = vpow.pop %v1243
    %v1245 = vadd.f32 %v1244, 1.0
    %v1246 = vrcp.pop %v1245
    %v1247 = vmul.f32 1.0, %v1246
    %1248 = vmatprep.subr.mxu0 0.0
    %1249 = vmatpush1.msra.mxu0 %v337
    %1250 = vmatprep.subr.mxu0 0.0
    %1251 = vmatpush1.msra.mxu0 %v338
    %1252 = vmatprep.subr.mxu0 0.0
    %1253 = vmatpush1.msra.mxu0 %v339
    %1254 = vmatprep.subr.mxu0 0.0
    %1255 = vmatpush1.msra.mxu0 %v340
    %1256 = vmatprep.subr.mxu0 0.0
    %1257 = vmatpush1.msra.mxu0 %v341
    %1258 = vmatprep.subr.mxu0 0.0
    %1259 = vmatpush1.msra.mxu0 %v342
    %1260 = vmatprep.subr.mxu0 0.0
    %1261 = vmatpush1.msra.mxu0 %v514
    %1262 = vmatprep.subr.mxu0 0.0
    %1263 = vmatpush1.msra.mxu0 0.0
    %1264 = vmatprep.subr.mxu0 0.0
    %1265 = vmatpush1.msra.mxu0 0.0
    %1266 = vmatprep.subr.mxu0 0.0
    %1267 = vmatpush1.msra.mxu0 0.0
    %1268 = vmatprep.subr.mxu0 0.0
    %1269 = vmatpush1.msra.mxu0 0.0
    %1270 = vmatprep.subr.mxu0 0.0
    %1271 = vmatpush1.msra.mxu0 0.0
    %1272 = vmatprep.subr.mxu0 0.0
    %1273 = vmatpush1.msra.mxu0 0.0
    %1274 = vmatprep.subr.mxu0 0.0
    %1275 = vmatpush1.msra.mxu0 0.0
    %1276 = vmatprep.subr.mxu0 0.0
    %1277 = vmatpush1.msra.mxu0 0.0
    %1278 = vmatprep.subr.mxu0 0.0
    %1279 = vmatpush1.msra.mxu0 0.0
    %1280 = vmatprep.subr.mxu0 0.0
    %1281 = vmatpush1.msra.mxu0 0.0
    %1282 = vmatprep.subr.mxu0 0.0
    %1283 = vmatpush1.msra.mxu0 0.0
    %1284 = vmatprep.subr.mxu0 0.0
    %1285 = vmatpush1.msra.mxu0 0.0
    %1286 = vmatprep.subr.mxu0 0.0
    %1287 = vmatpush1.msra.mxu0 0.0
    %1288 = vmatprep.subr.mxu0 0.0
    %1289 = vmatpush1.msra.mxu0 0.0
    %1290 = vmatprep.subr.mxu0 0.0
    %1291 = vmatpush1.msra.mxu0 0.0
    %1292 = vmatprep.subr.mxu0 0.0
    %1293 = vmatpush1.msra.mxu0 0.0
    %1294 = vmatprep.subr.mxu0 0.0
    %1295 = vmatpush1.msra.mxu0 0.0
    %1296 = vmatprep.subr.mxu0 0.0
    %1297 = vmatpush1.msra.mxu0 0.0
    %1298 = vmatprep.subr.mxu0 0.0
    %1299 = vmatpush1.msra.mxu0 0.0
    %1300 = vmatprep.subr.mxu0 0.0
    %1301 = vmatpush1.msra.mxu0 0.0
    %1302 = vmatprep.subr.mxu0 0.0
    %1303 = vmatpush1.msra.mxu0 0.0
    %1304 = vmatprep.subr.mxu0 0.0
    %1305 = vmatpush1.msra.mxu0 0.0
    %1306 = vmatprep.subr.mxu0 0.0
    %1307 = vmatpush1.msra.mxu0 0.0
    %1308 = vmatprep.subr.mxu0 0.0
    %1309 = vmatpush1.msra.mxu0 0.0
    %1310 = vmatprep.subr.mxu0 0.0
    %1311 = vmatpush1.msra.mxu0 0.0
    %1312 = vmatprep.mubr.f32.mxu0 0.0
    %1313 = vmatmul.mubr.f32.gmra.mrb[0].mxu0 %v1086
    %v1314 = vpop.f32.mrb[0].mxu0
    %v1315 = vadd.f32 %v512, %v1314
    %v1316 = vpop.f32.mrb[0].mxu0
    %1317 = vdwg.mxu0
    %v1319 = vrot.slane %v1315, 2
    %v1321 = vmul.f32 %v1237, %v1319
    %v1322 = vadd.f32 %v313, %v1321
    %v1323 = vtanh.pop %v1322
    %v1324 = vsub.f32 1.0, %v1247
    %v1325 = vmul.f32 %v1324, %v1323
    %v1326 = vrot.slane %v1083, 6
    %v1328 = vmul.f32 %v1247, %v1326
    %v1329 = vadd.f32 %v1325, %v1328
    %v1331 = vrot.slane %v1329, 6
    %v1332 = vsel %vm344, %v1331, 0
    %1334 = vmatprep.subr.mxu0 0.0
    %1335 = vmatpush1.msra.mxu0 %v321
    %1336 = vmatprep.subr.mxu0 0.0
    %1337 = vmatpush1.msra.mxu0 %v322
    %1338 = vmatprep.subr.mxu0 0.0
    %1339 = vmatpush1.msra.mxu0 %v323
    %1340 = vmatprep.subr.mxu0 0.0
    %1341 = vmatpush1.msra.mxu0 %v324
    %1342 = vmatprep.subr.mxu0 0.0
    %1343 = vmatpush1.msra.mxu0 %v325
    %1344 = vmatprep.subr.mxu0 0.0
    %1345 = vmatpush1.msra.mxu0 %v326
    %1346 = vmatprep.subr.mxu0 0.0
    %1347 = vmatpush1.msra.mxu0 %v350
    %1348 = vmatprep.subr.mxu0 0.0
    %1349 = vmatpush1.msra.mxu0 0.0
    %1350 = vmatprep.subr.mxu0 0.0
    %1351 = vmatpush1.msra.mxu0 0.0
    %1352 = vmatprep.subr.mxu0 0.0
    %1353 = vmatpush1.msra.mxu0 0.0
    %1354 = vmatprep.subr.mxu0 0.0
    %1355 = vmatpush1.msra.mxu0 0.0
    %1356 = vmatprep.subr.mxu0 0.0
    %1357 = vmatpush1.msra.mxu0 0.0
    %1358 = vmatprep.subr.mxu0 0.0
    %1359 = vmatpush1.msra.mxu0 0.0
    %1360 = vmatprep.subr.mxu0 0.0
    %1361 = vmatpush1.msra.mxu0 0.0
    %1362 = vmatprep.subr.mxu0 0.0
    %1363 = vmatpush1.msra.mxu0 0.0
    %1364 = vmatprep.subr.mxu0 0.0
    %1365 = vmatpush1.msra.mxu0 0.0
    %1366 = vmatprep.subr.mxu0 0.0
    %1367 = vmatpush1.msra.mxu0 0.0
    %1368 = vmatprep.subr.mxu0 0.0
    %1369 = vmatpush1.msra.mxu0 0.0
    %1370 = vmatprep.subr.mxu0 0.0
    %1371 = vmatpush1.msra.mxu0 0.0
    %1372 = vmatprep.subr.mxu0 0.0
    %1373 = vmatpush1.msra.mxu0 0.0
    %1374 = vmatprep.subr.mxu0 0.0
    %1375 = vmatpush1.msra.mxu0 0.0
    %1376 = vmatprep.subr.mxu0 0.0
    %1377 = vmatpush1.msra.mxu0 0.0
    %1378 = vmatprep.subr.mxu0 0.0
    %1379 = vmatpush1.msra.mxu0 0.0
    %1380 = vmatprep.subr.mxu0 0.0
    %1381 = vmatpush1.msra.mxu0 0.0
    %1382 = vmatprep.subr.mxu0 0.0
    %1383 = vmatpush1.msra.mxu0 0.0
    %1384 = vmatprep.subr.mxu0 0.0
    %1385 = vmatpush1.msra.mxu0 0.0
    %1386 = vmatprep.subr.mxu0 0.0
    %1387 = vmatpush1.msra.mxu0 0.0
    %1388 = vmatprep.subr.mxu0 0.0
    %1389 = vmatpush1.msra.mxu0 0.0
    %1390 = vmatprep.subr.mxu0 0.0
    %1391 = vmatpush1.msra.mxu0 0.0
    %1392 = vmatprep.subr.mxu0 0.0
    %1393 = vmatpush1.msra.mxu0 0.0
    %1394 = vmatprep.subr.mxu0 0.0
    %1395 = vmatpush1.msra.mxu0 0.0
    %1396 = vmatprep.subr.mxu0 0.0
    %1397 = vmatpush1.msra.mxu0 0.0
    %1398 = vmatprep.mubr.f32.mxu0 0.0
    %1399 = vmatmul.mubr.f32.gmra.mrb[0].mxu0 %v1332
    %v1400 = vpop.f32.mrb[0].mxu0
    %v1401 = vadd.f32 0.0, %v1400
    %v1402 = vpop.f32.mrb[0].mxu0
    %1403 = vdwg.mxu0
    %1404 = vmatprep.subr.mxu0 0.0
    %1405 = vmatpush1.msra.mxu0 %v329
    %1406 = vmatprep.subr.mxu0 0.0
    %1407 = vmatpush1.msra.mxu0 %v330
    %1408 = vmatprep.subr.mxu0 0.0
    %1409 = vmatpush1.msra.mxu0 %v331
    %1410 = vmatprep.subr.mxu0 0.0
    %1411 = vmatpush1.msra.mxu0 %v332
    %1412 = vmatprep.subr.mxu0 0.0
    %1413 = vmatpush1.msra.mxu0 %v333
    %1414 = vmatprep.subr.mxu0 0.0
    %1415 = vmatpush1.msra.mxu0 %v334
    %1416 = vmatprep.subr.mxu0 0.0
    %1417 = vmatpush1.msra.mxu0 %v423
    %1418 = vmatprep.subr.mxu0 0.0
    %1419 = vmatpush1.msra.mxu0 0.0
    %1420 = vmatprep.subr.mxu0 0.0
    %1421 = vmatpush1.msra.mxu0 0.0
    %1422 = vmatprep.subr.mxu0 0.0
    %1423 = vmatpush1.msra.mxu0 0.0
    %1424 = vmatprep.subr.mxu0 0.0
    %1425 = vmatpush1.msra.mxu0 0.0
    %1426 = vmatprep.subr.mxu0 0.0
    %1427 = vmatpush1.msra.mxu0 0.0
    %1428 = vmatprep.subr.mxu0 0.0
    %1429 = vmatpush1.msra.mxu0 0.0
    %1430 = vmatprep.subr.mxu0 0.0
    %1431 = vmatpush1.msra.mxu0 0.0
    %1432 = vmatprep.subr.mxu0 0.0
    %1433 = vmatpush1.msra.mxu0 0.0
    %1434 = vmatprep.subr.mxu0 0.0
    %1435 = vmatpush1.msra.mxu0 0.0
    %1436 = vmatprep.subr.mxu0 0.0
    %1437 = vmatpush1.msra.mxu0 0.0
    %1438 = vmatprep.subr.mxu0 0.0
    %1439 = vmatpush1.msra.mxu0 0.0
    %1440 = vmatprep.subr.mxu0 0.0
    %1441 = vmatpush1.msra.mxu0 0.0
    %1442 = vmatprep.subr.mxu0 0.0
    %1443 = vmatpush1.msra.mxu0 0.0
    %1444 = vmatprep.subr.mxu0 0.0
    %1445 = vmatpush1.msra.mxu0 0.0
    %1446 = vmatprep.subr.mxu0 0.0
    %1447 = vmatpush1.msra.mxu0 0.0
    %1448 = vmatprep.subr.mxu0 0.0
    %1449 = vmatpush1.msra.mxu0 0.0
    %1450 = vmatprep.subr.mxu0 0.0
    %1451 = vmatpush1.msra.mxu0 0.0
    %1452 = vmatprep.subr.mxu0 0.0
    %1453 = vmatpush1.msra.mxu0 0.0
    %1454 = vmatprep.subr.mxu0 0.0
    %1455 = vmatpush1.msra.mxu0 0.0
    %1456 = vmatprep.subr.mxu0 0.0
    %1457 = vmatpush1.msra.mxu0 0.0
    %1458 = vmatprep.subr.mxu0 0.0
    %1459 = vmatpush1.msra.mxu0 0.0
    %1460 = vmatprep.subr.mxu0 0.0
    %1461 = vmatpush1.msra.mxu0 0.0
    %1462 = vmatprep.subr.mxu0 0.0
    %1463 = vmatpush1.msra.mxu0 0.0
    %1464 = vmatprep.subr.mxu0 0.0
    %1465 = vmatpush1.msra.mxu0 0.0
    %1466 = vmatprep.subr.mxu0 0.0
    %1467 = vmatpush1.msra.mxu0 0.0
    %1468 = vmatprep.mubr.f32.mxu0 0.0
    %1469 = vmatmul.mubr.f32.gmra.mrb[0].mxu0 %v1332
    %v1470 = vpop.f32.mrb[0].mxu0
    %v1471 = vadd.f32 0.0, %v1470
    %v1472 = vpop.f32.mrb[0].mxu0
    %1473 = vdwg.mxu0
    %v1474 = vadd.f32 %v154, %v1401
    %v1475 = vxor.u32 %v1474, 2147483648
    %v1476 = vmul.f32 %v1475, 1.442695
    %v1477 = vpow.pop %v1476
    %v1478 = vadd.f32 %v1477, 1.0
    %v1479 = vrcp.pop %v1478
    %v1480 = vmul.f32 1.0, %v1479
    %v1481 = vadd.f32 %v236, %v1471
    %v1482 = vxor.u32 %v1481, 2147483648
    %v1483 = vmul.f32 %v1482, 1.442695
    %v1484 = vpow.pop %v1483
    %v1485 = vadd.f32 %v1484, 1.0
    %v1486 = vrcp.pop %v1485
    %v1487 = vmul.f32 1.0, %v1486
    %1488 = vmatprep.subr.mxu0 0.0
    %1489 = vmatpush1.msra.mxu0 %v337
    %1490 = vmatprep.subr.mxu0 0.0
    %1491 = vmatpush1.msra.mxu0 %v338
    %1492 = vmatprep.subr.mxu0 0.0
    %1493 = vmatpush1.msra.mxu0 %v339
    %1494 = vmatprep.subr.mxu0 0.0
    %1495 = vmatpush1.msra.mxu0 %v340
    %1496 = vmatprep.subr.mxu0 0.0
    %1497 = vmatpush1.msra.mxu0 %v341
    %1498 = vmatprep.subr.mxu0 0.0
    %1499 = vmatpush1.msra.mxu0 %v342
    %1500 = vmatprep.subr.mxu0 0.0
    %1501 = vmatpush1.msra.mxu0 %v514
    %1502 = vmatprep.subr.mxu0 0.0
    %1503 = vmatpush1.msra.mxu0 0.0
    %1504 = vmatprep.subr.mxu0 0.0
    %1505 = vmatpush1.msra.mxu0 0.0
    %1506 = vmatprep.subr.mxu0 0.0
    %1507 = vmatpush1.msra.mxu0 0.0
    %1508 = vmatprep.subr.mxu0 0.0
    %1509 = vmatpush1.msra.mxu0 0.0
    %1510 = vmatprep.subr.mxu0 0.0
    %1511 = vmatpush1.msra.mxu0 0.0
    %1512 = vmatprep.subr.mxu0 0.0
    %1513 = vmatpush1.msra.mxu0 0.0
    %1514 = vmatprep.subr.mxu0 0.0
    %1515 = vmatpush1.msra.mxu0 0.0
    %1516 = vmatprep.subr.mxu0 0.0
    %1517 = vmatpush1.msra.mxu0 0.0
    %1518 = vmatprep.subr.mxu0 0.0
    %1519 = vmatpush1.msra.mxu0 0.0
    %1520 = vmatprep.subr.mxu0 0.0
    %1521 = vmatpush1.msra.mxu0 0.0
    %1522 = vmatprep.subr.mxu0 0.0
    %1523 = vmatpush1.msra.mxu0 0.0
    %1524 = vmatprep.subr.mxu0 0.0
    %1525 = vmatpush1.msra.mxu0 0.0
    %1526 = vmatprep.subr.mxu0 0.0
    %1527 = vmatpush1.msra.mxu0 0.0
    %1528 = vmatprep.subr.mxu0 0.0
    %1529 = vmatpush1.msra.mxu0 0.0
    %1530 = vmatprep.subr.mxu0 0.0
    %1531 = vmatpush1.msra.mxu0 0.0
    %1532 = vmatprep.subr.mxu0 0.0
    %1533 = vmatpush1.msra.mxu0 0.0
    %1534 = vmatprep.subr.mxu0 0.0
    %1535 = vmatpush1.msra.mxu0 0.0
    %1536 = vmatprep.subr.mxu0 0.0
    %1537 = vmatpush1.msra.mxu0 0.0
    %1538 = vmatprep.subr.mxu0 0.0
    %1539 = vmatpush1.msra.mxu0 0.0
    %1540 = vmatprep.subr.mxu0 0.0
    %1541 = vmatpush1.msra.mxu0 0.0
    %1542 = vmatprep.subr.mxu0 0.0
    %1543 = vmatpush1.msra.mxu0 0.0
    %1544 = vmatprep.subr.mxu0 0.0
    %1545 = vmatpush1.msra.mxu0 0.0
    %1546 = vmatprep.subr.mxu0 0.0
    %1547 = vmatpush1.msra.mxu0 0.0
    %1548 = vmatprep.subr.mxu0 0.0
    %1549 = vmatpush1.msra.mxu0 0.0
    %1550 = vmatprep.subr.mxu0 0.0
    %1551 = vmatpush1.msra.mxu0 0.0
    %1552 = vmatprep.mubr.f32.mxu0 0.0
    %1553 = vmatmul.mubr.f32.gmra.mrb[0].mxu0 %v1332
    %v1554 = vpop.f32.mrb[0].mxu0
    %v1555 = vadd.f32 %v512, %v1554
    %v1556 = vpop.f32.mrb[0].mxu0
    %1557 = vdwg.mxu0
    %v1558 = vmul.f32 %v1480, %v1555
    %v1559 = vadd.f32 %v318, %v1558
    %v1560 = vtanh.pop %v1559
    %v1561 = vsub.f32 1.0, %v1487
    %v1562 = vmul.f32 %v1561, %v1560
    %v1564 = vmul.f32 %v1487, %v1331
    %v1565 = vadd.f32 %v1562, %v1564
    %v1567 = vsel %vm344, %v1565, 0
    %1569 = vmatprep.subr.mxu0 0.0
    %1570 = vmatpush1.msra.mxu0 %v321
    %1571 = vmatprep.subr.mxu0 0.0
    %1572 = vmatpush1.msra.mxu0 %v322
    %1573 = vmatprep.subr.mxu0 0.0
    %1574 = vmatpush1.msra.mxu0 %v323
    %1575 = vmatprep.subr.mxu0 0.0
    %1576 = vmatpush1.msra.mxu0 %v324
    %1577 = vmatprep.subr.mxu0 0.0
    %1578 = vmatpush1.msra.mxu0 %v325
    %1579 = vmatprep.subr.mxu0 0.0
    %1580 = vmatpush1.msra.mxu0 %v326
    %1581 = vmatprep.subr.mxu0 0.0
    %1582 = vmatpush1.msra.mxu0 %v350
    %1583 = vmatprep.subr.mxu0 0.0
    %1584 = vmatpush1.msra.mxu0 0.0
    %1585 = vmatprep.subr.mxu0 0.0
    %1586 = vmatpush1.msra.mxu0 0.0
    %1587 = vmatprep.subr.mxu0 0.0
    %1588 = vmatpush1.msra.mxu0 0.0
    %1589 = vmatprep.subr.mxu0 0.0
    %1590 = vmatpush1.msra.mxu0 0.0
    %1591 = vmatprep.subr.mxu0 0.0
    %1592 = vmatpush1.msra.mxu0 0.0
    %1593 = vmatprep.subr.mxu0 0.0
    %1594 = vmatpush1.msra.mxu0 0.0
    %1595 = vmatprep.subr.mxu0 0.0
    %1596 = vmatpush1.msra.mxu0 0.0
    %1597 = vmatprep.subr.mxu0 0.0
    %1598 = vmatpush1.msra.mxu0 0.0
    %1599 = vmatprep.subr.mxu0 0.0
    %1600 = vmatpush1.msra.mxu0 0.0
    %1601 = vmatprep.subr.mxu0 0.0
    %1602 = vmatpush1.msra.mxu0 0.0
    %1603 = vmatprep.subr.mxu0 0.0
    %1604 = vmatpush1.msra.mxu0 0.0
    %1605 = vmatprep.subr.mxu0 0.0
    %1606 = vmatpush1.msra.mxu0 0.0
    %1607 = vmatprep.subr.mxu0 0.0
    %1608 = vmatpush1.msra.mxu0 0.0
    %1609 = vmatprep.subr.mxu0 0.0
    %1610 = vmatpush1.msra.mxu0 0.0
    %1611 = vmatprep.subr.mxu0 0.0
    %1612 = vmatpush1.msra.mxu0 0.0
    %1613 = vmatprep.subr.mxu0 0.0
    %1614 = vmatpush1.msra.mxu0 0.0
    %1615 = vmatprep.subr.mxu0 0.0
    %1616 = vmatpush1.msra.mxu0 0.0
    %1617 = vmatprep.subr.mxu0 0.0
    %1618 = vmatpush1.msra.mxu0 0.0
    %1619 = vmatprep.subr.mxu0 0.0
    %1620 = vmatpush1.msra.mxu0 0.0
    %1621 = vmatprep.subr.mxu0 0.0
    %1622 = vmatpush1.msra.mxu0 0.0
    %1623 = vmatprep.subr.mxu0 0.0
    %1624 = vmatpush1.msra.mxu0 0.0
    %1625 = vmatprep.subr.mxu0 0.0
    %1626 = vmatpush1.msra.mxu0 0.0
    %1627 = vmatprep.subr.mxu0 0.0
    %1628 = vmatpush1.msra.mxu0 0.0
    %1629 = vmatprep.subr.mxu0 0.0
    %1630 = vmatpush1.msra.mxu0 0.0
    %1631 = vmatprep.subr.mxu0 0.0
    %1632 = vmatpush1.msra.mxu0 0.0
    %1633 = vmatprep.mubr.f32.mxu0 0.0
    %1634 = vmatmul.mubr.f32.gmra.mrb[0].mxu0 %v1567
    %v1635 = vpop.f32.mrb[0].mxu0
    %v1636 = vadd.f32 0.0, %v1635
    %v1637 = vpop.f32.mrb[0].mxu0
    %1638 = vdwg.mxu0
    %1639 = vmatprep.subr.mxu0 0.0
    %1640 = vmatpush1.msra.mxu0 %v329
    %1641 = vmatprep.subr.mxu0 0.0
    %1642 = vmatpush1.msra.mxu0 %v330
    %1643 = vmatprep.subr.mxu0 0.0
    %1644 = vmatpush1.msra.mxu0 %v331
    %1645 = vmatprep.subr.mxu0 0.0
    %1646 = vmatpush1.msra.mxu0 %v332
    %1647 = vmatprep.subr.mxu0 0.0
    %1648 = vmatpush1.msra.mxu0 %v333
    %1649 = vmatprep.subr.mxu0 0.0
    %1650 = vmatpush1.msra.mxu0 %v334
    %1651 = vmatprep.subr.mxu0 0.0
    %1652 = vmatpush1.msra.mxu0 %v423
    %1653 = vmatprep.subr.mxu0 0.0
    %1654 = vmatpush1.msra.mxu0 0.0
    %1655 = vmatprep.subr.mxu0 0.0
    %1656 = vmatpush1.msra.mxu0 0.0
    %1657 = vmatprep.subr.mxu0 0.0
    %1658 = vmatpush1.msra.mxu0 0.0
    %1659 = vmatprep.subr.mxu0 0.0
    %1660 = vmatpush1.msra.mxu0 0.0
    %1661 = vmatprep.subr.mxu0 0.0
    %1662 = vmatpush1.msra.mxu0 0.0
    %1663 = vmatprep.subr.mxu0 0.0
    %1664 = vmatpush1.msra.mxu0 0.0
    %1665 = vmatprep.subr.mxu0 0.0
    %1666 = vmatpush1.msra.mxu0 0.0
    %1667 = vmatprep.subr.mxu0 0.0
    %1668 = vmatpush1.msra.mxu0 0.0
    %1669 = vmatprep.subr.mxu0 0.0
    %1670 = vmatpush1.msra.mxu0 0.0
    %1671 = vmatprep.subr.mxu0 0.0
    %1672 = vmatpush1.msra.mxu0 0.0
    %1673 = vmatprep.subr.mxu0 0.0
    %1674 = vmatpush1.msra.mxu0 0.0
    %1675 = vmatprep.subr.mxu0 0.0
    %1676 = vmatpush1.msra.mxu0 0.0
    %1677 = vmatprep.subr.mxu0 0.0
    %1678 = vmatpush1.msra.mxu0 0.0
    %1679 = vmatprep.subr.mxu0 0.0
    %1680 = vmatpush1.msra.mxu0 0.0
    %1681 = vmatprep.subr.mxu0 0.0
    %1682 = vmatpush1.msra.mxu0 0.0
    %1683 = vmatprep.subr.mxu0 0.0
    %1684 = vmatpush1.msra.mxu0 0.0
    %1685 = vmatprep.subr.mxu0 0.0
    %1686 = vmatpush1.msra.mxu0 0.0
    %1687 = vmatprep.subr.mxu0 0.0
    %1688 = vmatpush1.msra.mxu0 0.0
    %1689 = vmatprep.subr.mxu0 0.0
    %1690 = vmatpush1.msra.mxu0 0.0
    %1691 = vmatprep.subr.mxu0 0.0
    %1692 = vmatpush1.msra.mxu0 0.0
    %1693 = vmatprep.subr.mxu0 0.0
    %1694 = vmatpush1.msra.mxu0 0.0
    %1695 = vmatprep.subr.mxu0 0.0
    %1696 = vmatpush1.msra.mxu0 0.0
    %1697 = vmatprep.subr.mxu0 0.0
    %1698 = vmatpush1.msra.mxu0 0.0
    %1699 = vmatprep.subr.mxu0 0.0
    %1700 = vmatpush1.msra.mxu0 0.0
    %1701 = vmatprep.subr.mxu0 0.0
    %1702 = vmatpush1.msra.mxu0 0.0
    %1703 = vmatprep.mubr.f32.mxu0 0.0
    %1704 = vmatmul.mubr.f32.gmra.mrb[0].mxu0 %v1567
    %v1705 = vpop.f32.mrb[0].mxu0
    %v1706 = vadd.f32 0.0, %v1705
    %v1707 = vpop.f32.mrb[0].mxu0
    %1708 = vdwg.mxu0
    %v1710 = vrot.slane %v1636, 6
    %v1712 = vadd.f32 %v154, %v1710
    %v1713 = vxor.u32 %v1712, 2147483648
    %v1714 = vmul.f32 %v1713, 1.442695
    %v1715 = vpow.pop %v1714
    %v1716 = vadd.f32 %v1715, 1.0
    %v1717 = vrcp.pop %v1716
    %v1718 = vmul.f32 1.0, %v1717
    %v1720 = vrot.slane %v1706, 6
    %v1722 = vadd.f32 %v236, %v1720
    %v1723 = vxor.u32 %v1722, 2147483648
    %v1724 = vmul.f32 %v1723, 1.442695
    %v1725 = vpow.pop %v1724
    %v1726 = vadd.f32 %v1725, 1.0
    %v1727 = vrcp.pop %v1726
    %v1728 = vmul.f32 1.0, %v1727
    %1729 = vmatprep.subr.mxu0 0.0
    %1730 = vmatpush1.msra.mxu0 %v337
    %1731 = vmatprep.subr.mxu0 0.0
    %1732 = vmatpush1.msra.mxu0 %v338
    %1733 = vmatprep.subr.mxu0 0.0
    %1734 = vmatpush1.msra.mxu0 %v339
    %1735 = vmatprep.subr.mxu0 0.0
    %1736 = vmatpush1.msra.mxu0 %v340
    %1737 = vmatprep.subr.mxu0 0.0
    %1738 = vmatpush1.msra.mxu0 %v341
    %1739 = vmatprep.subr.mxu0 0.0
    %1740 = vmatpush1.msra.mxu0 %v342
    %1741 = vmatprep.subr.mxu0 0.0
    %1742 = vmatpush1.msra.mxu0 %v514
    %1743 = vmatprep.subr.mxu0 0.0
    %1744 = vmatpush1.msra.mxu0 0.0
    %1745 = vmatprep.subr.mxu0 0.0
    %1746 = vmatpush1.msra.mxu0 0.0
    %1747 = vmatprep.subr.mxu0 0.0
    %1748 = vmatpush1.msra.mxu0 0.0
    %1749 = vmatprep.subr.mxu0 0.0
    %1750 = vmatpush1.msra.mxu0 0.0
    %1751 = vmatprep.subr.mxu0 0.0
    %1752 = vmatpush1.msra.mxu0 0.0
    %1753 = vmatprep.subr.mxu0 0.0
    %1754 = vmatpush1.msra.mxu0 0.0
    %1755 = vmatprep.subr.mxu0 0.0
    %1756 = vmatpush1.msra.mxu0 0.0
    %1757 = vmatprep.subr.mxu0 0.0
    %1758 = vmatpush1.msra.mxu0 0.0
    %1759 = vmatprep.subr.mxu0 0.0
    %1760 = vmatpush1.msra.mxu0 0.0
    %1761 = vmatprep.subr.mxu0 0.0
    %1762 = vmatpush1.msra.mxu0 0.0
    %1763 = vmatprep.subr.mxu0 0.0
    %1764 = vmatpush1.msra.mxu0 0.0
    %1765 = vmatprep.subr.mxu0 0.0
    %1766 = vmatpush1.msra.mxu0 0.0
    %1767 = vmatprep.subr.mxu0 0.0
    %1768 = vmatpush1.msra.mxu0 0.0
    %1769 = vmatprep.subr.mxu0 0.0
    %1770 = vmatpush1.msra.mxu0 0.0
    %1771 = vmatprep.subr.mxu0 0.0
    %1772 = vmatpush1.msra.mxu0 0.0
    %1773 = vmatprep.subr.mxu0 0.0
    %1774 = vmatpush1.msra.mxu0 0.0
    %1775 = vmatprep.subr.mxu0 0.0
    %1776 = vmatpush1.msra.mxu0 0.0
    %1777 = vmatprep.subr.mxu0 0.0
    %1778 = vmatpush1.msra.mxu0 0.0
    %1779 = vmatprep.subr.mxu0 0.0
    %1780 = vmatpush1.msra.mxu0 0.0
    %1781 = vmatprep.subr.mxu0 0.0
    %1782 = vmatpush1.msra.mxu0 0.0
    %1783 = vmatprep.subr.mxu0 0.0
    %1784 = vmatpush1.msra.mxu0 0.0
    %1785 = vmatprep.subr.mxu0 0.0
    %1786 = vmatpush1.msra.mxu0 0.0
    %1787 = vmatprep.subr.mxu0 0.0
    %1788 = vmatpush1.msra.mxu0 0.0
    %1789 = vmatprep.subr.mxu0 0.0
    %1790 = vmatpush1.msra.mxu0 0.0
    %1791 = vmatprep.subr.mxu0 0.0
    %1792 = vmatpush1.msra.mxu0 0.0
    %1793 = vmatprep.mubr.f32.mxu0 0.0
    %1794 = vmatmul.mubr.f32.gmra.mrb[0].mxu0 %v1567
    %v1795 = vpop.f32.mrb[0].mxu0
    %v1796 = vadd.f32 %v512, %v1795
    %v1797 = vpop.f32.mrb[0].mxu0
    %1798 = vdwg.mxu0
    %v1800 = vrot.slane %v1796, 6
    %v1802 = vmul.f32 %v1718, %v1800
    %v1803 = vadd.f32 %v318, %v1802
    %v1804 = vtanh.pop %v1803
    %v1805 = vsub.f32 1.0, %v1728
    %v1806 = vmul.f32 %v1805, %v1804
    %v1807 = vrot.slane %v1565, 6
    %v1809 = vmul.f32 %v1728, %v1807
    %v1810 = vadd.f32 %v1806, %v1809
    %v1812 = vrot.slane %v1810, 2
    %v1813 = vsel %vm344, %v1812, 0
    %1815 = vmatprep.subr.mxu0 0.0
    %1816 = vmatpush1.msra.mxu0 %v321
    %1817 = vmatprep.subr.mxu0 0.0
    %1818 = vmatpush1.msra.mxu0 %v322
    %1819 = vmatprep.subr.mxu0 0.0
    %1820 = vmatpush1.msra.mxu0 %v323
    %1821 = vmatprep.subr.mxu0 0.0
    %1822 = vmatpush1.msra.mxu0 %v324
    %1823 = vmatprep.subr.mxu0 0.0
    %1824 = vmatpush1.msra.mxu0 %v325
    %1825 = vmatprep.subr.mxu0 0.0
    %1826 = vmatpush1.msra.mxu0 %v326
    %1827 = vmatprep.subr.mxu0 0.0
    %1828 = vmatpush1.msra.mxu0 %v350
    %1829 = vmatprep.subr.mxu0 0.0
    %1830 = vmatpush1.msra.mxu0 0.0
    %1831 = vmatprep.subr.mxu0 0.0
    %1832 = vmatpush1.msra.mxu0 0.0
    %1833 = vmatprep.subr.mxu0 0.0
    %1834 = vmatpush1.msra.mxu0 0.0
    %1835 = vmatprep.subr.mxu0 0.0
    %1836 = vmatpush1.msra.mxu0 0.0
    %1837 = vmatprep.subr.mxu0 0.0
    %1838 = vmatpush1.msra.mxu0 0.0
    %1839 = vmatprep.subr.mxu0 0.0
    %1840 = vmatpush1.msra.mxu0 0.0
    %1841 = vmatprep.subr.mxu0 0.0
    %1842 = vmatpush1.msra.mxu0 0.0
    %1843 = vmatprep.subr.mxu0 0.0
    %1844 = vmatpush1.msra.mxu0 0.0
    %1845 = vmatprep.subr.mxu0 0.0
    %1846 = vmatpush1.msra.mxu0 0.0
    %1847 = vmatprep.subr.mxu0 0.0
    %1848 = vmatpush1.msra.mxu0 0.0
    %1849 = vmatprep.subr.mxu0 0.0
    %1850 = vmatpush1.msra.mxu0 0.0
    %1851 = vmatprep.subr.mxu0 0.0
    %1852 = vmatpush1.msra.mxu0 0.0
    %1853 = vmatprep.subr.mxu0 0.0
    %1854 = vmatpush1.msra.mxu0 0.0
    %1855 = vmatprep.subr.mxu0 0.0
    %1856 = vmatpush1.msra.mxu0 0.0
    %1857 = vmatprep.subr.mxu0 0.0
    %1858 = vmatpush1.msra.mxu0 0.0
    %1859 = vmatprep.subr.mxu0 0.0
    %1860 = vmatpush1.msra.mxu0 0.0
    %1861 = vmatprep.subr.mxu0 0.0
    %1862 = vmatpush1.msra.mxu0 0.0
    %1863 = vmatprep.subr.mxu0 0.0
    %1864 = vmatpush1.msra.mxu0 0.0
    %1865 = vmatprep.subr.mxu0 0.0
    %1866 = vmatpush1.msra.mxu0 0.0
    %1867 = vmatprep.subr.mxu0 0.0
    %1868 = vmatpush1.msra.mxu0 0.0
    %1869 = vmatprep.subr.mxu0 0.0
    %1870 = vmatpush1.msra.mxu0 0.0
    %1871 = vmatprep.subr.mxu0 0.0
    %1872 = vmatpush1.msra.mxu0 0.0
    %1873 = vmatprep.subr.mxu0 0.0
    %1874 = vmatpush1.msra.mxu0 0.0
    %1875 = vmatprep.subr.mxu0 0.0
    %1876 = vmatpush1.msra.mxu0 0.0
    %1877 = vmatprep.subr.mxu0 0.0
    %1878 = vmatpush1.msra.mxu0 0.0
    %1879 = vmatprep.mubr.f32.mxu0 0.0
    %1880 = vmatmul.mubr.f32.gmra.mrb[0].mxu0 %v1813
    %v1881 = vpop.f32.mrb[0].mxu0
    %v1882 = vadd.f32 0.0, %v1881
    %v1883 = vpop.f32.mrb[0].mxu0
    %1884 = vdwg.mxu0
    %1885 = vmatprep.subr.mxu0 0.0
    %1886 = vmatpush1.msra.mxu0 %v329
    %1887 = vmatprep.subr.mxu0 0.0
    %1888 = vmatpush1.msra.mxu0 %v330
    %1889 = vmatprep.subr.mxu0 0.0
    %1890 = vmatpush1.msra.mxu0 %v331
    %1891 = vmatprep.subr.mxu0 0.0
    %1892 = vmatpush1.msra.mxu0 %v332
    %1893 = vmatprep.subr.mxu0 0.0
    %1894 = vmatpush1.msra.mxu0 %v333
    %1895 = vmatprep.subr.mxu0 0.0
    %1896 = vmatpush1.msra.mxu0 %v334
    %1897 = vmatprep.subr.mxu0 0.0
    %1898 = vmatpush1.msra.mxu0 %v423
    %1899 = vmatprep.subr.mxu0 0.0
    %1900 = vmatpush1.msra.mxu0 0.0
    %1901 = vmatprep.subr.mxu0 0.0
    %1902 = vmatpush1.msra.mxu0 0.0
    %1903 = vmatprep.subr.mxu0 0.0
    %1904 = vmatpush1.msra.mxu0 0.0
    %1905 = vmatprep.subr.mxu0 0.0
    %1906 = vmatpush1.msra.mxu0 0.0
    %1907 = vmatprep.subr.mxu0 0.0
    %1908 = vmatpush1.msra.mxu0 0.0
    %1909 = vmatprep.subr.mxu0 0.0
    %1910 = vmatpush1.msra.mxu0 0.0
    %1911 = vmatprep.subr.mxu0 0.0
    %1912 = vmatpush1.msra.mxu0 0.0
    %1913 = vmatprep.subr.mxu0 0.0
    %1914 = vmatpush1.msra.mxu0 0.0
    %1915 = vmatprep.subr.mxu0 0.0
    %1916 = vmatpush1.msra.mxu0 0.0
    %1917 = vmatprep.subr.mxu0 0.0
    %1918 = vmatpush1.msra.mxu0 0.0
    %1919 = vmatprep.subr.mxu0 0.0
    %1920 = vmatpush1.msra.mxu0 0.0
    %1921 = vmatprep.subr.mxu0 0.0
    %1922 = vmatpush1.msra.mxu0 0.0
    %1923 = vmatprep.subr.mxu0 0.0
    %1924 = vmatpush1.msra.mxu0 0.0
    %1925 = vmatprep.subr.mxu0 0.0
    %1926 = vmatpush1.msra.mxu0 0.0
    %1927 = vmatprep.subr.mxu0 0.0
    %1928 = vmatpush1.msra.mxu0 0.0
    %1929 = vmatprep.subr.mxu0 0.0
    %1930 = vmatpush1.msra.mxu0 0.0
    %1931 = vmatprep.subr.mxu0 0.0
    %1932 = vmatpush1.msra.mxu0 0.0
    %1933 = vmatprep.subr.mxu0 0.0
    %1934 = vmatpush1.msra.mxu0 0.0
    %1935 = vmatprep.subr.mxu0 0.0
    %1936 = vmatpush1.msra.mxu0 0.0
    %1937 = vmatprep.subr.mxu0 0.0
    %1938 = vmatpush1.msra.mxu0 0.0
    %1939 = vmatprep.subr.mxu0 0.0
    %1940 = vmatpush1.msra.mxu0 0.0
    %1941 = vmatprep.subr.mxu0 0.0
    %1942 = vmatpush1.msra.mxu0 0.0
    %1943 = vmatprep.subr.mxu0 0.0
    %1944 = vmatpush1.msra.mxu0 0.0
    %1945 = vmatprep.subr.mxu0 0.0
    %1946 = vmatpush1.msra.mxu0 0.0
    %1947 = vmatprep.subr.mxu0 0.0
    %1948 = vmatpush1.msra.mxu0 0.0
    %1949 = vmatprep.mubr.f32.mxu0 0.0
    %1950 = vmatmul.mubr.f32.gmra.mrb[0].mxu0 %v1813
    %v1951 = vpop.f32.mrb[0].mxu0
    %v1952 = vadd.f32 0.0, %v1951
    %v1953 = vpop.f32.mrb[0].mxu0
    %1954 = vdwg.mxu0
    %v1956 = vrot.slane %v1882, 4
    %v1958 = vadd.f32 %v154, %v1956
    %v1959 = vxor.u32 %v1958, 2147483648
    %v1960 = vmul.f32 %v1959, 1.442695
    %v1961 = vpow.pop %v1960
    %v1962 = vadd.f32 %v1961, 1.0
    %v1963 = vrcp.pop %v1962
    %v1964 = vmul.f32 1.0, %v1963
    %v1966 = vrot.slane %v1952, 4
    %v1968 = vadd.f32 %v236, %v1966
    %v1969 = vxor.u32 %v1968, 2147483648
    %v1970 = vmul.f32 %v1969, 1.442695
    %v1971 = vpow.pop %v1970
    %v1972 = vadd.f32 %v1971, 1.0
    %v1973 = vrcp.pop %v1972
    %v1974 = vmul.f32 1.0, %v1973
    %1975 = vmatprep.subr.mxu0 0.0
    %1976 = vmatpush1.msra.mxu0 %v337
    %1977 = vmatprep.subr.mxu0 0.0
    %1978 = vmatpush1.msra.mxu0 %v338
    %1979 = vmatprep.subr.mxu0 0.0
    %1980 = vmatpush1.msra.mxu0 %v339
    %1981 = vmatprep.subr.mxu0 0.0
    %1982 = vmatpush1.msra.mxu0 %v340
    %1983 = vmatprep.subr.mxu0 0.0
    %1984 = vmatpush1.msra.mxu0 %v341
    %1985 = vmatprep.subr.mxu0 0.0
    %1986 = vmatpush1.msra.mxu0 %v342
    %1987 = vmatprep.subr.mxu0 0.0
    %1988 = vmatpush1.msra.mxu0 %v514
    %1989 = vmatprep.subr.mxu0 0.0
    %1990 = vmatpush1.msra.mxu0 0.0
    %1991 = vmatprep.subr.mxu0 0.0
    %1992 = vmatpush1.msra.mxu0 0.0
    %1993 = vmatprep.subr.mxu0 0.0
    %1994 = vmatpush1.msra.mxu0 0.0
    %1995 = vmatprep.subr.mxu0 0.0
    %1996 = vmatpush1.msra.mxu0 0.0
    %1997 = vmatprep.subr.mxu0 0.0
    %1998 = vmatpush1.msra.mxu0 0.0
    %1999 = vmatprep.subr.mxu0 0.0
    %2000 = vmatpush1.msra.mxu0 0.0
    %2001 = vmatprep.subr.mxu0 0.0
    %2002 = vmatpush1.msra.mxu0 0.0
    %2003 = vmatprep.subr.mxu0 0.0
    %2004 = vmatpush1.msra.mxu0 0.0
    %2005 = vmatprep.subr.mxu0 0.0
    %2006 = vmatpush1.msra.mxu0 0.0
    %2007 = vmatprep.subr.mxu0 0.0
    %2008 = vmatpush1.msra.mxu0 0.0
    %2009 = vmatprep.subr.mxu0 0.0
    %2010 = vmatpush1.msra.mxu0 0.0
    %2011 = vmatprep.subr.mxu0 0.0
    %2012 = vmatpush1.msra.mxu0 0.0
    %2013 = vmatprep.subr.mxu0 0.0
    %2014 = vmatpush1.msra.mxu0 0.0
    %2015 = vmatprep.subr.mxu0 0.0
    %2016 = vmatpush1.msra.mxu0 0.0
    %2017 = vmatprep.subr.mxu0 0.0
    %2018 = vmatpush1.msra.mxu0 0.0
    %2019 = vmatprep.subr.mxu0 0.0
    %2020 = vmatpush1.msra.mxu0 0.0
    %2021 = vmatprep.subr.mxu0 0.0
    %2022 = vmatpush1.msra.mxu0 0.0
    %2023 = vmatprep.subr.mxu0 0.0
    %2024 = vmatpush1.msra.mxu0 0.0
    %2025 = vmatprep.subr.mxu0 0.0
    %2026 = vmatpush1.msra.mxu0 0.0
    %2027 = vmatprep.subr.mxu0 0.0
    %2028 = vmatpush1.msra.mxu0 0.0
    %2029 = vmatprep.subr.mxu0 0.0
    %2030 = vmatpush1.msra.mxu0 0.0
    %2031 = vmatprep.subr.mxu0 0.0
    %2032 = vmatpush1.msra.mxu0 0.0
    %2033 = vmatprep.subr.mxu0 0.0
    %2034 = vmatpush1.msra.mxu0 0.0
    %2035 = vmatprep.subr.mxu0 0.0
    %2036 = vmatpush1.msra.mxu0 0.0
    %2037 = vmatprep.subr.mxu0 0.0
    %2038 = vmatpush1.msra.mxu0 0.0
    %2039 = vmatprep.mubr.f32.mxu0 0.0
    %2040 = vmatmul.mubr.f32.gmra.mrb[0].mxu0 %v1813
    %v2041 = vpop.f32.mrb[0].mxu0
    %v2042 = vadd.f32 %v512, %v2041
    %v2043 = vpop.f32.mrb[0].mxu0
    %2044 = vdwg.mxu0
    %v2046 = vrot.slane %v2042, 4
    %v2048 = vmul.f32 %v1964, %v2046
    %v2049 = vadd.f32 %v318, %v2048
    %v2050 = vtanh.pop %v2049
    %v2051 = vsub.f32 1.0, %v1974
    %v2052 = vmul.f32 %v2051, %v2050
    %v2053 = vrot.slane %v1810, 6
    %v2055 = vmul.f32 %v1974, %v2053
    %v2056 = vadd.f32 %v2052, %v2055
    %v2058 = vrot.slane %v2056, 4
    %v2059 = vsel %vm344, %v2058, 0
    %2061 = vmatprep.subr.mxu0 0.0
    %2062 = vmatpush1.msra.mxu0 %v321
    %2063 = vmatprep.subr.mxu0 0.0
    %2064 = vmatpush1.msra.mxu0 %v322
    %2065 = vmatprep.subr.mxu0 0.0
    %2066 = vmatpush1.msra.mxu0 %v323
    %2067 = vmatprep.subr.mxu0 0.0
    %2068 = vmatpush1.msra.mxu0 %v324
    %2069 = vmatprep.subr.mxu0 0.0
    %2070 = vmatpush1.msra.mxu0 %v325
    %2071 = vmatprep.subr.mxu0 0.0
    %2072 = vmatpush1.msra.mxu0 %v326
    %2073 = vmatprep.subr.mxu0 0.0
    %2074 = vmatpush1.msra.mxu0 %v350
    %2075 = vmatprep.subr.mxu0 0.0
    %2076 = vmatpush1.msra.mxu0 0.0
    %2077 = vmatprep.subr.mxu0 0.0
    %2078 = vmatpush1.msra.mxu0 0.0
    %2079 = vmatprep.subr.mxu0 0.0
    %2080 = vmatpush1.msra.mxu0 0.0
    %2081 = vmatprep.subr.mxu0 0.0
    %2082 = vmatpush1.msra.mxu0 0.0
    %2083 = vmatprep.subr.mxu0 0.0
    %2084 = vmatpush1.msra.mxu0 0.0
    %2085 = vmatprep.subr.mxu0 0.0
    %2086 = vmatpush1.msra.mxu0 0.0
    %2087 = vmatprep.subr.mxu0 0.0
    %2088 = vmatpush1.msra.mxu0 0.0
    %2089 = vmatprep.subr.mxu0 0.0
    %2090 = vmatpush1.msra.mxu0 0.0
    %2091 = vmatprep.subr.mxu0 0.0
    %2092 = vmatpush1.msra.mxu0 0.0
    %2093 = vmatprep.subr.mxu0 0.0
    %2094 = vmatpush1.msra.mxu0 0.0
    %2095 = vmatprep.subr.mxu0 0.0
    %2096 = vmatpush1.msra.mxu0 0.0
    %2097 = vmatprep.subr.mxu0 0.0
    %2098 = vmatpush1.msra.mxu0 0.0
    %2099 = vmatprep.subr.mxu0 0.0
    %2100 = vmatpush1.msra.mxu0 0.0
    %2101 = vmatprep.subr.mxu0 0.0
    %2102 = vmatpush1.msra.mxu0 0.0
    %2103 = vmatprep.subr.mxu0 0.0
    %2104 = vmatpush1.msra.mxu0 0.0
    %2105 = vmatprep.subr.mxu0 0.0
    %2106 = vmatpush1.msra.mxu0 0.0
    %2107 = vmatprep.subr.mxu0 0.0
    %2108 = vmatpush1.msra.mxu0 0.0
    %2109 = vmatprep.subr.mxu0 0.0
    %2110 = vmatpush1.msra.mxu0 0.0
    %2111 = vmatprep.subr.mxu0 0.0
    %2112 = vmatpush1.msra.mxu0 0.0
    %2113 = vmatprep.subr.mxu0 0.0
    %2114 = vmatpush1.msra.mxu0 0.0
    %2115 = vmatprep.subr.mxu0 0.0
    %2116 = vmatpush1.msra.mxu0 0.0
    %2117 = vmatprep.subr.mxu0 0.0
    %2118 = vmatpush1.msra.mxu0 0.0
    %2119 = vmatprep.subr.mxu0 0.0
    %2120 = vmatpush1.msra.mxu0 0.0
    %2121 = vmatprep.subr.mxu0 0.0
    %2122 = vmatpush1.msra.mxu0 0.0
    %2123 = vmatprep.subr.mxu0 0.0
    %2124 = vmatpush1.msra.mxu0 0.0
    %2125 = vmatprep.mubr.f32.mxu0 0.0
    %2126 = vmatmul.mubr.f32.gmra.mrb[0].mxu0 %v2059
    %v2127 = vpop.f32.mrb[0].mxu0
    %v2128 = vadd.f32 0.0, %v2127
    %v2129 = vpop.f32.mrb[0].mxu0
    %2130 = vdwg.mxu0
    %2131 = vmatprep.subr.mxu0 0.0
    %2132 = vmatpush1.msra.mxu0 %v329
    %2133 = vmatprep.subr.mxu0 0.0
    %2134 = vmatpush1.msra.mxu0 %v330
    %2135 = vmatprep.subr.mxu0 0.0
    %2136 = vmatpush1.msra.mxu0 %v331
    %2137 = vmatprep.subr.mxu0 0.0
    %2138 = vmatpush1.msra.mxu0 %v332
    %2139 = vmatprep.subr.mxu0 0.0
    %2140 = vmatpush1.msra.mxu0 %v333
    %2141 = vmatprep.subr.mxu0 0.0
    %2142 = vmatpush1.msra.mxu0 %v334
    %2143 = vmatprep.subr.mxu0 0.0
    %2144 = vmatpush1.msra.mxu0 %v423
    %2145 = vmatprep.subr.mxu0 0.0
    %2146 = vmatpush1.msra.mxu0 0.0
    %2147 = vmatprep.subr.mxu0 0.0
    %2148 = vmatpush1.msra.mxu0 0.0
    %2149 = vmatprep.subr.mxu0 0.0
    %2150 = vmatpush1.msra.mxu0 0.0
    %2151 = vmatprep.subr.mxu0 0.0
    %2152 = vmatpush1.msra.mxu0 0.0
    %2153 = vmatprep.subr.mxu0 0.0
    %2154 = vmatpush1.msra.mxu0 0.0
    %2155 = vmatprep.subr.mxu0 0.0
    %2156 = vmatpush1.msra.mxu0 0.0
    %2157 = vmatprep.subr.mxu0 0.0
    %2158 = vmatpush1.msra.mxu0 0.0
    %2159 = vmatprep.subr.mxu0 0.0
    %2160 = vmatpush1.msra.mxu0 0.0
    %2161 = vmatprep.subr.mxu0 0.0
    %2162 = vmatpush1.msra.mxu0 0.0
    %2163 = vmatprep.subr.mxu0 0.0
    %2164 = vmatpush1.msra.mxu0 0.0
    %2165 = vmatprep.subr.mxu0 0.0
    %2166 = vmatpush1.msra.mxu0 0.0
    %2167 = vmatprep.subr.mxu0 0.0
    %2168 = vmatpush1.msra.mxu0 0.0
    %2169 = vmatprep.subr.mxu0 0.0
    %2170 = vmatpush1.msra.mxu0 0.0
    %2171 = vmatprep.subr.mxu0 0.0
    %2172 = vmatpush1.msra.mxu0 0.0
    %2173 = vmatprep.subr.mxu0 0.0
    %2174 = vmatpush1.msra.mxu0 0.0
    %2175 = vmatprep.subr.mxu0 0.0
    %2176 = vmatpush1.msra.mxu0 0.0
    %2177 = vmatprep.subr.mxu0 0.0
    %2178 = vmatpush1.msra.mxu0 0.0
    %2179 = vmatprep.subr.mxu0 0.0
    %2180 = vmatpush1.msra.mxu0 0.0
    %2181 = vmatprep.subr.mxu0 0.0
    %2182 = vmatpush1.msra.mxu0 0.0
    %2183 = vmatprep.subr.mxu0 0.0
    %2184 = vmatpush1.msra.mxu0 0.0
    %2185 = vmatprep.subr.mxu0 0.0
    %2186 = vmatpush1.msra.mxu0 0.0
    %2187 = vmatprep.subr.mxu0 0.0
    %2188 = vmatpush1.msra.mxu0 0.0
    %2189 = vmatprep.subr.mxu0 0.0
    %2190 = vmatpush1.msra.mxu0 0.0
    %2191 = vmatprep.subr.mxu0 0.0
    %2192 = vmatpush1.msra.mxu0 0.0
    %2193 = vmatprep.subr.mxu0 0.0
    %2194 = vmatpush1.msra.mxu0 0.0
    %2195 = vmatprep.mubr.f32.mxu0 0.0
    %2196 = vmatmul.mubr.f32.gmra.mrb[0].mxu0 %v2059
    %v2197 = vpop.f32.mrb[0].mxu0
    %v2198 = vadd.f32 0.0, %v2197
    %v2199 = vpop.f32.mrb[0].mxu0
    %2200 = vdwg.mxu0
    %v2202 = vrot.slane %v2128, 2
    %v2204 = vadd.f32 %v154, %v2202
    %v2205 = vxor.u32 %v2204, 2147483648
    %v2206 = vmul.f32 %v2205, 1.442695
    %v2207 = vpow.pop %v2206
    %v2208 = vadd.f32 %v2207, 1.0
    %v2209 = vrcp.pop %v2208
    %v2210 = vmul.f32 1.0, %v2209
    %v2212 = vrot.slane %v2198, 2
    %v2214 = vadd.f32 %v236, %v2212
    %v2215 = vxor.u32 %v2214, 2147483648
    %v2216 = vmul.f32 %v2215, 1.442695
    %v2217 = vpow.pop %v2216
    %v2218 = vadd.f32 %v2217, 1.0
    %v2219 = vrcp.pop %v2218
    %v2220 = vmul.f32 1.0, %v2219
    %2221 = vmatprep.subr.mxu0 0.0
    %2222 = vmatpush1.msra.mxu0 %v337
    %2223 = vmatprep.subr.mxu0 0.0
    %2224 = vmatpush1.msra.mxu0 %v338
    %2225 = vmatprep.subr.mxu0 0.0
    %2226 = vmatpush1.msra.mxu0 %v339
    %2227 = vmatprep.subr.mxu0 0.0
    %2228 = vmatpush1.msra.mxu0 %v340
    %2229 = vmatprep.subr.mxu0 0.0
    %2230 = vmatpush1.msra.mxu0 %v341
    %2231 = vmatprep.subr.mxu0 0.0
    %2232 = vmatpush1.msra.mxu0 %v342
    %2233 = vmatprep.subr.mxu0 0.0
    %2234 = vmatpush1.msra.mxu0 %v514
    %2235 = vmatprep.subr.mxu0 0.0
    %2236 = vmatpush1.msra.mxu0 0.0
    %2237 = vmatprep.subr.mxu0 0.0
    %2238 = vmatpush1.msra.mxu0 0.0
    %2239 = vmatprep.subr.mxu0 0.0
    %2240 = vmatpush1.msra.mxu0 0.0
    %2241 = vmatprep.subr.mxu0 0.0
    %2242 = vmatpush1.msra.mxu0 0.0
    %2243 = vmatprep.subr.mxu0 0.0
    %2244 = vmatpush1.msra.mxu0 0.0
    %2245 = vmatprep.subr.mxu0 0.0
    %2246 = vmatpush1.msra.mxu0 0.0
    %2247 = vmatprep.subr.mxu0 0.0
    %2248 = vmatpush1.msra.mxu0 0.0
    %2249 = vmatprep.subr.mxu0 0.0
    %2250 = vmatpush1.msra.mxu0 0.0
    %2251 = vmatprep.subr.mxu0 0.0
    %2252 = vmatpush1.msra.mxu0 0.0
    %2253 = vmatprep.subr.mxu0 0.0
    %2254 = vmatpush1.msra.mxu0 0.0
    %2255 = vmatprep.subr.mxu0 0.0
    %2256 = vmatpush1.msra.mxu0 0.0
    %2257 = vmatprep.subr.mxu0 0.0
    %2258 = vmatpush1.msra.mxu0 0.0
    %2259 = vmatprep.subr.mxu0 0.0
    %2260 = vmatpush1.msra.mxu0 0.0
    %2261 = vmatprep.subr.mxu0 0.0
    %2262 = vmatpush1.msra.mxu0 0.0
    %2263 = vmatprep.subr.mxu0 0.0
    %2264 = vmatpush1.msra.mxu0 0.0
    %2265 = vmatprep.subr.mxu0 0.0
    %2266 = vmatpush1.msra.mxu0 0.0
    %2267 = vmatprep.subr.mxu0 0.0
    %2268 = vmatpush1.msra.mxu0 0.0
    %2269 = vmatprep.subr.mxu0 0.0
    %2270 = vmatpush1.msra.mxu0 0.0
    %2271 = vmatprep.subr.mxu0 0.0
    %2272 = vmatpush1.msra.mxu0 0.0
    %2273 = vmatprep.subr.mxu0 0.0
    %2274 = vmatpush1.msra.mxu0 0.0
    %2275 = vmatprep.subr.mxu0 0.0
    %2276 = vmatpush1.msra.mxu0 0.0
    %2277 = vmatprep.subr.mxu0 0.0
    %2278 = vmatpush1.msra.mxu0 0.0
    %2279 = vmatprep.subr.mxu0 0.0
    %2280 = vmatpush1.msra.mxu0 0.0
    %2281 = vmatprep.subr.mxu0 0.0
    %2282 = vmatpush1.msra.mxu0 0.0
    %2283 = vmatprep.subr.mxu0 0.0
    %2284 = vmatpush1.msra.mxu0 0.0
    %2285 = vmatprep.mubr.f32.mxu0 0.0
    %2286 = vmatmul.mubr.f32.gmra.mrb[0].mxu0 %v2059
    %v2287 = vpop.f32.mrb[0].mxu0
    %v2288 = vadd.f32 %v512, %v2287
    %v2289 = vpop.f32.mrb[0].mxu0
    %2290 = vdwg.mxu0
    %v2292 = vrot.slane %v2288, 2
    %v2294 = vmul.f32 %v2210, %v2292
    %v2295 = vadd.f32 %v318, %v2294
    %v2296 = vtanh.pop %v2295
    %v2297 = vsub.f32 1.0, %v2220
    %v2298 = vmul.f32 %v2297, %v2296
    %v2299 = vrot.slane %v2056, 6
    %v2301 = vmul.f32 %v2220, %v2299
    %v2302 = vadd.f32 %v2298, %v2301
    %s2303 = scalar_lea.vmem [#allocation5], 48
    %v2304 = vld [vmem:[%s2303] sm:$0xff]
    %v2305 = vld [vmem:[%s2303 + $0x8] sm:$0xff]
    %v2306 = vlaneseq
    %v2307 = vshrl.u32 %v2306, 7
    %v2308 = vsub.s32 4, %v2307
    %v2309 = vrot.slane %v68, %v2308
    %v2310 = vrot.slane %v67, 6
    %v2311 = vsel %vm75, %v2310, 0
    %2313 = vmatprep.subr.mxu0 0.0
    %2314 = vmatpush1.msra.mxu0 %v2304
    %2315 = vmatprep.subr.mxu0 0.0
    %2316 = vmatpush1.msra.mxu0 %v2305
    %2317 = vmatprep.subr.mxu0 0.0
    %2318 = vmatpush1.msra.mxu0 0.0
    %2319 = vmatprep.subr.mxu0 0.0
    %2320 = vmatpush1.msra.mxu0 0.0
    %2321 = vmatprep.subr.mxu0 0.0
    %2322 = vmatpush1.msra.mxu0 0.0
    %2323 = vmatprep.subr.mxu0 0.0
    %2324 = vmatpush1.msra.mxu0 0.0
    %2325 = vmatprep.subr.mxu0 0.0
    %2326 = vmatpush1.msra.mxu0 0.0
    %2327 = vmatprep.subr.mxu0 0.0
    %2328 = vmatpush1.msra.mxu0 0.0
    %2329 = vmatprep.subr.mxu0 0.0
    %2330 = vmatpush1.msra.mxu0 0.0
    %2331 = vmatprep.subr.mxu0 0.0
    %2332 = vmatpush1.msra.mxu0 0.0
    %2333 = vmatprep.subr.mxu0 0.0
    %2334 = vmatpush1.msra.mxu0 0.0
    %2335 = vmatprep.subr.mxu0 0.0
    %2336 = vmatpush1.msra.mxu0 0.0
    %2337 = vmatprep.subr.mxu0 0.0
    %2338 = vmatpush1.msra.mxu0 0.0
    %2339 = vmatprep.subr.mxu0 0.0
    %2340 = vmatpush1.msra.mxu0 0.0
    %2341 = vmatprep.subr.mxu0 0.0
    %2342 = vmatpush1.msra.mxu0 0.0
    %2343 = vmatprep.subr.mxu0 0.0
    %2344 = vmatpush1.msra.mxu0 0.0
    %2345 = vmatprep.subr.mxu0 0.0
    %2346 = vmatpush1.msra.mxu0 0.0
    %2347 = vmatprep.subr.mxu0 0.0
    %2348 = vmatpush1.msra.mxu0 0.0
    %2349 = vmatprep.subr.mxu0 0.0
    %2350 = vmatpush1.msra.mxu0 0.0
    %2351 = vmatprep.subr.mxu0 0.0
    %2352 = vmatpush1.msra.mxu0 0.0
    %2353 = vmatprep.subr.mxu0 0.0
    %2354 = vmatpush1.msra.mxu0 0.0
    %2355 = vmatprep.subr.mxu0 0.0
    %2356 = vmatpush1.msra.mxu0 0.0
    %2357 = vmatprep.subr.mxu0 0.0
    %2358 = vmatpush1.msra.mxu0 0.0
    %2359 = vmatprep.subr.mxu0 0.0
    %2360 = vmatpush1.msra.mxu0 0.0
    %2361 = vmatprep.subr.mxu0 0.0
    %2362 = vmatpush1.msra.mxu0 0.0
    %2363 = vmatprep.subr.mxu0 0.0
    %2364 = vmatpush1.msra.mxu0 0.0
    %2365 = vmatprep.subr.mxu0 0.0
    %2366 = vmatpush1.msra.mxu0 0.0
    %2367 = vmatprep.subr.mxu0 0.0
    %2368 = vmatpush1.msra.mxu0 0.0
    %2369 = vmatprep.subr.mxu0 0.0
    %2370 = vmatpush1.msra.mxu0 0.0
    %2371 = vmatprep.subr.mxu0 0.0
    %2372 = vmatpush1.msra.mxu0 0.0
    %2373 = vmatprep.subr.mxu0 0.0
    %2374 = vmatpush1.msra.mxu0 0.0
    %2375 = vmatprep.subr.mxu0 0.0
    %2376 = vmatpush1.msra.mxu0 0.0
    %2377 = vmatprep.mubr.f32.mxu0 0.0
    %2378 = vmatmul.mubr.f32.gmra.mrb[0].mxu0 %v2311
    %v2379 = vpop.f32.mrb[0].mxu0
    %v2380 = vadd.f32 %v2309, %v2379
    %v2381 = vpop.f32.mrb[0].mxu0
    %2382 = vdwg.mxu0
    %s2383 = scalar_lea.vmem [#allocation5], 64
    %v2384 = vld [vmem:[%s2383] sm:$0xff]
    %v2385 = vld [vmem:[%s2383 + $0x8] sm:$0xff]
    %v2386 = vlaneseq
    %v2387 = vshrl.u32 %v2386, 7
    %v2388 = vsub.s32 5, %v2387
    %v2389 = vrot.slane %v68, %v2388
    %2390 = vmatprep.subr.mxu0 0.0
    %2391 = vmatpush1.msra.mxu0 %v2384
    %2392 = vmatprep.subr.mxu0 0.0
    %2393 = vmatpush1.msra.mxu0 %v2385
    %2394 = vmatprep.subr.mxu0 0.0
    %2395 = vmatpush1.msra.mxu0 0.0
    %2396 = vmatprep.subr.mxu0 0.0
    %2397 = vmatpush1.msra.mxu0 0.0
    %2398 = vmatprep.subr.mxu0 0.0
    %2399 = vmatpush1.msra.mxu0 0.0
    %2400 = vmatprep.subr.mxu0 0.0
    %2401 = vmatpush1.msra.mxu0 0.0
    %2402 = vmatprep.subr.mxu0 0.0
    %2403 = vmatpush1.msra.mxu0 0.0
    %2404 = vmatprep.subr.mxu0 0.0
    %2405 = vmatpush1.msra.mxu0 0.0
    %2406 = vmatprep.subr.mxu0 0.0
    %2407 = vmatpush1.msra.mxu0 0.0
    %2408 = vmatprep.subr.mxu0 0.0
    %2409 = vmatpush1.msra.mxu0 0.0
    %2410 = vmatprep.subr.mxu0 0.0
    %2411 = vmatpush1.msra.mxu0 0.0
    %2412 = vmatprep.subr.mxu0 0.0
    %2413 = vmatpush1.msra.mxu0 0.0
    %2414 = vmatprep.subr.mxu0 0.0
    %2415 = vmatpush1.msra.mxu0 0.0
    %2416 = vmatprep.subr.mxu0 0.0
    %2417 = vmatpush1.msra.mxu0 0.0
    %2418 = vmatprep.subr.mxu0 0.0
    %2419 = vmatpush1.msra.mxu0 0.0
    %2420 = vmatprep.subr.mxu0 0.0
    %2421 = vmatpush1.msra.mxu0 0.0
    %2422 = vmatprep.subr.mxu0 0.0
    %2423 = vmatpush1.msra.mxu0 0.0
    %2424 = vmatprep.subr.mxu0 0.0
    %2425 = vmatpush1.msra.mxu0 0.0
    %2426 = vmatprep.subr.mxu0 0.0
    %2427 = vmatpush1.msra.mxu0 0.0
    %2428 = vmatprep.subr.mxu0 0.0
    %2429 = vmatpush1.msra.mxu0 0.0
    %2430 = vmatprep.subr.mxu0 0.0
    %2431 = vmatpush1.msra.mxu0 0.0
    %2432 = vmatprep.subr.mxu0 0.0
    %2433 = vmatpush1.msra.mxu0 0.0
    %2434 = vmatprep.subr.mxu0 0.0
    %2435 = vmatpush1.msra.mxu0 0.0
    %2436 = vmatprep.subr.mxu0 0.0
    %2437 = vmatpush1.msra.mxu0 0.0
    %2438 = vmatprep.subr.mxu0 0.0
    %2439 = vmatpush1.msra.mxu0 0.0
    %2440 = vmatprep.subr.mxu0 0.0
    %2441 = vmatpush1.msra.mxu0 0.0
    %2442 = vmatprep.subr.mxu0 0.0
    %2443 = vmatpush1.msra.mxu0 0.0
    %2444 = vmatprep.subr.mxu0 0.0
    %2445 = vmatpush1.msra.mxu0 0.0
    %2446 = vmatprep.subr.mxu0 0.0
    %2447 = vmatpush1.msra.mxu0 0.0
    %2448 = vmatprep.subr.mxu0 0.0
    %2449 = vmatpush1.msra.mxu0 0.0
    %2450 = vmatprep.subr.mxu0 0.0
    %2451 = vmatpush1.msra.mxu0 0.0
    %2452 = vmatprep.subr.mxu0 0.0
    %2453 = vmatpush1.msra.mxu0 0.0
    %2454 = vmatprep.mubr.f32.mxu0 0.0
    %2455 = vmatmul.mubr.f32.gmra.mrb[0].mxu0 %v2311
    %v2456 = vpop.f32.mrb[0].mxu0
    %v2457 = vadd.f32 %v2389, %v2456
    %v2458 = vpop.f32.mrb[0].mxu0
    %2459 = vdwg.mxu0
    %s2460 = scalar_lea.vmem [#allocation5], 80
    %v2461 = vld [vmem:[%s2460] sm:$0xff]
    %v2462 = vld [vmem:[%s2460 + $0x8] sm:$0xff]
    %v2463 = vlaneseq
    %v2464 = vshrl.u32 %v2463, 7
    %v2465 = vsub.s32 6, %v2464
    %v2466 = vrot.slane %v68, %v2465
    %2467 = vmatprep.subr.mxu0 0.0
    %2468 = vmatpush1.msra.mxu0 %v2461
    %2469 = vmatprep.subr.mxu0 0.0
    %2470 = vmatpush1.msra.mxu0 %v2462
    %2471 = vmatprep.subr.mxu0 0.0
    %2472 = vmatpush1.msra.mxu0 0.0
    %2473 = vmatprep.subr.mxu0 0.0
    %2474 = vmatpush1.msra.mxu0 0.0
    %2475 = vmatprep.subr.mxu0 0.0
    %2476 = vmatpush1.msra.mxu0 0.0
    %2477 = vmatprep.subr.mxu0 0.0
    %2478 = vmatpush1.msra.mxu0 0.0
    %2479 = vmatprep.subr.mxu0 0.0
    %2480 = vmatpush1.msra.mxu0 0.0
    %2481 = vmatprep.subr.mxu0 0.0
    %2482 = vmatpush1.msra.mxu0 0.0
    %2483 = vmatprep.subr.mxu0 0.0
    %2484 = vmatpush1.msra.mxu0 0.0
    %2485 = vmatprep.subr.mxu0 0.0
    %2486 = vmatpush1.msra.mxu0 0.0
    %2487 = vmatprep.subr.mxu0 0.0
    %2488 = vmatpush1.msra.mxu0 0.0
    %2489 = vmatprep.subr.mxu0 0.0
    %2490 = vmatpush1.msra.mxu0 0.0
    %2491 = vmatprep.subr.mxu0 0.0
    %2492 = vmatpush1.msra.mxu0 0.0
    %2493 = vmatprep.subr.mxu0 0.0
    %2494 = vmatpush1.msra.mxu0 0.0
    %2495 = vmatprep.subr.mxu0 0.0
    %2496 = vmatpush1.msra.mxu0 0.0
    %2497 = vmatprep.subr.mxu0 0.0
    %2498 = vmatpush1.msra.mxu0 0.0
    %2499 = vmatprep.subr.mxu0 0.0
    %2500 = vmatpush1.msra.mxu0 0.0
    %2501 = vmatprep.subr.mxu0 0.0
    %2502 = vmatpush1.msra.mxu0 0.0
    %2503 = vmatprep.subr.mxu0 0.0
    %2504 = vmatpush1.msra.mxu0 0.0
    %2505 = vmatprep.subr.mxu0 0.0
    %2506 = vmatpush1.msra.mxu0 0.0
    %2507 = vmatprep.subr.mxu0 0.0
    %2508 = vmatpush1.msra.mxu0 0.0
    %2509 = vmatprep.subr.mxu0 0.0
    %2510 = vmatpush1.msra.mxu0 0.0
    %2511 = vmatprep.subr.mxu0 0.0
    %2512 = vmatpush1.msra.mxu0 0.0
    %2513 = vmatprep.subr.mxu0 0.0
    %2514 = vmatpush1.msra.mxu0 0.0
    %2515 = vmatprep.subr.mxu0 0.0
    %2516 = vmatpush1.msra.mxu0 0.0
    %2517 = vmatprep.subr.mxu0 0.0
    %2518 = vmatpush1.msra.mxu0 0.0
    %2519 = vmatprep.subr.mxu0 0.0
    %2520 = vmatpush1.msra.mxu0 0.0
    %2521 = vmatprep.subr.mxu0 0.0
    %2522 = vmatpush1.msra.mxu0 0.0
    %2523 = vmatprep.subr.mxu0 0.0
    %2524 = vmatpush1.msra.mxu0 0.0
    %2525 = vmatprep.subr.mxu0 0.0
    %2526 = vmatpush1.msra.mxu0 0.0
    %2527 = vmatprep.subr.mxu0 0.0
    %2528 = vmatpush1.msra.mxu0 0.0
    %2529 = vmatprep.subr.mxu0 0.0
    %2530 = vmatpush1.msra.mxu0 0.0
    %2531 = vmatprep.mubr.f32.mxu0 0.0
    %2532 = vmatmul.mubr.f32.gmra.mrb[0].mxu0 %v2311
    %v2533 = vpop.f32.mrb[0].mxu0
    %v2534 = vadd.f32 %v2466, %v2533
    %v2535 = vpop.f32.mrb[0].mxu0
    %2536 = vdwg.mxu0
    %v2537 = vxor.u32 %v2380, 2147483648
    %v2538 = vmul.f32 %v2537, 1.442695
    %v2539 = vpow.pop %v2538
    %v2540 = vadd.f32 %v2539, 1.0
    %v2541 = vrcp.pop %v2540
    %v2542 = vmul.f32 1.0, %v2541
    %v2543 = vxor.u32 %v2457, 2147483648
    %v2544 = vmul.f32 %v2543, 1.442695
    %v2545 = vpow.pop %v2544
    %v2546 = vadd.f32 %v2545, 1.0
    %v2547 = vrcp.pop %v2546
    %v2548 = vmul.f32 1.0, %v2547
    %v2549 = vlaneseq
    %v2550 = vshrl.u32 %v2549, 7
    %v2551 = vsub.s32 7, %v2550
    %v2552 = vrot.slane %v68, %v2551
    %v2553 = vmul.f32 %v2542, %v2552
    %v2554 = vadd.f32 %v2534, %v2553
    %v2555 = vtanh.pop %v2554
    %v2556 = vsub.f32 1.0, %v2548
    %v2557 = vmul.f32 %v2556, %v2555
    %v2558 = vld [vmem:[%s6] sm:$0xf]
    %v2559 = vld [vmem:[%s4] sm:$0xff]
    %v2560 = vld [vmem:[%s4 + $0x8] sm:$0xff]
    %v2561 = vld [vmem:[%s4 + $0x10] sm:$0xff]
    %v2562 = vld [vmem:[%s4 + $0x18] sm:$0xff]
    %v2563 = vld [vmem:[%s4 + $0x20] sm:$0xff]
    %v2564 = vld [vmem:[%s4 + $0x28] sm:$0xff]
    %v2565 = vld [vmem:[%s4 + $0x30] sm:$0x3]
    %s2566 = scalar_lea.vmem %s4, 56
    %v2567 = vld [vmem:[%s2566] sm:$0xff]
    %v2568 = vld [vmem:[%s2566 + $0x8] sm:$0xff]
    %v2569 = vld [vmem:[%s2566 + $0x10] sm:$0xff]
    %v2570 = vld [vmem:[%s2566 + $0x18] sm:$0xff]
    %v2571 = vld [vmem:[%s2566 + $0x20] sm:$0xff]
    %v2572 = vld [vmem:[%s2566 + $0x28] sm:$0xff]
    %v2573 = vld [vmem:[%s2566 + $0x30] sm:$0x3]
    %v2575 = vsel %vm344, %v2557, 0
    %v2578 = vsel %vm348, %v2573, 0
    %2580 = vmatprep.subr.mxu0 0.0
    %2581 = vmatpush1.msra.mxu0 %v2567
    %2582 = vmatprep.subr.mxu0 0.0
    %2583 = vmatpush1.msra.mxu0 %v2568
    %2584 = vmatprep.subr.mxu0 0.0
    %2585 = vmatpush1.msra.mxu0 %v2569
    %2586 = vmatprep.subr.mxu0 0.0
    %2587 = vmatpush1.msra.mxu0 %v2570
    %2588 = vmatprep.subr.mxu0 0.0
    %2589 = vmatpush1.msra.mxu0 %v2571
    %2590 = vmatprep.subr.mxu0 0.0
    %2591 = vmatpush1.msra.mxu0 %v2572
    %2592 = vmatprep.subr.mxu0 0.0
    %2593 = vmatpush1.msra.mxu0 %v2578
    %2594 = vmatprep.subr.mxu0 0.0
    %2595 = vmatpush1.msra.mxu0 0.0
    %2596 = vmatprep.subr.mxu0 0.0
    %2597 = vmatpush1.msra.mxu0 0.0
    %2598 = vmatprep.subr.mxu0 0.0
    %2599 = vmatpush1.msra.mxu0 0.0
    %2600 = vmatprep.subr.mxu0 0.0
    %2601 = vmatpush1.msra.mxu0 0.0
    %2602 = vmatprep.subr.mxu0 0.0
    %2603 = vmatpush1.msra.mxu0 0.0
    %2604 = vmatprep.subr.mxu0 0.0
    %2605 = vmatpush1.msra.mxu0 0.0
    %2606 = vmatprep.subr.mxu0 0.0
    %2607 = vmatpush1.msra.mxu0 0.0
    %2608 = vmatprep.subr.mxu0 0.0
    %2609 = vmatpush1.msra.mxu0 0.0
    %2610 = vmatprep.subr.mxu0 0.0
    %2611 = vmatpush1.msra.mxu0 0.0
    %2612 = vmatprep.subr.mxu0 0.0
    %2613 = vmatpush1.msra.mxu0 0.0
    %2614 = vmatprep.subr.mxu0 0.0
    %2615 = vmatpush1.msra.mxu0 0.0
    %2616 = vmatprep.subr.mxu0 0.0
    %2617 = vmatpush1.msra.mxu0 0.0
    %2618 = vmatprep.subr.mxu0 0.0
    %2619 = vmatpush1.msra.mxu0 0.0
    %2620 = vmatprep.subr.mxu0 0.0
    %2621 = vmatpush1.msra.mxu0 0.0
    %2622 = vmatprep.subr.mxu0 0.0
    %2623 = vmatpush1.msra.mxu0 0.0
    %2624 = vmatprep.subr.mxu0 0.0
    %2625 = vmatpush1.msra.mxu0 0.0
    %2626 = vmatprep.subr.mxu0 0.0
    %2627 = vmatpush1.msra.mxu0 0.0
    %2628 = vmatprep.subr.mxu0 0.0
    %2629 = vmatpush1.msra.mxu0 0.0
    %2630 = vmatprep.subr.mxu0 0.0
    %2631 = vmatpush1.msra.mxu0 0.0
    %2632 = vmatprep.subr.mxu0 0.0
    %2633 = vmatpush1.msra.mxu0 0.0
    %2634 = vmatprep.subr.mxu0 0.0
    %2635 = vmatpush1.msra.mxu0 0.0
    %2636 = vmatprep.subr.mxu0 0.0
    %2637 = vmatpush1.msra.mxu0 0.0
    %2638 = vmatprep.subr.mxu0 0.0
    %2639 = vmatpush1.msra.mxu0 0.0
    %2640 = vmatprep.subr.mxu0 0.0
    %2641 = vmatpush1.msra.mxu0 0.0
    %2642 = vmatprep.subr.mxu0 0.0
    %2643 = vmatpush1.msra.mxu0 0.0
    %2644 = vmatprep.mubr.f32.mxu0 0.0
    %2645 = vmatmul.mubr.f32.gmra.mrb[0].mxu0 %v2575
    %v2646 = vpop.f32.mrb[0].mxu0
    %v2647 = vadd.f32 0.0, %v2646
    %v2648 = vpop.f32.mrb[0].mxu0
    %2649 = vdwg.mxu0
    %v2651 = vrot.slane %v2302, 6
    %v2652 = vsel %vm344, %v2651, 0
    %v2655 = vsel %vm348, %v2565, 0
    %2657 = vmatprep.subr.mxu0 0.0
    %2658 = vmatpush1.msra.mxu0 %v2559
    %2659 = vmatprep.subr.mxu0 0.0
    %2660 = vmatpush1.msra.mxu0 %v2560
    %2661 = vmatprep.subr.mxu0 0.0
    %2662 = vmatpush1.msra.mxu0 %v2561
    %2663 = vmatprep.subr.mxu0 0.0
    %2664 = vmatpush1.msra.mxu0 %v2562
    %2665 = vmatprep.subr.mxu0 0.0
    %2666 = vmatpush1.msra.mxu0 %v2563
    %2667 = vmatprep.subr.mxu0 0.0
    %2668 = vmatpush1.msra.mxu0 %v2564
    %2669 = vmatprep.subr.mxu0 0.0
    %2670 = vmatpush1.msra.mxu0 %v2655
    %2671 = vmatprep.subr.mxu0 0.0
    %2672 = vmatpush1.msra.mxu0 0.0
    %2673 = vmatprep.subr.mxu0 0.0
    %2674 = vmatpush1.msra.mxu0 0.0
    %2675 = vmatprep.subr.mxu0 0.0
    %2676 = vmatpush1.msra.mxu0 0.0
    %2677 = vmatprep.subr.mxu0 0.0
    %2678 = vmatpush1.msra.mxu0 0.0
    %2679 = vmatprep.subr.mxu0 0.0
    %2680 = vmatpush1.msra.mxu0 0.0
    %2681 = vmatprep.subr.mxu0 0.0
    %2682 = vmatpush1.msra.mxu0 0.0
    %2683 = vmatprep.subr.mxu0 0.0
    %2684 = vmatpush1.msra.mxu0 0.0
    %2685 = vmatprep.subr.mxu0 0.0
    %2686 = vmatpush1.msra.mxu0 0.0
    %2687 = vmatprep.subr.mxu0 0.0
    %2688 = vmatpush1.msra.mxu0 0.0
    %2689 = vmatprep.subr.mxu0 0.0
    %2690 = vmatpush1.msra.mxu0 0.0
    %2691 = vmatprep.subr.mxu0 0.0
    %2692 = vmatpush1.msra.mxu0 0.0
    %2693 = vmatprep.subr.mxu0 0.0
    %2694 = vmatpush1.msra.mxu0 0.0
    %2695 = vmatprep.subr.mxu0 0.0
    %2696 = vmatpush1.msra.mxu0 0.0
    %2697 = vmatprep.subr.mxu0 0.0
    %2698 = vmatpush1.msra.mxu0 0.0
    %2699 = vmatprep.subr.mxu0 0.0
    %2700 = vmatpush1.msra.mxu0 0.0
    %2701 = vmatprep.subr.mxu0 0.0
    %2702 = vmatpush1.msra.mxu0 0.0
    %2703 = vmatprep.subr.mxu0 0.0
    %2704 = vmatpush1.msra.mxu0 0.0
    %2705 = vmatprep.subr.mxu0 0.0
    %2706 = vmatpush1.msra.mxu0 0.0
    %2707 = vmatprep.subr.mxu0 0.0
    %2708 = vmatpush1.msra.mxu0 0.0
    %2709 = vmatprep.subr.mxu0 0.0
    %2710 = vmatpush1.msra.mxu0 0.0
    %2711 = vmatprep.subr.mxu0 0.0
    %2712 = vmatpush1.msra.mxu0 0.0
    %2713 = vmatprep.subr.mxu0 0.0
    %2714 = vmatpush1.msra.mxu0 0.0
    %2715 = vmatprep.subr.mxu0 0.0
    %2716 = vmatpush1.msra.mxu0 0.0
    %2717 = vmatprep.subr.mxu0 0.0
    %2718 = vmatpush1.msra.mxu0 0.0
    %2719 = vmatprep.subr.mxu0 0.0
    %2720 = vmatpush1.msra.mxu0 0.0
    %2721 = vmatprep.mubr.f32.mxu0 0.0
    %2722 = vmatmul.mubr.f32.gmra.mrb[0].mxu0 %v2652
    %v2723 = vpop.f32.mrb[0].mxu0
    %v2724 = vadd.f32 %v2647, %v2723
    %v2725 = vpop.f32.mrb[0].mxu0
    %2726 = vdwg.mxu0
    %v2727 = vlaneseq
    %v2728 = vshrl.u32 %v2727, 7
    %v2729 = vsub.s32 0, %v2728
    %v2730 = vrot.slane %v2558, %v2729
    %v2731 = vadd.f32 %v2724, %v2730
    %vm2732 = vcmask 123904
    %v2733 = vsel %vm2732, %v2731, 0.0
    %v2734 = vrot.slane %v2733, 4
    %v2735 = vadd.f32 %v2733, %v2734
    %v2736 = vrot.slane %v2735, 2
    %v2737 = vadd.f32 %v2735, %v2736
    %v2738 = vrot.slane %v2737, 1
    %v2739 = vadd.f32 %v2737, %v2738
    %v2740 = vrcp.pop 2.0
    %v2741 = vmul.f32 %v2739, %v2740
    %v2742 = vsub.f32 %v2731, %v2741
    %v2743 = vmul.f32 %v2742, %v2742
    %v2744 = vsel %vm2732, %v2743, 0.0
    %v2745 = vrot.slane %v2744, 4
    %v2746 = vadd.f32 %v2744, %v2745
    %v2747 = vrot.slane %v2746, 2
    %v2748 = vadd.f32 %v2746, %v2747
    %v2749 = vrot.slane %v2748, 1
    %v2750 = vadd.f32 %v2748, %v2749
    %v2751 = vmul.f32 %v2750, %v2740
    %v2752 = vadd.f32 %v2751, 1e-05
    %v2753 = vrsqrt.pop %v2752
    %v2754 = vmul.f32 %v2742, %v2753
    %v2755 = vlaneseq
    %v2756 = vshrl.u32 %v2755, 7
    %v2757 = vsub.s32 1, %v2756
    %v2758 = vrot.slane %v2558, %v2757
    %v2759 = vmul.f32 %v2754, %v2758
    %v2760 = vlaneseq
    %v2761 = vshrl.u32 %v2760, 7
    %v2762 = vsub.s32 2, %v2761
    %v2763 = vrot.slane %v2558, %v2762
    %v2764 = vadd.f32 %v2759, %v2763
    %v2765 = vmax.f32 %v2764, 0.0
    %v2766 = vld [vmem:[%s5] sm:$0xff]
    %v2767 = vld [vmem:[%s5 + $0x8] sm:$0xff]
    %v2768 = vlaneseq
    %v2769 = vshrl.u32 %v2768, 7
    %v2770 = vsub.s32 3, %v2769
    %v2771 = vrot.slane %v2558, %v2770
    %v2773 = vsel %vm75, %v2765, 0
    %2775 = vmatprep.subr.mxu0 0.0
    %2776 = vmatpush1.msra.mxu0 %v2766
    %2777 = vmatprep.subr.mxu0 0.0
    %2778 = vmatpush1.msra.mxu0 %v2767
    %2779 = vmatprep.subr.mxu0 0.0
    %2780 = vmatpush1.msra.mxu0 0.0
    %2781 = vmatprep.subr.mxu0 0.0
    %2782 = vmatpush1.msra.mxu0 0.0
    %2783 = vmatprep.subr.mxu0 0.0
    %2784 = vmatpush1.msra.mxu0 0.0
    %2785 = vmatprep.subr.mxu0 0.0
    %2786 = vmatpush1.msra.mxu0 0.0
    %2787 = vmatprep.subr.mxu0 0.0
    %2788 = vmatpush1.msra.mxu0 0.0
    %2789 = vmatprep.subr.mxu0 0.0
    %2790 = vmatpush1.msra.mxu0 0.0
    %2791 = vmatprep.subr.mxu0 0.0
    %2792 = vmatpush1.msra.mxu0 0.0
    %2793 = vmatprep.subr.mxu0 0.0
    %2794 = vmatpush1.msra.mxu0 0.0
    %2795 = vmatprep.subr.mxu0 0.0
    %2796 = vmatpush1.msra.mxu0 0.0
    %2797 = vmatprep.subr.mxu0 0.0
    %2798 = vmatpush1.msra.mxu0 0.0
    %2799 = vmatprep.subr.mxu0 0.0
    %2800 = vmatpush1.msra.mxu0 0.0
    %2801 = vmatprep.subr.mxu0 0.0
    %2802 = vmatpush1.msra.mxu0 0.0
    %2803 = vmatprep.subr.mxu0 0.0
    %2804 = vmatpush1.msra.mxu0 0.0
    %2805 = vmatprep.subr.mxu0 0.0
    %2806 = vmatpush1.msra.mxu0 0.0
    %2807 = vmatprep.subr.mxu0 0.0
    %2808 = vmatpush1.msra.mxu0 0.0
    %2809 = vmatprep.subr.mxu0 0.0
    %2810 = vmatpush1.msra.mxu0 0.0
    %2811 = vmatprep.subr.mxu0 0.0
    %2812 = vmatpush1.msra.mxu0 0.0
    %2813 = vmatprep.subr.mxu0 0.0
    %2814 = vmatpush1.msra.mxu0 0.0
    %2815 = vmatprep.subr.mxu0 0.0
    %2816 = vmatpush1.msra.mxu0 0.0
    %2817 = vmatprep.subr.mxu0 0.0
    %2818 = vmatpush1.msra.mxu0 0.0
    %2819 = vmatprep.subr.mxu0 0.0
    %2820 = vmatpush1.msra.mxu0 0.0
    %2821 = vmatprep.subr.mxu0 0.0
    %2822 = vmatpush1.msra.mxu0 0.0
    %2823 = vmatprep.subr.mxu0 0.0
    %2824 = vmatpush1.msra.mxu0 0.0
    %2825 = vmatprep.subr.mxu0 0.0
    %2826 = vmatpush1.msra.mxu0 0.0
    %2827 = vmatprep.subr.mxu0 0.0
    %2828 = vmatpush1.msra.mxu0 0.0
    %2829 = vmatprep.subr.mxu0 0.0
    %2830 = vmatpush1.msra.mxu0 0.0
    %2831 = vmatprep.subr.mxu0 0.0
    %2832 = vmatpush1.msra.mxu0 0.0
    %2833 = vmatprep.subr.mxu0 0.0
    %2834 = vmatpush1.msra.mxu0 0.0
    %2835 = vmatprep.subr.mxu0 0.0
    %2836 = vmatpush1.msra.mxu0 0.0
    %2837 = vmatprep.subr.mxu0 0.0
    %2838 = vmatpush1.msra.mxu0 0.0
    %2839 = vmatprep.mubr.f32.mxu0 0.0
    %2840 = vmatmul.mubr.f32.gmra.mrb[0].mxu0 %v2773
    %v2841 = vpop.f32.mrb[0].mxu0
    %v2842 = vadd.f32 %v2771, %v2841
    %v2843 = vpop.f32.mrb[0].mxu0
    %2844 = vdwg.mxu0
    %vm2845 = vcmask 25600
    %2846 = vst.msk [vmem:[#allocation8] sm:$0x3] %vm2845, %v2842
    // Predicated region
    $region42: #{tpu_custom_call.1} parent=1 // pred_check
      _
    $region43: #{tpu_custom_call.1} parent=1 // pred_check_branch
      %2848 = sbr.rel (0) target = $region45
    $region44: #{tpu_custom_call.1} parent=1 // pred_region
      %s2850 = ssub.s32 32, 32
      %2851 = vsyncadd [#allocation4], %s2850
      %s2853 = sshll.u32 [#allocation8], 4
      %s2854 = int_to_ptr.vmem [resolvable:$true] %s2853
      %2856 = dma.vmem_to_hbm [thread:$0]  %s2854, 32, %s7, [#allocation4]
    $region45: #{tpu_custom_call.1} parent=1 // pred_fallthru
      _
    // Predicated region
    $region46: #{tpu_custom_call.1} parent=1 // pred_check
      _
    $region47: #{tpu_custom_call.1} parent=1 // pred_check_branch
      %2858 = sbr.rel (0) target = $region49
    $region48: #{tpu_custom_call.1} parent=1 // pred_region
      %2859 = dma.done [#allocation4], 32
    $region49: #{tpu_custom_call.1} parent=1 // pred_fallthru
      _
    %2860 = vsyncpa [#allocation3], 1
    %2861 = vsyncpa [#allocation6], 1
    %2862 = vsyncpa [#allocation4], 1

</llo_original>
